<compile_context>
chip_gen: v6e
topology: v6e:2x2x1
jax: 0.10.0
libtpu: 0.0.40
codegen_flags: <defaults>
</compile_context>

<pallas_src>
import functools

import jax
import jax.numpy as jnp
from jax import lax
from jax.experimental import pallas as pl
from jax.experimental.pallas import tpu as pltpu

ATT_DIM = 256  # fixed by the attention module (W: 256x256, V: 256x1)


def _vmem_bytes():
    """Per-TensorCore VMEM capacity; conservative 64 MiB fallback (v7x)."""
    try:
        return int(pltpu.get_tpu_info().vmem_capacity_bytes)
    except Exception:
        return 64 * 1024 * 1024


def _row_tile(n_rows, bytes_per_row, budget):
    """Largest multiple-of-8 row tile dividing n_rows that fits the VMEM budget.

    Prefers >=2 grid steps so both v7x TensorCores get work (no effect on v5e/v6e).
    n_rows is expected to be a multiple of 8 (wrapper pads).
    """
    cap = max(8, (budget // max(bytes_per_row, 1)) // 8 * 8)
    tn = min(n_rows, cap)
    tn = max(tn - tn % 8, 8)
    while tn > 8 and n_rows % tn:
        tn -= 8
    if n_rows % tn:                      # safety: non-multiple-of-8 n_rows
        return n_rows
    if n_rows // tn < 2 and n_rows >= 16:
        half = (n_rows // 2) // 8 * 8
        while half > 8 and n_rows % half:
            half -= 8
        if half >= 8 and n_rows % half == 0:
            tn = half
    return tn


# ----------------------------- attention kernel -----------------------------
# attention.forward: e = tanh(x^T @ W) @ V * scale, softmax over time, weighted
# time-sum -> (N, 256).  One grid step processes a row block of BOTH streams.
def attention_kernel(xw_ref, xs_ref, wt_ref, v_ref, ow_ref, os_ref, *, scale):
    v_row = v_ref[...]                                   # (1, A) f32

    def one_stream(x_ref, o_ref):
        tn = x_ref.shape[0]

        def body(n, carry):
            x_n = x_ref[n]                               # (C, T) bf16, dynamic block row
            # e^T[a, t] = sum_c W[c, a] * x[n, c, t]: standard MXU matmul against the
            # pre-transposed bf16 W^T -- no in-kernel transpose / relayout of x.
            e_t = jnp.dot(wt_ref[...], x_n,
                          preferred_element_type=jnp.float32)        # (A, T) f32
            s = jnp.tanh(e_t)                                          # EUP
            # logits[t] = (tanh(e) . V) * scale via a thin (1, A) @ (A, T) matmul
            logits = jnp.dot(v_row, s,
                             preferred_element_type=jnp.float32) * scale   # (1, T)
            # stabilized softmax over time (mathematically identical to the reference)
            logits = logits - jnp.max(logits, axis=-1, keepdims=True)
            p = jnp.exp(logits)
            alpha = p * pl.reciprocal(jnp.sum(p, axis=-1, keepdims=True),
                                      approx=False)                    # (1, T)
            # pooled[c] = sum_t alpha[t] * x[n, c, t]  (lane reduce over T, f32 acc;
            # bf16 * f32 promotes to f32)
            pooled = jnp.sum(x_n * alpha, axis=-1)                     # (C,) f32
            o_ref[pl.ds(n, 1), :] = pooled.reshape(1, -1)
            return carry

        lax.fori_loop(0, tn, body, 0)

    one_stream(xw_ref, ow_ref)
    one_stream(xs_ref, os_ref)


def attention_forward(x_weak, x_strong, wt_bf16, v_row):
    """x_weak/x_strong: (N, C, T) BaseNet-style features -> two (N, 256) pooled outputs."""
    N, C, T = x_weak.shape

    # Pad the row axis to a multiple of 8 (zero rows are harmless, sliced off below);
    # avoids the full-N single-block fallback blowing VMEM on awkward batch shapes.
    n_pad = (-N) % 8
    if n_pad:
        padcfg = ((0, n_pad), (0, 0), (0, 0))
        x_weak = jnp.pad(x_weak, padcfg)
        x_strong = jnp.pad(x_strong, padcfg)
    n_rows = N + n_pad

    # bf16 features: halves HBM bytes on the dominant (mem-bound) DMA stream.
    x_weak = x_weak.astype(jnp.bfloat16)
    x_strong = x_strong.astype(jnp.bfloat16)

    vmem = _vmem_bytes()
    # per-row VMEM: 2 streams x 2 pipeline buffers x (C*T bf16 in + C f32 out)
    bytes_per_row = 2 * 2 * (C * T * 2 + C * 4)
    tn = _row_tile(n_rows, bytes_per_row, budget=vmem // 4)
    grid = (n_rows // tn,)
    vmem_limit = min((vmem * 3) // 4, 96 * 1024 * 1024)

    ow, os_ = pl.pallas_call(
        functools.partial(attention_kernel, scale=ATT_DIM ** (-0.5)),
        out_shape=(jax.ShapeDtypeStruct((n_rows, C), jnp.float32),
                   jax.ShapeDtypeStruct((n_rows, C), jnp.float32)),
        grid_spec=pltpu.PrefetchScalarGridSpec(
            num_scalar_prefetch=0,
            grid=grid,
            in_specs=[pl.BlockSpec((tn, C, T), lambda i: (i, 0, 0)),
                      pl.BlockSpec((tn, C, T), lambda i: (i, 0, 0)),
                      pl.BlockSpec((ATT_DIM, C), lambda i: (0, 0)),
                      pl.BlockSpec((1, ATT_DIM), lambda i: (0, 0))],
            out_specs=[pl.BlockSpec((tn, C), lambda i: (i, 0)),
                       pl.BlockSpec((tn, C), lambda i: (i, 0))]),
        compiler_params=pltpu.CompilerParams(
            dimension_semantics=("parallel",),
            vmem_limit_bytes=vmem_limit),
    )(x_weak, x_strong, wt_bf16, v_row)
    return ow[:N], os_[:N]


# ------------------- fused projection heads + NT-Xent loss -------------------
# feats: (4, B, 256) stacked [weak_curr, strong_curr, weak_surr, strong_surr]
# heads: (4, ...)    stacked [curr_weak, curr_strong, surr_weak, surr_strong]
def fused_proj_loss_kernel(feats_ref, w1_ref, b1_ref, w2_ref, b2_ref, loss_ref, *,
                           temperature, lambda1):
    inv_t = 1.0 / temperature
    eps = 1e-12                                    # F.normalize eps
    nb = feats_ref.shape[1]                        # B (static)

    feats = feats_ref[...]                         # (4, B, 256) f32
    # all four projection heads per layer in ONE batched MXU call
    z = lax.dot_general(feats, w1_ref[...],
                        dimension_numbers=(((2,), (1,)), ((0,), (0,))),
                        preferred_element_type=jnp.float32) + b1_ref[...]
    z = jnp.maximum(z, 0.0)
    z = lax.dot_general(z, w2_ref[...],
                        dimension_numbers=(((2,), (1,)), ((0,), (0,))),
                        preferred_element_type=jnp.float32) + b2_ref[...]   # (4, B, H)

    # F.normalize(p=2, dim=1): x / max(||x||, eps) == x * rsqrt(max(||x||^2, eps^2))
    sumsq = jnp.sum(z * z, axis=-1, keepdims=True)
    z = z * lax.rsqrt(jnp.maximum(sumsq, eps * eps))                         # normalized

    # ONE (4B, 4B) Gram and ONE exp pass cover all four NT-Xent terms.
    # TODO(synk): for production B stream this in row strips instead of materializing it.
    zf = z.reshape(4 * nb, z.shape[-1])                                      # (4B, H)
    gram = lax.dot_general(zf, zf, dimension_numbers=(((1,), (1,)), ((), ())),
                           preferred_element_type=jnp.float32)               # (4B, 4B)
    sim = jnp.exp(gram * inv_t)

    eye = (lax.broadcasted_iota(jnp.int32, (nb, nb), 0)
           == lax.broadcasted_iota(jnp.int32, (nb, nb), 1))

    def blk(i, j):
        return sim[i * nb:(i + 1) * nb, j * nb:(j + 1) * nb]                 # (B, B)

    # row sums of the diagonal blocks with their exact (MXU) diagonal removed --
    # matches the reference's ~eye mask on the (2B, 2B) sim matrix exactly.
    off_diag = [jnp.sum(jnp.where(eye, 0.0, blk(i, i)), axis=-1, keepdims=True)
                for i in range(4)]                                           # 4 x (B, 1)

    def nt_xent(a, b):
        neg_a = off_diag[a] + jnp.sum(blk(a, b), axis=-1, keepdims=True)     # (B, 1)
        neg_b = off_diag[b] + jnp.sum(blk(b, a), axis=-1, keepdims=True)     # (B, 1)
        # log(pos) == <z_a, z_b>/T exactly (skip the exp/log round-trip)
        log_pos = jnp.sum(z[a] * z[b], axis=-1, keepdims=True) * inv_t       # (B, 1)
        return (jnp.sum(jnp.log(neg_a) - log_pos)
                + jnp.sum(jnp.log(neg_b) - log_pos)) / (2.0 * nb)

    l1 = nt_xent(0, 1)   # loss(weak_curr, strong_curr)
    l2 = nt_xent(2, 3)   # loss(weak_surr, strong_surr)
    l3 = nt_xent(0, 3)   # loss(weak_curr, strong_surr)
    l4 = nt_xent(2, 1)   # loss(weak_surr, strong_curr)
    loss_ref[0] = l1 + l2 + lambda1 * (l3 + l4)


def fused_projection_loss(feats, w1, b1, w2, b2, *, temperature, lambda1):
    out = pl.pallas_call(
        functools.partial(fused_proj_loss_kernel,
                          temperature=temperature, lambda1=lambda1),
        out_shape=jax.ShapeDtypeStruct((1,), jnp.float32),
        in_specs=[pl.BlockSpec(memory_space=pltpu.MemorySpace.VMEM)] * 5,
        out_specs=pl.BlockSpec(memory_space=pltpu.MemorySpace.SMEM),
        compiler_params=pltpu.CompilerParams(vmem_limit_bytes=32 * 1024 * 1024),
    )(feats, w1, b1, w2, b2)
    return out[0]


# ------------------------------ parameter init -------------------------------
def init_params(key, hidden):
    ks = jax.random.split(key, 6)
    att_W = jax.random.normal(ks[0], (256, ATT_DIM), jnp.float32)   # torch.randn(256, 256)
    att_V = jax.random.normal(ks[1], (ATT_DIM, 1), jnp.float32)     # torch.randn(256, 1)

    def pj(k):
        k1, k2, k3, k4 = jax.random.split(k, 4)
        return (jax.random.normal(k1, (256, hidden), jnp.float32) * 0.05,
                jax.random.normal(k2, (1, hidden), jnp.float32) * 0.05,
                jax.random.normal(k3, (hidden, hidden), jnp.float32) * 0.05,
                jax.random.normal(k4, (1, hidden), jnp.float32) * 0.05)

    heads = [pj(ks[i]) for i in (2, 3, 4, 5)]  # curr_weak, curr_strong, surr_weak, surr_strong
    return dict(
        # kernel-friendly layouts computed once: W^T in bf16 (MXU LHS, no per-step
        # in-kernel cast/transpose), V stored as an f32 row vector.
        att_Wt_bf16=att_W.T.astype(jnp.bfloat16),     # (A, C)
        att_V_row=att_V.reshape(1, ATT_DIM),          # (1, A)
        pj_w1=jnp.stack([h[0] for h in heads]),       # (4, 256, H)
        pj_b1=jnp.stack([h[1] for h in heads]),       # (4, 1, H)
        pj_w2=jnp.stack([h[2] for h in heads]),       # (4, H, H)
        pj_b2=jnp.stack([h[3] for h in heads]),       # (4, 1, H)
    )


# --------------------------- full forward (glue) -----------------------------
def contrast_loss_forward(params, weak_feats, strong_feats, *,
                          temperature, lambda1, ep):
    B, E, C, T = weak_feats.shape
    # Single attention launch covers both streams (reshape is free; no HBM concat).
    weak_pooled, strong_pooled = attention_forward(
        weak_feats.reshape(B * E, C, T),
        strong_feats.reshape(B * E, C, T),
        params["att_Wt_bf16"], params["att_V_row"])
    weak_all = weak_pooled.reshape(B, E, C)
    strong_all = strong_pooled.reshape(B, E, C)

    weak_curr = weak_all[:, ep]                    # (B, 256)
    strong_curr = strong_all[:, ep]                # (B, 256)
    # TODO(synk): Transformer over surrounding-epoch features is undefined in source;
    # stand-in = mean over the epoch axis (tiny plain-JAX glue, not the hot path).
    weak_surr = jnp.mean(weak_all, axis=1)         # (B, 256)
    strong_surr = jnp.mean(strong_all, axis=1)     # (B, 256)

    feats = jnp.stack([weak_curr, strong_curr, weak_surr, strong_surr], axis=0)  # (4, B, 256)
    return fused_projection_loss(feats, params["pj_w1"], params["pj_b1"],
                                 params["pj_w2"], params["pj_b2"],
                                 temperature=temperature, lambda1=lambda1)


if __name__ == "__main__":
    key = jax.random.PRNGKey(0)
    B, E, C, T = 2, 2, 256, 128     # batch, epoch_len, channels (fixed=256), time samples
    hidden = 128                    # config.tc_hidden_dim
    temperature, lambda1 = 0.5, 1.0

    kp, kw, ks, ke = jax.random.split(key, 4)
    params = init_params(kp, hidden)

    weak = jax.random.normal(kw, (B, E, C, T), jnp.float32)
    strong = jax.random.normal(ks, (B, E, C, T), jnp.float32)
    # torch.randint(epoch_len, (1,)).item() -> deterministic draw from PRNGKey(0) split
    ep = int(jax.random.randint(ke, (), 0, E))

    tot = contrast_loss_forward(params, weak, strong,
                                temperature=temperature, lambda1=lambda1, ep=ep)
    tot = jax.block_until_ready(tot)
    assert bool(jnp.isfinite(tot)), "loss is not finite"
    print("KERNEL_OK")
</pallas_src>

<mosaic_0001>
module attributes {stable_mosaic.version = 11 : i64} {
  func.func @attention_kernel(%arg0: i32, %arg1: memref<8x256x128xbf16, #tpu.memory_space<vmem>>, %arg2: memref<8x256x128xbf16, #tpu.memory_space<vmem>>, %arg3: memref<256x256xbf16, #tpu.memory_space<vmem>>, %arg4: memref<1x256xf32, #tpu.memory_space<vmem>>, %arg5: memref<8x256xf32, #tpu.memory_space<vmem>>, %arg6: memref<8x256xf32, #tpu.memory_space<vmem>>) attributes {dimension_semantics = [#tpu.dimension_semantics<parallel>], iteration_bounds = array<i64: 1>, scalar_prefetch = 0 : i64, scratch_operands = 0 : i64, tpu.core_type = #tpu.core_type<tc>, window_params = [{transform_indices = @transform_0, window_bounds = array<i64: 8, 256, 128>}, {transform_indices = @transform_1, window_bounds = array<i64: 8, 256, 128>}, {pipeline_mode = #tpu.pipeline_mode<synchronous>, transform_indices = @transform_2, window_bounds = array<i64: 256, 256>}, {pipeline_mode = #tpu.pipeline_mode<synchronous>, transform_indices = @transform_3, window_bounds = array<i64: 1, 256>}, {transform_indices = @transform_4, window_bounds = array<i64: 8, 256>}, {transform_indices = @transform_5, window_bounds = array<i64: 8, 256>}]} {
    %c0 = arith.constant 0 : index
    %c0_0 = arith.constant 0 : index
    %0 = vector.load %arg4[%c0, %c0_0] : memref<1x256xf32, #tpu.memory_space<vmem>>, vector<1x256xf32>
    %c0_i32 = arith.constant 0 : i32
    %c8_i32 = arith.constant 8 : i32
    %1 = arith.addi %c0_i32, %c8_i32 : i32
    %c1_i32 = arith.constant 1 : i32
    scf.for %arg7 = %c0_i32 to %1 step %c1_i32  : i32 {
      %3 = arith.index_cast %arg7 : i32 to index
      %c0_6 = arith.constant 0 : index
      %c0_7 = arith.constant 0 : index
      %4 = vector.load %arg1[%3, %c0_6, %c0_7] : memref<8x256x128xbf16, #tpu.memory_space<vmem>>, vector<1x256x128xbf16>
      %5 = vector.shape_cast %4 : vector<1x256x128xbf16> to vector<256x128xbf16>
      %c0_8 = arith.constant 0 : index
      %c0_9 = arith.constant 0 : index
      %6 = vector.load %arg3[%c0_8, %c0_9] : memref<256x256xbf16, #tpu.memory_space<vmem>>, vector<256x256xbf16>
      %cst = arith.constant dense<0.000000e+00> : vector<256x128xf32>
      %7 = tpu.matmul %6, %5, %cst {dimension_numbers = #tpu.dot_dimension_numbers<[1], [0], [0], [1], [0, 0, 1, 1], [], []>} : vector<256x256xbf16>, vector<256x128xbf16>, vector<256x128xf32> -> vector<256x128xf32>
      %8 = math.tanh %7 : vector<256x128xf32>
      %cst_10 = arith.constant dense<0.000000e+00> : vector<1x128xf32>
      %9 = tpu.matmul %0, %8, %cst_10 {dimension_numbers = #tpu.dot_dimension_numbers<[1], [0], [0], [1], [0, 0, 1, 1], [], []>} : vector<1x256xf32>, vector<256x128xf32>, vector<1x128xf32> -> vector<1x128xf32>
      %cst_11 = arith.constant 6.250000e-02 : f32
      %10 = vector.broadcast %cst_11 : f32 to vector<1x128xf32>
      %11 = arith.mulf %9, %10 : vector<1x128xf32>
      %cst_12 = arith.constant dense<0xFF800000> : vector<1xf32>
      %12 = vector.multi_reduction <maximumf>, %11, %cst_12 [1] : vector<1x128xf32> to vector<1xf32>
      %13 = vector.shape_cast %12 : vector<1xf32> to vector<1x1xf32>
      %14 = vector.broadcast %13 : vector<1x1xf32> to vector<1x128xf32>
      %15 = arith.subf %11, %14 : vector<1x128xf32>
      %16 = math.exp %15 : vector<1x128xf32>
      %cst_13 = arith.constant dense<0.000000e+00> : vector<1xf32>
      %17 = vector.multi_reduction <add>, %16, %cst_13 [1] : vector<1x128xf32> to vector<1xf32>
      %18 = vector.shape_cast %17 : vector<1xf32> to vector<1x1xf32>
      %19 = tpu.reciprocal %18 : vector<1x1xf32> -> vector<1x1xf32>
      %20 = vector.broadcast %19 : vector<1x1xf32> to vector<1x128xf32>
      %21 = arith.mulf %16, %20 : vector<1x128xf32>
      %22 = arith.extf %5 : vector<256x128xbf16> to vector<256x128xf32>
      %23 = vector.broadcast %21 : vector<1x128xf32> to vector<256x128xf32>
      %24 = arith.mulf %22, %23 : vector<256x128xf32>
      %cst_14 = arith.constant dense<0.000000e+00> : vector<256xf32>
      %25 = vector.multi_reduction <add>, %24, %cst_14 [1] : vector<256x128xf32> to vector<256xf32>
      %26 = vector.shape_cast %25 : vector<256xf32> to vector<1x256xf32>
      %27 = arith.index_cast %arg7 : i32 to index
      %c0_15 = arith.constant 0 : index
      %28 = vector.load %arg5[%27, %c0_15] : memref<8x256xf32, #tpu.memory_space<vmem>>, vector<1x256xf32>
      tpu.vector_store %arg5[%27, %c0_15], %26 {strides = array<i32>} : memref<8x256xf32, #tpu.memory_space<vmem>>, vector<1x256xf32>,
    }
    %c8_i32_1 = arith.constant 8 : i32
    %c0_i32_2 = arith.constant 0 : i32
    %c8_i32_3 = arith.constant 8 : i32
    %2 = arith.addi %c0_i32_2, %c8_i32_3 : i32
    %c1_i32_4 = arith.constant 1 : i32
    scf.for %arg7 = %c0_i32_2 to %2 step %c1_i32_4  : i32 {
      %3 = arith.index_cast %arg7 : i32 to index
      %c0_6 = arith.constant 0 : index
      %c0_7 = arith.constant 0 : index
      %4 = vector.load %arg2[%3, %c0_6, %c0_7] : memref<8x256x128xbf16, #tpu.memory_space<vmem>>, vector<1x256x128xbf16>
      %5 = vector.shape_cast %4 : vector<1x256x128xbf16> to vector<256x128xbf16>
      %c0_8 = arith.constant 0 : index
      %c0_9 = arith.constant 0 : index
      %6 = vector.load %arg3[%c0_8, %c0_9] : memref<256x256xbf16, #tpu.memory_space<vmem>>, vector<256x256xbf16>
      %cst = arith.constant dense<0.000000e+00> : vector<256x128xf32>
      %7 = tpu.matmul %6, %5, %cst {dimension_numbers = #tpu.dot_dimension_numbers<[1], [0], [0], [1], [0, 0, 1, 1], [], []>} : vector<256x256xbf16>, vector<256x128xbf16>, vector<256x128xf32> -> vector<256x128xf32>
      %8 = math.tanh %7 : vector<256x128xf32>
      %cst_10 = arith.constant dense<0.000000e+00> : vector<1x128xf32>
      %9 = tpu.matmul %0, %8, %cst_10 {dimension_numbers = #tpu.dot_dimension_numbers<[1], [0], [0], [1], [0, 0, 1, 1], [], []>} : vector<1x256xf32>, vector<256x128xf32>, vector<1x128xf32> -> vector<1x128xf32>
      %cst_11 = arith.constant 6.250000e-02 : f32
      %10 = vector.broadcast %cst_11 : f32 to vector<1x128xf32>
      %11 = arith.mulf %9, %10 : vector<1x128xf32>
      %cst_12 = arith.constant dense<0xFF800000> : vector<1xf32>
      %12 = vector.multi_reduction <maximumf>, %11, %cst_12 [1] : vector<1x128xf32> to vector<1xf32>
      %13 = vector.shape_cast %12 : vector<1xf32> to vector<1x1xf32>
      %14 = vector.broadcast %13 : vector<1x1xf32> to vector<1x128xf32>
      %15 = arith.subf %11, %14 : vector<1x128xf32>
      %16 = math.exp %15 : vector<1x128xf32>
      %cst_13 = arith.constant dense<0.000000e+00> : vector<1xf32>
      %17 = vector.multi_reduction <add>, %16, %cst_13 [1] : vector<1x128xf32> to vector<1xf32>
      %18 = vector.shape_cast %17 : vector<1xf32> to vector<1x1xf32>
      %19 = tpu.reciprocal %18 : vector<1x1xf32> -> vector<1x1xf32>
      %20 = vector.broadcast %19 : vector<1x1xf32> to vector<1x128xf32>
      %21 = arith.mulf %16, %20 : vector<1x128xf32>
      %22 = arith.extf %5 : vector<256x128xbf16> to vector<256x128xf32>
      %23 = vector.broadcast %21 : vector<1x128xf32> to vector<256x128xf32>
      %24 = arith.mulf %22, %23 : vector<256x128xf32>
      %cst_14 = arith.constant dense<0.000000e+00> : vector<256xf32>
      %25 = vector.multi_reduction <add>, %24, %cst_14 [1] : vector<256x128xf32> to vector<256xf32>
      %26 = vector.shape_cast %25 : vector<256xf32> to vector<1x256xf32>
      %27 = arith.index_cast %arg7 : i32 to index
      %c0_15 = arith.constant 0 : index
      %28 = vector.load %arg6[%27, %c0_15] : memref<8x256xf32, #tpu.memory_space<vmem>>, vector<1x256xf32>
      tpu.vector_store %arg6[%27, %c0_15], %26 {strides = array<i32>} : memref<8x256xf32, #tpu.memory_space<vmem>>, vector<1x256xf32>,
    }
    %c8_i32_5 = arith.constant 8 : i32
    return
  }
  func.func @transform_0(%arg0: i32) -> (i32, i32, i32) {
    %c0_i32 = arith.constant 0 : i32
    %c0_i32_0 = arith.constant 0 : i32
    %c0_i32_1 = arith.constant 0 : i32
    return %arg0, %c0_i32, %c0_i32_0 : i32, i32, i32
  }
  func.func @transform_1(%arg0: i32) -> (i32, i32, i32) {
    %c0_i32 = arith.constant 0 : i32
    %c0_i32_0 = arith.constant 0 : i32
    %c0_i32_1 = arith.constant 0 : i32
    return %arg0, %c0_i32, %c0_i32_0 : i32, i32, i32
  }
  func.func @transform_2(%arg0: i32) -> (i32, i32) {
    %c0_i32 = arith.constant 0 : i32
    %c0_i32_0 = arith.constant 0 : i32
    %c0_i32_1 = arith.constant 0 : i32
    return %c0_i32, %c0_i32_0 : i32, i32
  }
  func.func @transform_3(%arg0: i32) -> (i32, i32) {
    %c0_i32 = arith.constant 0 : i32
    %c0_i32_0 = arith.constant 0 : i32
    %c0_i32_1 = arith.constant 0 : i32
    return %c0_i32, %c0_i32_0 : i32, i32
  }
  func.func @transform_4(%arg0: i32) -> (i32, i32) {
    %c0_i32 = arith.constant 0 : i32
    %c0_i32_0 = arith.constant 0 : i32
    return %arg0, %c0_i32 : i32, i32
  }
  func.func @transform_5(%arg0: i32) -> (i32, i32) {
    %c0_i32 = arith.constant 0 : i32
    %c0_i32_0 = arith.constant 0 : i32
    return %arg0, %c0_i32 : i32, i32
  }
}

</mosaic_0001>

<llo_original>
// kernel: tpu_custom_call.1
$region0: #{tpu_custom_call.1}
  #allocation0 [shape = 'u32[]', space=smem, size = 0x4, offset = 0x4, fixed_abs, tag = 'smem constant byte address 0x4 - core index']
  #allocation1 [shape = 'u32[144,128]{1,0:T(1,128)}', space=vmem, size = 0x12000, scoped, tag = 'internal scratch']
  %s0 = inlined_call_operand.hbm [shape: bf16[8,256,128], index: 0, kind: input, shape index: {}]
  %s1 = inlined_call_operand.hbm [shape: bf16[8,256,128], index: 1, kind: input, shape index: {}]
  %s2 = inlined_call_operand.hbm [shape: bf16[256,256], index: 2, kind: input, shape index: {}]
  %s3 = inlined_call_operand.vmem [shape: f32[1,256], index: 3, kind: input, shape index: {}]
  %s4 = inlined_call_operand.hbm [shape: f32[8,256], index: 4, kind: output, shape index: {0}]
  %s5 = inlined_call_operand.hbm [shape: f32[8,256], index: 5, kind: output, shape index: {1}]
  %6 = xla_tuple %s4, %s5
  %s7 = sld [smem:[#allocation0]]
  $region60: #{tpu_custom_call.1} parent=0
    _
  %s9 = ssub.s32 1, %s7
  %s10 = scalar_select 0, %s9, %s7
  $region1: #{tpu_custom_call.1} parent=0
    #allocation2 [shape = 'u8[524288]{0}', space=vmem, size = 0x80000, scoped, tag = 'input window, operand 0, single buffered']
    #allocation3 [shape = 's32[1]{0}', space=sflag, size = 0x4, scoped, tag = 'scoped memory for tpu_custom_call.1']
    #allocation4 [shape = 's32[1]{0}', space=sflag, size = 0x4, scoped, tag = 'scoped memory for tpu_custom_call.1']
    #allocation5 [shape = 'u8[524288]{0}', space=vmem, size = 0x80000, scoped, tag = 'input window, operand 1, single buffered']
    #allocation6 [shape = 's32[1]{0}', space=sflag, size = 0x4, scoped, tag = 'scoped memory for tpu_custom_call.1']
    #allocation7 [shape = 'u8[131072]{0}', space=vmem, size = 0x20000, scoped, tag = 'input window, operand 2, single buffered']
    #allocation8 [shape = 'u8[8192]{0}', space=vmem, size = 0x2000, scoped, tag = 'output window, operand 0, single buffered']
    #allocation9 [shape = 'u8[8192]{0}', space=vmem, size = 0x2000, scoped, tag = 'output window, operand 1, single buffered']
    #allocation10 [shape = 's32[1]{0}', space=sflag, size = 0x4, scoped, tag = 'scoped memory for tpu_custom_call.1']
    %11 = vsyncpa [#allocation3], 0
    %12 = vsyncpa [#allocation6], 0
    %13 = vsyncpa [#allocation4], 0
    %14 = vsyncpa [#allocation10], 0
    // Predicated region
    $region2: #{tpu_custom_call.1} parent=1 // pred_check
      _
    $region3: #{tpu_custom_call.1} parent=1 // pred_check_branch
      %16 = sbr.rel (0) target = $region5
    $region4: #{tpu_custom_call.1} parent=1 // pred_region
      %s18 = ssub.s32 16384, 16384
      %19 = vsyncadd [#allocation3], %s18
      %s20 = sshll.u32 [#allocation2], 4
      %s21 = int_to_ptr.vmem [resolvable:$true] %s20
      %26 = dma.hbm_to_vmem [thread:$0]  %s0, 16384, %s21, [#allocation3], 64, 64, 4
    $region5: #{tpu_custom_call.1} parent=1 // pred_fallthru
      _
    // Predicated region
    $region6: #{tpu_custom_call.1} parent=1 // pred_check
      _
    $region7: #{tpu_custom_call.1} parent=1 // pred_check_branch
      %28 = sbr.rel (0) target = $region9
    $region8: #{tpu_custom_call.1} parent=1 // pred_region
      %s30 = ssub.s32 16384, 16384
      %31 = vsyncadd [#allocation6], %s30
      %s32 = sshll.u32 [#allocation5], 4
      %s33 = int_to_ptr.vmem [resolvable:$true] %s32
      %38 = dma.hbm_to_vmem [thread:$0]  %s1, 16384, %s33, [#allocation6], 64, 64, 4
    $region9: #{tpu_custom_call.1} parent=1 // pred_fallthru
      _
    // Predicated region
    $region10: #{tpu_custom_call.1} parent=1 // pred_check
      _
    $region11: #{tpu_custom_call.1} parent=1 // pred_check_branch
      %40 = sbr.rel (0) target = $region13
    $region12: #{tpu_custom_call.1} parent=1 // pred_region
      %s42 = ssub.s32 4096, 4096
      %43 = vsyncadd [#allocation6], %s42
      %s44 = sshll.u32 [#allocation7], 4
      %s45 = int_to_ptr.vmem [resolvable:$true] %s44
      %50 = dma.hbm_to_vmem [thread:$0]  %s2, 4096, %s45, [#allocation6], 128, 128, 8
    $region13: #{tpu_custom_call.1} parent=1 // pred_fallthru
      _
    // Predicated region
    $region14: #{tpu_custom_call.1} parent=1 // pred_check
      _
    $region15: #{tpu_custom_call.1} parent=1 // pred_check_branch
      %52 = sbr.rel (0) target = $region17
    $region16: #{tpu_custom_call.1} parent=1 // pred_region
      _
    $region17: #{tpu_custom_call.1} parent=1 // pred_fallthru
      _
    // Predicated region
    $region18: #{tpu_custom_call.1} parent=1 // pred_check
      _
    $region19: #{tpu_custom_call.1} parent=1 // pred_check_branch
      %54 = sbr.rel (0) target = $region21
    $region20: #{tpu_custom_call.1} parent=1 // pred_region
      %55 = dma.done [#allocation3], 16384
    $region21: #{tpu_custom_call.1} parent=1 // pred_fallthru
      _
    // Predicated region
    $region22: #{tpu_custom_call.1} parent=1 // pred_check
      _
    $region23: #{tpu_custom_call.1} parent=1 // pred_check_branch
      %57 = sbr.rel (0) target = $region25
    $region24: #{tpu_custom_call.1} parent=1 // pred_region
      %58 = dma.done [#allocation6], 16384
    $region25: #{tpu_custom_call.1} parent=1 // pred_fallthru
      _
    // Predicated region
    $region26: #{tpu_custom_call.1} parent=1 // pred_check
      _
    $region27: #{tpu_custom_call.1} parent=1 // pred_check_branch
      %60 = sbr.rel (0) target = $region29
    $region28: #{tpu_custom_call.1} parent=1 // pred_region
      %61 = dma.done [#allocation6], 4096
    $region29: #{tpu_custom_call.1} parent=1 // pred_fallthru
      _
    %v63 = vld [vmem:[%s3] sm:$0x3]
    loop: start=0, step=1, limit=8
    $region30: #{tpu_custom_call.1} parent=1 // loop_pre_header
      _
    $region31: #{tpu_custom_call.1} parent=1 // loop_header
      %s65 = sphi 0, %s69
      %p66 = scmp.ge.s32.totalorder %s65, 8
    $region32: #{tpu_custom_call.1} parent=1 // loop_header_branch
      %68 = sbr.rel (%p66) target = $region36
    $region33: #{tpu_custom_call.1} parent=1 // loop_body
      %s70 = smul.u32 %s65, 32
      %s71 = smul.addr %s70, 4
      %s72 = scalar_lea.vmem [#allocation2], %s71
      %v73 = vld [vmem:[%s72] sm:$0xf]
      %v74 = vld [vmem:[%s72 + $0x4] sm:$0xf]
      %v75 = vld [vmem:[%s72 + $0x8] sm:$0xf]
      %v76 = vld [vmem:[%s72 + $0xc] sm:$0xf]
      %v77 = vld [vmem:[%s72 + $0x10] sm:$0xf]
      %v78 = vld [vmem:[%s72 + $0x14] sm:$0xf]
      %v79 = vld [vmem:[%s72 + $0x18] sm:$0xf]
      %v80 = vld [vmem:[%s72 + $0x1c] sm:$0xf]
      %v81 = vld [vmem:[%s72 + $0x20] sm:$0xf]
      %v82 = vld [vmem:[%s72 + $0x24] sm:$0xf]
      %v83 = vld [vmem:[%s72 + $0x28] sm:$0xf]
      %v84 = vld [vmem:[%s72 + $0x2c] sm:$0xf]
      %v85 = vld [vmem:[%s72 + $0x30] sm:$0xf]
      %v86 = vld [vmem:[%s72 + $0x34] sm:$0xf]
      %v87 = vld [vmem:[%s72 + $0x38] sm:$0xf]
      %v88 = vld [vmem:[%s72 + $0x3c] sm:$0xf]
      %v89 = vld [vmem:[%s72 + $0x40] sm:$0xf]
      %v90 = vld [vmem:[%s72 + $0x44] sm:$0xf]
      %v91 = vld [vmem:[%s72 + $0x48] sm:$0xf]
      %v92 = vld [vmem:[%s72 + $0x4c] sm:$0xf]
      %v93 = vld [vmem:[%s72 + $0x50] sm:$0xf]
      %v94 = vld [vmem:[%s72 + $0x54] sm:$0xf]
      %v95 = vld [vmem:[%s72 + $0x58] sm:$0xf]
      %v96 = vld [vmem:[%s72 + $0x5c] sm:$0xf]
      %v97 = vld [vmem:[%s72 + $0x60] sm:$0xf]
      %v98 = vld [vmem:[%s72 + $0x64] sm:$0xf]
      %v99 = vld [vmem:[%s72 + $0x68] sm:$0xf]
      %v100 = vld [vmem:[%s72 + $0x6c] sm:$0xf]
      %v101 = vld [vmem:[%s72 + $0x70] sm:$0xf]
      %v102 = vld [vmem:[%s72 + $0x74] sm:$0xf]
      %v103 = vld [vmem:[%s72 + $0x78] sm:$0xf]
      %v104 = vld [vmem:[%s72 + $0x7c] sm:$0xf]
      %v105 = vld [vmem:[#allocation7] sm:$0xff]
      %v106 = vld [vmem:[#allocation7 + $0x8] sm:$0xff]
      %v107 = vld [vmem:[#allocation7 + $0x10] sm:$0xff]
      %v108 = vld [vmem:[#allocation7 + $0x18] sm:$0xff]
      %v109 = vld [vmem:[#allocation7 + $0x20] sm:$0xff]
      %v110 = vld [vmem:[#allocation7 + $0x28] sm:$0xff]
      %v111 = vld [vmem:[#allocation7 + $0x30] sm:$0xff]
      %v112 = vld [vmem:[#allocation7 + $0x38] sm:$0xff]
      %v113 = vld [vmem:[#allocation7 + $0x40] sm:$0xff]
      %v114 = vld [vmem:[#allocation7 + $0x48] sm:$0xff]
      %v115 = vld [vmem:[#allocation7 + $0x50] sm:$0xff]
      %v116 = vld [vmem:[#allocation7 + $0x58] sm:$0xff]
      %v117 = vld [vmem:[#allocation7 + $0x60] sm:$0xff]
      %v118 = vld [vmem:[#allocation7 + $0x68] sm:$0xff]
      %v119 = vld [vmem:[#allocation7 + $0x70] sm:$0xff]
      %v120 = vld [vmem:[#allocation7 + $0x78] sm:$0xff]
      %v121 = vld [vmem:[#allocation7 + $0x80] sm:$0xff]
      %v122 = vld [vmem:[#allocation7 + $0x88] sm:$0xff]
      %v123 = vld [vmem:[#allocation7 + $0x90] sm:$0xff]
      %v124 = vld [vmem:[#allocation7 + $0x98] sm:$0xff]
      %v125 = vld [vmem:[#allocation7 + $0xa0] sm:$0xff]
      %v126 = vld [vmem:[#allocation7 + $0xa8] sm:$0xff]
      %v127 = vld [vmem:[#allocation7 + $0xb0] sm:$0xff]
      %v128 = vld [vmem:[#allocation7 + $0xb8] sm:$0xff]
      %v129 = vld [vmem:[#allocation7 + $0xc0] sm:$0xff]
      %v130 = vld [vmem:[#allocation7 + $0xc8] sm:$0xff]
      %v131 = vld [vmem:[#allocation7 + $0xd0] sm:$0xff]
      %v132 = vld [vmem:[#allocation7 + $0xd8] sm:$0xff]
      %v133 = vld [vmem:[#allocation7 + $0xe0] sm:$0xff]
      %v134 = vld [vmem:[#allocation7 + $0xe8] sm:$0xff]
      %v135 = vld [vmem:[#allocation7 + $0xf0] sm:$0xff]
      %v136 = vld [vmem:[#allocation7 + $0xf8] sm:$0xff]
      %v169 = vunpack.c.l.b16 %v105
      %v170 = vunpack.c.h.b16 %v105
      %v171 = vunpack.c.l.b16 %v106
      %v172 = vunpack.c.h.b16 %v106
      %v173 = vunpack.c.l.b16 %v107
      %v174 = vunpack.c.h.b16 %v107
      %v175 = vunpack.c.l.b16 %v108
      %v176 = vunpack.c.h.b16 %v108
      %v177 = vunpack.c.l.b16 %v109
      %v178 = vunpack.c.h.b16 %v109
      %v179 = vunpack.c.l.b16 %v110
      %v180 = vunpack.c.h.b16 %v110
      %v181 = vunpack.c.l.b16 %v111
      %v182 = vunpack.c.h.b16 %v111
      %v183 = vunpack.c.l.b16 %v112
      %v184 = vunpack.c.h.b16 %v112
      %v185 = vunpack.c.l.b16 %v113
      %v186 = vunpack.c.h.b16 %v113
      %v187 = vunpack.c.l.b16 %v114
      %v188 = vunpack.c.h.b16 %v114
      %v189 = vunpack.c.l.b16 %v115
      %v190 = vunpack.c.h.b16 %v115
      %v191 = vunpack.c.l.b16 %v116
      %v192 = vunpack.c.h.b16 %v116
      %v193 = vunpack.c.l.b16 %v117
      %v194 = vunpack.c.h.b16 %v117
      %v195 = vunpack.c.l.b16 %v118
      %v196 = vunpack.c.h.b16 %v118
      %v197 = vunpack.c.l.b16 %v119
      %v198 = vunpack.c.h.b16 %v119
      %v199 = vunpack.c.l.b16 %v120
      %v200 = vunpack.c.h.b16 %v120
      %v201 = vunpack.c.l.b16 %v121
      %v202 = vunpack.c.h.b16 %v121
      %v203 = vunpack.c.l.b16 %v122
      %v204 = vunpack.c.h.b16 %v122
      %v205 = vunpack.c.l.b16 %v123
      %v206 = vunpack.c.h.b16 %v123
      %v207 = vunpack.c.l.b16 %v124
      %v208 = vunpack.c.h.b16 %v124
      %v209 = vunpack.c.l.b16 %v125
      %v210 = vunpack.c.h.b16 %v125
      %v211 = vunpack.c.l.b16 %v126
      %v212 = vunpack.c.h.b16 %v126
      %v213 = vunpack.c.l.b16 %v127
      %v214 = vunpack.c.h.b16 %v127
      %v215 = vunpack.c.l.b16 %v128
      %v216 = vunpack.c.h.b16 %v128
      %v217 = vunpack.c.l.b16 %v129
      %v218 = vunpack.c.h.b16 %v129
      %v219 = vunpack.c.l.b16 %v130
      %v220 = vunpack.c.h.b16 %v130
      %v221 = vunpack.c.l.b16 %v131
      %v222 = vunpack.c.h.b16 %v131
      %v223 = vunpack.c.l.b16 %v132
      %v224 = vunpack.c.h.b16 %v132
      %v225 = vunpack.c.l.b16 %v133
      %v226 = vunpack.c.h.b16 %v133
      %v227 = vunpack.c.l.b16 %v134
      %v228 = vunpack.c.h.b16 %v134
      %v229 = vunpack.c.l.b16 %v135
      %v230 = vunpack.c.h.b16 %v135
      %v231 = vunpack.c.l.b16 %v136
      %v232 = vunpack.c.h.b16 %v136
      %v233 = vpack.c.b16 %v171, %v169
      %v234 = vpack.c.b16 %v172, %v170
      %v235 = vpack.c.b16 %v175, %v173
      %v236 = vpack.c.b16 %v176, %v174
      %v237 = vpack.c.b16 %v179, %v177
      %v238 = vpack.c.b16 %v180, %v178
      %v239 = vpack.c.b16 %v183, %v181
      %v240 = vpack.c.b16 %v184, %v182
      %v241 = vpack.c.b16 %v187, %v185
      %v242 = vpack.c.b16 %v188, %v186
      %v243 = vpack.c.b16 %v191, %v189
      %v244 = vpack.c.b16 %v192, %v190
      %v245 = vpack.c.b16 %v195, %v193
      %v246 = vpack.c.b16 %v196, %v194
      %v247 = vpack.c.b16 %v199, %v197
      %v248 = vpack.c.b16 %v200, %v198
      %v249 = vpack.c.b16 %v203, %v201
      %v250 = vpack.c.b16 %v204, %v202
      %v251 = vpack.c.b16 %v207, %v205
      %v252 = vpack.c.b16 %v208, %v206
      %v253 = vpack.c.b16 %v211, %v209
      %v254 = vpack.c.b16 %v212, %v210
      %v255 = vpack.c.b16 %v215, %v213
      %v256 = vpack.c.b16 %v216, %v214
      %v257 = vpack.c.b16 %v219, %v217
      %v258 = vpack.c.b16 %v220, %v218
      %v259 = vpack.c.b16 %v223, %v221
      %v260 = vpack.c.b16 %v224, %v222
      %v261 = vpack.c.b16 %v227, %v225
      %v262 = vpack.c.b16 %v228, %v226
      %v263 = vpack.c.b16 %v231, %v229
      %v264 = vpack.c.b16 %v232, %v230
      %v329 = vunpack.c.l.b16 %v73
      %v330 = vunpack.c.l.b16 %v74
      %v331 = vunpack.c.l.b16 %v75
      %v332 = vunpack.c.l.b16 %v76
      %v333 = vunpack.c.l.b16 %v77
      %v334 = vunpack.c.l.b16 %v78
      %v335 = vunpack.c.l.b16 %v79
      %v336 = vunpack.c.l.b16 %v80
      %v337 = vunpack.c.l.b16 %v81
      %v338 = vunpack.c.l.b16 %v82
      %v339 = vunpack.c.l.b16 %v83
      %v340 = vunpack.c.l.b16 %v84
      %v341 = vunpack.c.l.b16 %v85
      %v342 = vunpack.c.l.b16 %v86
      %v343 = vunpack.c.l.b16 %v87
      %v344 = vunpack.c.l.b16 %v88
      %v345 = vunpack.c.l.b16 %v89
      %v346 = vunpack.c.l.b16 %v90
      %v347 = vunpack.c.l.b16 %v91
      %v348 = vunpack.c.l.b16 %v92
      %v349 = vunpack.c.l.b16 %v93
      %v350 = vunpack.c.l.b16 %v94
      %v351 = vunpack.c.l.b16 %v95
      %v352 = vunpack.c.l.b16 %v96
      %v353 = vunpack.c.l.b16 %v97
      %v354 = vunpack.c.l.b16 %v98
      %v355 = vunpack.c.l.b16 %v99
      %v356 = vunpack.c.l.b16 %v100
      %v357 = vunpack.c.l.b16 %v101
      %v358 = vunpack.c.l.b16 %v102
      %v359 = vunpack.c.l.b16 %v103
      %v360 = vunpack.c.l.b16 %v104
      %v361 = vpack.c.b16 %v330, %v329
      %v362 = vpack.c.b16 %v332, %v331
      %v363 = vpack.c.b16 %v334, %v333
      %v364 = vpack.c.b16 %v336, %v335
      %v365 = vpack.c.b16 %v338, %v337
      %v366 = vpack.c.b16 %v340, %v339
      %v367 = vpack.c.b16 %v342, %v341
      %v368 = vpack.c.b16 %v344, %v343
      %v369 = vpack.c.b16 %v346, %v345
      %v370 = vpack.c.b16 %v348, %v347
      %v371 = vpack.c.b16 %v350, %v349
      %v372 = vpack.c.b16 %v352, %v351
      %v373 = vpack.c.b16 %v354, %v353
      %v374 = vpack.c.b16 %v356, %v355
      %v375 = vpack.c.b16 %v358, %v357
      %v376 = vpack.c.b16 %v360, %v359
      %393 = vmatprep.subr.bf16.mxu0 0
      %394 = vmatpush1.bf16.msra.mxu0 %v368
      %395 = vmatprep.subr.bf16.mxu0 0
      %396 = vmatpush1.bf16.msra.mxu0 %v367
      %397 = vmatprep.subr.bf16.mxu0 0
      %398 = vmatpush1.bf16.msra.mxu0 %v366
      %399 = vmatprep.subr.bf16.mxu0 0
      %400 = vmatpush1.bf16.msra.mxu0 %v365
      %401 = vmatprep.subr.bf16.mxu0 0
      %402 = vmatpush1.bf16.msra.mxu0 %v364
      %403 = vmatprep.subr.bf16.mxu0 0
      %404 = vmatpush1.bf16.msra.mxu0 %v363
      %405 = vmatprep.subr.bf16.mxu0 0
      %406 = vmatpush1.bf16.msra.mxu0 %v362
      %407 = vmatprep.subr.bf16.mxu0 0
      %408 = vmatpush1.bf16.msra.mxu0 %v361
      %409 = vmatprep.subr.bf16.mxu0 0
      %410 = vmatpush2.bf16.msra.mxu0 %v376
      %411 = vmatprep.subr.bf16.mxu0 0
      %412 = vmatpush2.bf16.msra.mxu0 %v375
      %413 = vmatprep.subr.bf16.mxu0 0
      %414 = vmatpush2.bf16.msra.mxu0 %v374
      %415 = vmatprep.subr.bf16.mxu0 0
      %416 = vmatpush2.bf16.msra.mxu0 %v373
      %417 = vmatprep.subr.bf16.mxu0 0
      %418 = vmatpush2.bf16.msra.mxu0 %v372
      %419 = vmatprep.subr.bf16.mxu0 0
      %420 = vmatpush2.bf16.msra.mxu0 %v371
      %421 = vmatprep.subr.bf16.mxu0 0
      %422 = vmatpush2.bf16.msra.mxu0 %v370
      %423 = vmatprep.subr.bf16.mxu0 0
      %424 = vmatpush2.bf16.msra.mxu0 %v369
      %425 = vmatprep.mubr.bf16.mxu0 %v234
      %426 = vmatmul.mubr.bf16.gmra.mxu0 %v233
      %v427 = vpop.f32.mrf.mxu0
      %v428 = vadd.f32 0.0, %v427
      %v429 = vpop.f32.mrf.mxu0
      %v430 = vpop.f32.mrf.mxu0
      %v431 = vadd.f32 0.0, %v430
      %v432 = vpop.f32.mrf.mxu0
      %433 = vmatprep.mubr.bf16.mxu0 %v236
      %434 = vmatmul.mubr.bf16.gmra.mxu0 %v235
      %v435 = vpop.f32.mrf.mxu0
      %v436 = vadd.f32 0.0, %v435
      %v437 = vpop.f32.mrf.mxu0
      %v438 = vpop.f32.mrf.mxu0
      %v439 = vadd.f32 0.0, %v438
      %v440 = vpop.f32.mrf.mxu0
      %441 = vmatprep.mubr.bf16.mxu0 %v238
      %442 = vmatmul.mubr.bf16.gmra.mxu0 %v237
      %v443 = vpop.f32.mrf.mxu0
      %v444 = vadd.f32 0.0, %v443
      %v445 = vpop.f32.mrf.mxu0
      %v446 = vpop.f32.mrf.mxu0
      %v447 = vadd.f32 0.0, %v446
      %v448 = vpop.f32.mrf.mxu0
      %449 = vmatprep.mubr.bf16.mxu0 %v240
      %450 = vmatmul.mubr.bf16.gmra.mxu0 %v239
      %v451 = vpop.f32.mrf.mxu0
      %v452 = vadd.f32 0.0, %v451
      %v453 = vpop.f32.mrf.mxu0
      %v454 = vpop.f32.mrf.mxu0
      %v455 = vadd.f32 0.0, %v454
      %v456 = vpop.f32.mrf.mxu0
      %457 = vmatprep.mubr.bf16.mxu0 %v242
      %458 = vmatmul.mubr.bf16.gmra.mxu0 %v241
      %v459 = vpop.f32.mrf.mxu0
      %v460 = vadd.f32 0.0, %v459
      %v461 = vpop.f32.mrf.mxu0
      %v462 = vpop.f32.mrf.mxu0
      %v463 = vadd.f32 0.0, %v462
      %v464 = vpop.f32.mrf.mxu0
      %465 = vmatprep.mubr.bf16.mxu0 %v244
      %466 = vmatmul.mubr.bf16.gmra.mxu0 %v243
      %v467 = vpop.f32.mrf.mxu0
      %v468 = vadd.f32 0.0, %v467
      %v469 = vpop.f32.mrf.mxu0
      %v470 = vpop.f32.mrf.mxu0
      %v471 = vadd.f32 0.0, %v470
      %v472 = vpop.f32.mrf.mxu0
      %473 = vmatprep.mubr.bf16.mxu0 %v246
      %474 = vmatmul.mubr.bf16.gmra.mxu0 %v245
      %v475 = vpop.f32.mrf.mxu0
      %v476 = vadd.f32 0.0, %v475
      %v477 = vpop.f32.mrf.mxu0
      %v478 = vpop.f32.mrf.mxu0
      %v479 = vadd.f32 0.0, %v478
      %v480 = vpop.f32.mrf.mxu0
      %481 = vmatprep.mubr.bf16.mxu0 %v248
      %482 = vmatmul.mubr.bf16.gmra.mxu0 %v247
      %v483 = vpop.f32.mrf.mxu0
      %v484 = vadd.f32 0.0, %v483
      %v485 = vpop.f32.mrf.mxu0
      %v486 = vpop.f32.mrf.mxu0
      %v487 = vadd.f32 0.0, %v486
      %v488 = vpop.f32.mrf.mxu0
      %489 = vmatprep.mubr.bf16.mxu0 %v250
      %490 = vmatmul.mubr.bf16.gmra.mxu0 %v249
      %v491 = vpop.f32.mrf.mxu0
      %v492 = vadd.f32 0.0, %v491
      %v493 = vpop.f32.mrf.mxu0
      %v494 = vpop.f32.mrf.mxu0
      %v495 = vadd.f32 0.0, %v494
      %v496 = vpop.f32.mrf.mxu0
      %497 = vmatprep.mubr.bf16.mxu0 %v252
      %498 = vmatmul.mubr.bf16.gmra.mxu0 %v251
      %v499 = vpop.f32.mrf.mxu0
      %v500 = vadd.f32 0.0, %v499
      %v501 = vpop.f32.mrf.mxu0
      %v502 = vpop.f32.mrf.mxu0
      %v503 = vadd.f32 0.0, %v502
      %v504 = vpop.f32.mrf.mxu0
      %505 = vmatprep.mubr.bf16.mxu0 %v254
      %506 = vmatmul.mubr.bf16.gmra.mxu0 %v253
      %v507 = vpop.f32.mrf.mxu0
      %v508 = vadd.f32 0.0, %v507
      %v509 = vpop.f32.mrf.mxu0
      %v510 = vpop.f32.mrf.mxu0
      %v511 = vadd.f32 0.0, %v510
      %v512 = vpop.f32.mrf.mxu0
      %513 = vmatprep.mubr.bf16.mxu0 %v256
      %514 = vmatmul.mubr.bf16.gmra.mxu0 %v255
      %v515 = vpop.f32.mrf.mxu0
      %v516 = vadd.f32 0.0, %v515
      %v517 = vpop.f32.mrf.mxu0
      %v518 = vpop.f32.mrf.mxu0
      %v519 = vadd.f32 0.0, %v518
      %v520 = vpop.f32.mrf.mxu0
      %521 = vmatprep.mubr.bf16.mxu0 %v258
      %522 = vmatmul.mubr.bf16.gmra.mxu0 %v257
      %v523 = vpop.f32.mrf.mxu0
      %v524 = vadd.f32 0.0, %v523
      %v525 = vpop.f32.mrf.mxu0
      %v526 = vpop.f32.mrf.mxu0
      %v527 = vadd.f32 0.0, %v526
      %v528 = vpop.f32.mrf.mxu0
      %529 = vmatprep.mubr.bf16.mxu0 %v260
      %530 = vmatmul.mubr.bf16.gmra.mxu0 %v259
      %v531 = vpop.f32.mrf.mxu0
      %v532 = vadd.f32 0.0, %v531
      %v533 = vpop.f32.mrf.mxu0
      %v534 = vpop.f32.mrf.mxu0
      %v535 = vadd.f32 0.0, %v534
      %v536 = vpop.f32.mrf.mxu0
      %537 = vmatprep.mubr.bf16.mxu0 %v262
      %538 = vmatmul.mubr.bf16.gmra.mxu0 %v261
      %v539 = vpop.f32.mrf.mxu0
      %v540 = vadd.f32 0.0, %v539
      %v541 = vpop.f32.mrf.mxu0
      %v542 = vpop.f32.mrf.mxu0
      %v543 = vadd.f32 0.0, %v542
      %v544 = vpop.f32.mrf.mxu0
      %545 = vmatprep.mubr.bf16.mxu0 %v264
      %546 = vmatmul.mubr.bf16.gmra.mxu0 %v263
      %v547 = vpop.f32.mrf.mxu0
      %v548 = vadd.f32 0.0, %v547
      %v549 = vpop.f32.mrf.mxu0
      %v550 = vpop.f32.mrf.mxu0
      %v551 = vadd.f32 0.0, %v550
      %v552 = vpop.f32.mrf.mxu0
      %553 = vdwg.mxu0
      %v554 = vtanh.pop %v428
      %v555 = vtanh.pop %v431
      %v556 = vtanh.pop %v436
      %v557 = vtanh.pop %v439
      %v558 = vtanh.pop %v444
      %v559 = vtanh.pop %v447
      %v560 = vtanh.pop %v452
      %v561 = vtanh.pop %v455
      %v562 = vtanh.pop %v460
      %v563 = vtanh.pop %v463
      %v564 = vtanh.pop %v468
      %v565 = vtanh.pop %v471
      %v566 = vtanh.pop %v476
      %v567 = vtanh.pop %v479
      %v568 = vtanh.pop %v484
      %v569 = vtanh.pop %v487
      %v570 = vtanh.pop %v492
      %v571 = vtanh.pop %v495
      %v572 = vtanh.pop %v500
      %v573 = vtanh.pop %v503
      %v574 = vtanh.pop %v508
      %v575 = vtanh.pop %v511
      %v576 = vtanh.pop %v516
      %v577 = vtanh.pop %v519
      %v578 = vtanh.pop %v524
      %v579 = vtanh.pop %v527
      %v580 = vtanh.pop %v532
      %v581 = vtanh.pop %v535
      %v582 = vtanh.pop %v540
      %v583 = vtanh.pop %v543
      %v584 = vtanh.pop %v548
      %v585 = vtanh.pop %v551
      %v587 = vlaneseq
      %v588 = vshrl.u32 %v587, 7
      %v589 = vsub.s32 0, %v588
      %v590 = vrot.slane %v63, %v589
      %v591 = vlaneseq
      %v592 = vshrl.u32 %v591, 7
      %v593 = vsub.s32 1, %v592
      %v594 = vrot.slane %v63, %v593
      %597 = vmatprep.subr.mxu0 0.0
      %598 = vmatpush1.msra.mxu0 %v569
      %599 = vmatprep.subr.mxu0 0.0
      %600 = vmatpush1.msra.mxu0 %v568
      %601 = vmatprep.subr.mxu0 0.0
      %602 = vmatpush1.msra.mxu0 %v567
      %603 = vmatprep.subr.mxu0 0.0
      %604 = vmatpush1.msra.mxu0 %v566
      %605 = vmatprep.subr.mxu0 0.0
      %606 = vmatpush1.msra.mxu0 %v565
      %607 = vmatprep.subr.mxu0 0.0
      %608 = vmatpush1.msra.mxu0 %v564
      %609 = vmatprep.subr.mxu0 0.0
      %610 = vmatpush1.msra.mxu0 %v563
      %611 = vmatprep.subr.mxu0 0.0
      %612 = vmatpush1.msra.mxu0 %v562
      %613 = vmatprep.subr.mxu0 0.0
      %614 = vmatpush1.msra.mxu0 %v561
      %615 = vmatprep.subr.mxu0 0.0
      %616 = vmatpush1.msra.mxu0 %v560
      %617 = vmatprep.subr.mxu0 0.0
      %618 = vmatpush1.msra.mxu0 %v559
      %619 = vmatprep.subr.mxu0 0.0
      %620 = vmatpush1.msra.mxu0 %v558
      %621 = vmatprep.subr.mxu0 0.0
      %622 = vmatpush1.msra.mxu0 %v557
      %623 = vmatprep.subr.mxu0 0.0
      %624 = vmatpush1.msra.mxu0 %v556
      %625 = vmatprep.subr.mxu0 0.0
      %626 = vmatpush1.msra.mxu0 %v555
      %627 = vmatprep.subr.mxu0 0.0
      %628 = vmatpush1.msra.mxu0 %v554
      %629 = vmatprep.subr.mxu0 0.0
      %630 = vmatpush2.msra.mxu0 %v585
      %631 = vmatprep.subr.mxu0 0.0
      %632 = vmatpush2.msra.mxu0 %v584
      %633 = vmatprep.subr.mxu0 0.0
      %634 = vmatpush2.msra.mxu0 %v583
      %635 = vmatprep.subr.mxu0 0.0
      %636 = vmatpush2.msra.mxu0 %v582
      %637 = vmatprep.subr.mxu0 0.0
      %638 = vmatpush2.msra.mxu0 %v581
      %639 = vmatprep.subr.mxu0 0.0
      %640 = vmatpush2.msra.mxu0 %v580
      %641 = vmatprep.subr.mxu0 0.0
      %642 = vmatpush2.msra.mxu0 %v579
      %643 = vmatprep.subr.mxu0 0.0
      %644 = vmatpush2.msra.mxu0 %v578
      %645 = vmatprep.subr.mxu0 0.0
      %646 = vmatpush2.msra.mxu0 %v577
      %647 = vmatprep.subr.mxu0 0.0
      %648 = vmatpush2.msra.mxu0 %v576
      %649 = vmatprep.subr.mxu0 0.0
      %650 = vmatpush2.msra.mxu0 %v575
      %651 = vmatprep.subr.mxu0 0.0
      %652 = vmatpush2.msra.mxu0 %v574
      %653 = vmatprep.subr.mxu0 0.0
      %654 = vmatpush2.msra.mxu0 %v573
      %655 = vmatprep.subr.mxu0 0.0
      %656 = vmatpush2.msra.mxu0 %v572
      %657 = vmatprep.subr.mxu0 0.0
      %658 = vmatpush2.msra.mxu0 %v571
      %659 = vmatprep.subr.mxu0 0.0
      %660 = vmatpush2.msra.mxu0 %v570
      %661 = vmatprep.mubr.f32.mxu0 %v594
      %662 = vmatmul.mubr.f32.gmra.mxu0 %v590
      %v663 = vpop.f32.mrf.mxu0
      %v664 = vadd.f32 0.0, %v663
      %v665 = vpop.f32.mrf.mxu0
      %666 = vdwg.mxu0
      %v667 = vmul.f32 %v664, 0.0625
      %vm668 = vcmask 1040384
      %v669 = vsel %vm668, %v667, -inf
      %670 = vmax.xlane.f32.xlu0 %v669
      %v671 = vpop.xlane.xlu0 %670
      %v672 = vsub.f32 %v667, %v671
      %v673 = vmul.f32 %v672, 1.442695
      %v674 = vpow.pop %v673
      %v675 = vsel %vm668, %v674, 0.0
      %676 = vadd.xlane.f32.xlu0 %v675
      %v677 = vpop.xlane.xlu0 %676
      %v678 = vrcp.pop %v677
      %v679 = vmul.f32 %v674, %v678
      %v680 = vunpack.c.l.bf16 %v73
      %v681 = vunpack.c.l.bf16 %v74
      %v682 = vunpack.c.l.bf16 %v75
      %v683 = vunpack.c.l.bf16 %v76
      %v684 = vunpack.c.l.bf16 %v77
      %v685 = vunpack.c.l.bf16 %v78
      %v686 = vunpack.c.l.bf16 %v79
      %v687 = vunpack.c.l.bf16 %v80
      %v688 = vunpack.c.l.bf16 %v81
      %v689 = vunpack.c.l.bf16 %v82
      %v690 = vunpack.c.l.bf16 %v83
      %v691 = vunpack.c.l.bf16 %v84
      %v692 = vunpack.c.l.bf16 %v85
      %v693 = vunpack.c.l.bf16 %v86
      %v694 = vunpack.c.l.bf16 %v87
      %v695 = vunpack.c.l.bf16 %v88
      %v696 = vunpack.c.l.bf16 %v89
      %v697 = vunpack.c.l.bf16 %v90
      %v698 = vunpack.c.l.bf16 %v91
      %v699 = vunpack.c.l.bf16 %v92
      %v700 = vunpack.c.l.bf16 %v93
      %v701 = vunpack.c.l.bf16 %v94
      %v702 = vunpack.c.l.bf16 %v95
      %v703 = vunpack.c.l.bf16 %v96
      %v704 = vunpack.c.l.bf16 %v97
      %v705 = vunpack.c.l.bf16 %v98
      %v706 = vunpack.c.l.bf16 %v99
      %v707 = vunpack.c.l.bf16 %v100
      %v708 = vunpack.c.l.bf16 %v101
      %v709 = vunpack.c.l.bf16 %v102
      %v710 = vunpack.c.l.bf16 %v103
      %v711 = vunpack.c.l.bf16 %v104
      %v712 = vlaneseq
      %v713 = vshrl.u32 %v712, 7
      %v714 = vsub.s32 0, %v713
      %v715 = vrot.slane %v679, %v714
      %v716 = vmul.f32 %v680, %v715
      %v717 = vmul.f32 %v681, %v715
      %v718 = vmul.f32 %v682, %v715
      %v719 = vmul.f32 %v683, %v715
      %v720 = vmul.f32 %v684, %v715
      %v721 = vmul.f32 %v685, %v715
      %v722 = vmul.f32 %v686, %v715
      %v723 = vmul.f32 %v687, %v715
      %v724 = vmul.f32 %v688, %v715
      %v725 = vmul.f32 %v689, %v715
      %v726 = vmul.f32 %v690, %v715
      %v727 = vmul.f32 %v691, %v715
      %v728 = vmul.f32 %v692, %v715
      %v729 = vmul.f32 %v693, %v715
      %v730 = vmul.f32 %v694, %v715
      %v731 = vmul.f32 %v695, %v715
      %v732 = vmul.f32 %v696, %v715
      %v733 = vmul.f32 %v697, %v715
      %v734 = vmul.f32 %v698, %v715
      %v735 = vmul.f32 %v699, %v715
      %v736 = vmul.f32 %v700, %v715
      %v737 = vmul.f32 %v701, %v715
      %v738 = vmul.f32 %v702, %v715
      %v739 = vmul.f32 %v703, %v715
      %v740 = vmul.f32 %v704, %v715
      %v741 = vmul.f32 %v705, %v715
      %v742 = vmul.f32 %v706, %v715
      %v743 = vmul.f32 %v707, %v715
      %v744 = vmul.f32 %v708, %v715
      %v745 = vmul.f32 %v709, %v715
      %v746 = vmul.f32 %v710, %v715
      %v747 = vmul.f32 %v711, %v715
      %748 = vadd.xlane.f32.xlu0 %v716
      %v749 = vpop.xlane.xlu0 %748
      %750 = vadd.xlane.f32.xlu0 %v717
      %v751 = vpop.xlane.xlu0 %750
      %752 = vadd.xlane.f32.xlu0 %v718
      %v753 = vpop.xlane.xlu0 %752
      %754 = vadd.xlane.f32.xlu0 %v719
      %v755 = vpop.xlane.xlu0 %754
      %756 = vadd.xlane.f32.xlu0 %v720
      %v757 = vpop.xlane.xlu0 %756
      %758 = vadd.xlane.f32.xlu0 %v721
      %v759 = vpop.xlane.xlu0 %758
      %760 = vadd.xlane.f32.xlu0 %v722
      %v761 = vpop.xlane.xlu0 %760
      %762 = vadd.xlane.f32.xlu0 %v723
      %v763 = vpop.xlane.xlu0 %762
      %764 = vadd.xlane.f32.xlu0 %v724
      %v765 = vpop.xlane.xlu0 %764
      %766 = vadd.xlane.f32.xlu0 %v725
      %v767 = vpop.xlane.xlu0 %766
      %768 = vadd.xlane.f32.xlu0 %v726
      %v769 = vpop.xlane.xlu0 %768
      %770 = vadd.xlane.f32.xlu0 %v727
      %v771 = vpop.xlane.xlu0 %770
      %772 = vadd.xlane.f32.xlu0 %v728
      %v773 = vpop.xlane.xlu0 %772
      %774 = vadd.xlane.f32.xlu0 %v729
      %v775 = vpop.xlane.xlu0 %774
      %776 = vadd.xlane.f32.xlu0 %v730
      %v777 = vpop.xlane.xlu0 %776
      %778 = vadd.xlane.f32.xlu0 %v731
      %v779 = vpop.xlane.xlu0 %778
      %780 = vadd.xlane.f32.xlu0 %v732
      %v781 = vpop.xlane.xlu0 %780
      %782 = vadd.xlane.f32.xlu0 %v733
      %v783 = vpop.xlane.xlu0 %782
      %784 = vadd.xlane.f32.xlu0 %v734
      %v785 = vpop.xlane.xlu0 %784
      %786 = vadd.xlane.f32.xlu0 %v735
      %v787 = vpop.xlane.xlu0 %786
      %788 = vadd.xlane.f32.xlu0 %v736
      %v789 = vpop.xlane.xlu0 %788
      %790 = vadd.xlane.f32.xlu0 %v737
      %v791 = vpop.xlane.xlu0 %790
      %792 = vadd.xlane.f32.xlu0 %v738
      %v793 = vpop.xlane.xlu0 %792
      %794 = vadd.xlane.f32.xlu0 %v739
      %v795 = vpop.xlane.xlu0 %794
      %796 = vadd.xlane.f32.xlu0 %v740
      %v797 = vpop.xlane.xlu0 %796
      %798 = vadd.xlane.f32.xlu0 %v741
      %v799 = vpop.xlane.xlu0 %798
      %800 = vadd.xlane.f32.xlu0 %v742
      %v801 = vpop.xlane.xlu0 %800
      %802 = vadd.xlane.f32.xlu0 %v743
      %v803 = vpop.xlane.xlu0 %802
      %804 = vadd.xlane.f32.xlu0 %v744
      %v805 = vpop.xlane.xlu0 %804
      %806 = vadd.xlane.f32.xlu0 %v745
      %v807 = vpop.xlane.xlu0 %806
      %808 = vadd.xlane.f32.xlu0 %v746
      %v809 = vpop.xlane.xlu0 %808
      %810 = vadd.xlane.f32.xlu0 %v747
      %v811 = vpop.xlane.xlu0 %810
      %v844 = vlaneseq
      %v845 = vshrl.u32 %v844, 7
      %v846 = vsub.s32 0, %v845
      %v847 = vrot.slane %v749, %v846
      %v848 = vlaneseq
      %v849 = vshrl.u32 %v848, 7
      %v850 = vsub.s32 1, %v849
      %v851 = vrot.slane %v749, %v850
      %v852 = vlaneseq
      %v853 = vshrl.u32 %v852, 7
      %v854 = vsub.s32 2, %v853
      %v855 = vrot.slane %v749, %v854
      %v856 = vlaneseq
      %v857 = vshrl.u32 %v856, 7
      %v858 = vsub.s32 3, %v857
      %v859 = vrot.slane %v749, %v858
      %v860 = vlaneseq
      %v861 = vshrl.u32 %v860, 7
      %v862 = vsub.s32 4, %v861
      %v863 = vrot.slane %v749, %v862
      %v864 = vlaneseq
      %v865 = vshrl.u32 %v864, 7
      %v866 = vsub.s32 5, %v865
      %v867 = vrot.slane %v749, %v866
      %v868 = vlaneseq
      %v869 = vshrl.u32 %v868, 7
      %v870 = vsub.s32 6, %v869
      %v871 = vrot.slane %v749, %v870
      %v872 = vlaneseq
      %v873 = vshrl.u32 %v872, 7
      %v874 = vsub.s32 7, %v873
      %v875 = vrot.slane %v749, %v874
      %v876 = vlaneseq
      %v877 = vshrl.u32 %v876, 7
      %v878 = vsub.s32 0, %v877
      %v879 = vrot.slane %v751, %v878
      %v880 = vlaneseq
      %v881 = vshrl.u32 %v880, 7
      %v882 = vsub.s32 1, %v881
      %v883 = vrot.slane %v751, %v882
      %v884 = vlaneseq
      %v885 = vshrl.u32 %v884, 7
      %v886 = vsub.s32 2, %v885
      %v887 = vrot.slane %v751, %v886
      %v888 = vlaneseq
      %v889 = vshrl.u32 %v888, 7
      %v890 = vsub.s32 3, %v889
      %v891 = vrot.slane %v751, %v890
      %v892 = vlaneseq
      %v893 = vshrl.u32 %v892, 7
      %v894 = vsub.s32 4, %v893
      %v895 = vrot.slane %v751, %v894
      %v896 = vlaneseq
      %v897 = vshrl.u32 %v896, 7
      %v898 = vsub.s32 5, %v897
      %v899 = vrot.slane %v751, %v898
      %v900 = vlaneseq
      %v901 = vshrl.u32 %v900, 7
      %v902 = vsub.s32 6, %v901
      %v903 = vrot.slane %v751, %v902
      %v904 = vlaneseq
      %v905 = vshrl.u32 %v904, 7
      %v906 = vsub.s32 7, %v905
      %v907 = vrot.slane %v751, %v906
      %v908 = vlaneseq
      %v909 = vshrl.u32 %v908, 7
      %v910 = vsub.s32 0, %v909
      %v911 = vrot.slane %v753, %v910
      %v912 = vlaneseq
      %v913 = vshrl.u32 %v912, 7
      %v914 = vsub.s32 1, %v913
      %v915 = vrot.slane %v753, %v914
      %v916 = vlaneseq
      %v917 = vshrl.u32 %v916, 7
      %v918 = vsub.s32 2, %v917
      %v919 = vrot.slane %v753, %v918
      %v920 = vlaneseq
      %v921 = vshrl.u32 %v920, 7
      %v922 = vsub.s32 3, %v921
      %v923 = vrot.slane %v753, %v922
      %v924 = vlaneseq
      %v925 = vshrl.u32 %v924, 7
      %v926 = vsub.s32 4, %v925
      %v927 = vrot.slane %v753, %v926
      %v928 = vlaneseq
      %v929 = vshrl.u32 %v928, 7
      %v930 = vsub.s32 5, %v929
      %v931 = vrot.slane %v753, %v930
      %v932 = vlaneseq
      %v933 = vshrl.u32 %v932, 7
      %v934 = vsub.s32 6, %v933
      %v935 = vrot.slane %v753, %v934
      %v936 = vlaneseq
      %v937 = vshrl.u32 %v936, 7
      %v938 = vsub.s32 7, %v937
      %v939 = vrot.slane %v753, %v938
      %v940 = vlaneseq
      %v941 = vshrl.u32 %v940, 7
      %v942 = vsub.s32 0, %v941
      %v943 = vrot.slane %v755, %v942
      %v944 = vlaneseq
      %v945 = vshrl.u32 %v944, 7
      %v946 = vsub.s32 1, %v945
      %v947 = vrot.slane %v755, %v946
      %v948 = vlaneseq
      %v949 = vshrl.u32 %v948, 7
      %v950 = vsub.s32 2, %v949
      %v951 = vrot.slane %v755, %v950
      %v952 = vlaneseq
      %v953 = vshrl.u32 %v952, 7
      %v954 = vsub.s32 3, %v953
      %v955 = vrot.slane %v755, %v954
      %v956 = vlaneseq
      %v957 = vshrl.u32 %v956, 7
      %v958 = vsub.s32 4, %v957
      %v959 = vrot.slane %v755, %v958
      %v960 = vlaneseq
      %v961 = vshrl.u32 %v960, 7
      %v962 = vsub.s32 5, %v961
      %v963 = vrot.slane %v755, %v962
      %v964 = vlaneseq
      %v965 = vshrl.u32 %v964, 7
      %v966 = vsub.s32 6, %v965
      %v967 = vrot.slane %v755, %v966
      %v968 = vlaneseq
      %v969 = vshrl.u32 %v968, 7
      %v970 = vsub.s32 7, %v969
      %v971 = vrot.slane %v755, %v970
      %v972 = vlaneseq
      %v973 = vshrl.u32 %v972, 7
      %v974 = vsub.s32 0, %v973
      %v975 = vrot.slane %v757, %v974
      %v976 = vlaneseq
      %v977 = vshrl.u32 %v976, 7
      %v978 = vsub.s32 1, %v977
      %v979 = vrot.slane %v757, %v978
      %v980 = vlaneseq
      %v981 = vshrl.u32 %v980, 7
      %v982 = vsub.s32 2, %v981
      %v983 = vrot.slane %v757, %v982
      %v984 = vlaneseq
      %v985 = vshrl.u32 %v984, 7
      %v986 = vsub.s32 3, %v985
      %v987 = vrot.slane %v757, %v986
      %v988 = vlaneseq
      %v989 = vshrl.u32 %v988, 7
      %v990 = vsub.s32 4, %v989
      %v991 = vrot.slane %v757, %v990
      %v992 = vlaneseq
      %v993 = vshrl.u32 %v992, 7
      %v994 = vsub.s32 5, %v993
      %v995 = vrot.slane %v757, %v994
      %v996 = vlaneseq
      %v997 = vshrl.u32 %v996, 7
      %v998 = vsub.s32 6, %v997
      %v999 = vrot.slane %v757, %v998
      %v1000 = vlaneseq
      %v1001 = vshrl.u32 %v1000, 7
      %v1002 = vsub.s32 7, %v1001
      %v1003 = vrot.slane %v757, %v1002
      %v1004 = vlaneseq
      %v1005 = vshrl.u32 %v1004, 7
      %v1006 = vsub.s32 0, %v1005
      %v1007 = vrot.slane %v759, %v1006
      %v1008 = vlaneseq
      %v1009 = vshrl.u32 %v1008, 7
      %v1010 = vsub.s32 1, %v1009
      %v1011 = vrot.slane %v759, %v1010
      %v1012 = vlaneseq
      %v1013 = vshrl.u32 %v1012, 7
      %v1014 = vsub.s32 2, %v1013
      %v1015 = vrot.slane %v759, %v1014
      %v1016 = vlaneseq
      %v1017 = vshrl.u32 %v1016, 7
      %v1018 = vsub.s32 3, %v1017
      %v1019 = vrot.slane %v759, %v1018
      %v1020 = vlaneseq
      %v1021 = vshrl.u32 %v1020, 7
      %v1022 = vsub.s32 4, %v1021
      %v1023 = vrot.slane %v759, %v1022
      %v1024 = vlaneseq
      %v1025 = vshrl.u32 %v1024, 7
      %v1026 = vsub.s32 5, %v1025
      %v1027 = vrot.slane %v759, %v1026
      %v1028 = vlaneseq
      %v1029 = vshrl.u32 %v1028, 7
      %v1030 = vsub.s32 6, %v1029
      %v1031 = vrot.slane %v759, %v1030
      %v1032 = vlaneseq
      %v1033 = vshrl.u32 %v1032, 7
      %v1034 = vsub.s32 7, %v1033
      %v1035 = vrot.slane %v759, %v1034
      %v1036 = vlaneseq
      %v1037 = vshrl.u32 %v1036, 7
      %v1038 = vsub.s32 0, %v1037
      %v1039 = vrot.slane %v761, %v1038
      %v1040 = vlaneseq
      %v1041 = vshrl.u32 %v1040, 7
      %v1042 = vsub.s32 1, %v1041
      %v1043 = vrot.slane %v761, %v1042
      %v1044 = vlaneseq
      %v1045 = vshrl.u32 %v1044, 7
      %v1046 = vsub.s32 2, %v1045
      %v1047 = vrot.slane %v761, %v1046
      %v1048 = vlaneseq
      %v1049 = vshrl.u32 %v1048, 7
      %v1050 = vsub.s32 3, %v1049
      %v1051 = vrot.slane %v761, %v1050
      %v1052 = vlaneseq
      %v1053 = vshrl.u32 %v1052, 7
      %v1054 = vsub.s32 4, %v1053
      %v1055 = vrot.slane %v761, %v1054
      %v1056 = vlaneseq
      %v1057 = vshrl.u32 %v1056, 7
      %v1058 = vsub.s32 5, %v1057
      %v1059 = vrot.slane %v761, %v1058
      %v1060 = vlaneseq
      %v1061 = vshrl.u32 %v1060, 7
      %v1062 = vsub.s32 6, %v1061
      %v1063 = vrot.slane %v761, %v1062
      %v1064 = vlaneseq
      %v1065 = vshrl.u32 %v1064, 7
      %v1066 = vsub.s32 7, %v1065
      %v1067 = vrot.slane %v761, %v1066
      %v1068 = vlaneseq
      %v1069 = vshrl.u32 %v1068, 7
      %v1070 = vsub.s32 0, %v1069
      %v1071 = vrot.slane %v763, %v1070
      %v1072 = vlaneseq
      %v1073 = vshrl.u32 %v1072, 7
      %v1074 = vsub.s32 1, %v1073
      %v1075 = vrot.slane %v763, %v1074
      %v1076 = vlaneseq
      %v1077 = vshrl.u32 %v1076, 7
      %v1078 = vsub.s32 2, %v1077
      %v1079 = vrot.slane %v763, %v1078
      %v1080 = vlaneseq
      %v1081 = vshrl.u32 %v1080, 7
      %v1082 = vsub.s32 3, %v1081
      %v1083 = vrot.slane %v763, %v1082
      %v1084 = vlaneseq
      %v1085 = vshrl.u32 %v1084, 7
      %v1086 = vsub.s32 4, %v1085
      %v1087 = vrot.slane %v763, %v1086
      %v1088 = vlaneseq
      %v1089 = vshrl.u32 %v1088, 7
      %v1090 = vsub.s32 5, %v1089
      %v1091 = vrot.slane %v763, %v1090
      %v1092 = vlaneseq
      %v1093 = vshrl.u32 %v1092, 7
      %v1094 = vsub.s32 6, %v1093
      %v1095 = vrot.slane %v763, %v1094
      %v1096 = vlaneseq
      %v1097 = vshrl.u32 %v1096, 7
      %v1098 = vsub.s32 7, %v1097
      %v1099 = vrot.slane %v763, %v1098
      %v1100 = vlaneseq
      %v1101 = vshrl.u32 %v1100, 7
      %v1102 = vsub.s32 0, %v1101
      %v1103 = vrot.slane %v765, %v1102
      %v1104 = vlaneseq
      %v1105 = vshrl.u32 %v1104, 7
      %v1106 = vsub.s32 1, %v1105
      %v1107 = vrot.slane %v765, %v1106
      %v1108 = vlaneseq
      %v1109 = vshrl.u32 %v1108, 7
      %v1110 = vsub.s32 2, %v1109
      %v1111 = vrot.slane %v765, %v1110
      %v1112 = vlaneseq
      %v1113 = vshrl.u32 %v1112, 7
      %v1114 = vsub.s32 3, %v1113
      %v1115 = vrot.slane %v765, %v1114
      %v1116 = vlaneseq
      %v1117 = vshrl.u32 %v1116, 7
      %v1118 = vsub.s32 4, %v1117
      %v1119 = vrot.slane %v765, %v1118
      %v1120 = vlaneseq
      %v1121 = vshrl.u32 %v1120, 7
      %v1122 = vsub.s32 5, %v1121
      %v1123 = vrot.slane %v765, %v1122
      %v1124 = vlaneseq
      %v1125 = vshrl.u32 %v1124, 7
      %v1126 = vsub.s32 6, %v1125
      %v1127 = vrot.slane %v765, %v1126
      %v1128 = vlaneseq
      %v1129 = vshrl.u32 %v1128, 7
      %v1130 = vsub.s32 7, %v1129
      %v1131 = vrot.slane %v765, %v1130
      %v1132 = vlaneseq
      %v1133 = vshrl.u32 %v1132, 7
      %v1134 = vsub.s32 0, %v1133
      %v1135 = vrot.slane %v767, %v1134
      %v1136 = vlaneseq
      %v1137 = vshrl.u32 %v1136, 7
      %v1138 = vsub.s32 1, %v1137
      %v1139 = vrot.slane %v767, %v1138
      %v1140 = vlaneseq
      %v1141 = vshrl.u32 %v1140, 7
      %v1142 = vsub.s32 2, %v1141
      %v1143 = vrot.slane %v767, %v1142
      %v1144 = vlaneseq
      %v1145 = vshrl.u32 %v1144, 7
      %v1146 = vsub.s32 3, %v1145
      %v1147 = vrot.slane %v767, %v1146
      %v1148 = vlaneseq
      %v1149 = vshrl.u32 %v1148, 7
      %v1150 = vsub.s32 4, %v1149
      %v1151 = vrot.slane %v767, %v1150
      %v1152 = vlaneseq
      %v1153 = vshrl.u32 %v1152, 7
      %v1154 = vsub.s32 5, %v1153
      %v1155 = vrot.slane %v767, %v1154
      %v1156 = vlaneseq
      %v1157 = vshrl.u32 %v1156, 7
      %v1158 = vsub.s32 6, %v1157
      %v1159 = vrot.slane %v767, %v1158
      %v1160 = vlaneseq
      %v1161 = vshrl.u32 %v1160, 7
      %v1162 = vsub.s32 7, %v1161
      %v1163 = vrot.slane %v767, %v1162
      %v1164 = vlaneseq
      %v1165 = vshrl.u32 %v1164, 7
      %v1166 = vsub.s32 0, %v1165
      %v1167 = vrot.slane %v769, %v1166
      %v1168 = vlaneseq
      %v1169 = vshrl.u32 %v1168, 7
      %v1170 = vsub.s32 1, %v1169
      %v1171 = vrot.slane %v769, %v1170
      %v1172 = vlaneseq
      %v1173 = vshrl.u32 %v1172, 7
      %v1174 = vsub.s32 2, %v1173
      %v1175 = vrot.slane %v769, %v1174
      %v1176 = vlaneseq
      %v1177 = vshrl.u32 %v1176, 7
      %v1178 = vsub.s32 3, %v1177
      %v1179 = vrot.slane %v769, %v1178
      %v1180 = vlaneseq
      %v1181 = vshrl.u32 %v1180, 7
      %v1182 = vsub.s32 4, %v1181
      %v1183 = vrot.slane %v769, %v1182
      %v1184 = vlaneseq
      %v1185 = vshrl.u32 %v1184, 7
      %v1186 = vsub.s32 5, %v1185
      %v1187 = vrot.slane %v769, %v1186
      %v1188 = vlaneseq
      %v1189 = vshrl.u32 %v1188, 7
      %v1190 = vsub.s32 6, %v1189
      %v1191 = vrot.slane %v769, %v1190
      %v1192 = vlaneseq
      %v1193 = vshrl.u32 %v1192, 7
      %v1194 = vsub.s32 7, %v1193
      %v1195 = vrot.slane %v769, %v1194
      %v1196 = vlaneseq
      %v1197 = vshrl.u32 %v1196, 7
      %v1198 = vsub.s32 0, %v1197
      %v1199 = vrot.slane %v771, %v1198
      %v1200 = vlaneseq
      %v1201 = vshrl.u32 %v1200, 7
      %v1202 = vsub.s32 1, %v1201
      %v1203 = vrot.slane %v771, %v1202
      %v1204 = vlaneseq
      %v1205 = vshrl.u32 %v1204, 7
      %v1206 = vsub.s32 2, %v1205
      %v1207 = vrot.slane %v771, %v1206
      %v1208 = vlaneseq
      %v1209 = vshrl.u32 %v1208, 7
      %v1210 = vsub.s32 3, %v1209
      %v1211 = vrot.slane %v771, %v1210
      %v1212 = vlaneseq
      %v1213 = vshrl.u32 %v1212, 7
      %v1214 = vsub.s32 4, %v1213
      %v1215 = vrot.slane %v771, %v1214
      %v1216 = vlaneseq
      %v1217 = vshrl.u32 %v1216, 7
      %v1218 = vsub.s32 5, %v1217
      %v1219 = vrot.slane %v771, %v1218
      %v1220 = vlaneseq
      %v1221 = vshrl.u32 %v1220, 7
      %v1222 = vsub.s32 6, %v1221
      %v1223 = vrot.slane %v771, %v1222
      %v1224 = vlaneseq
      %v1225 = vshrl.u32 %v1224, 7
      %v1226 = vsub.s32 7, %v1225
      %v1227 = vrot.slane %v771, %v1226
      %v1228 = vlaneseq
      %v1229 = vshrl.u32 %v1228, 7
      %v1230 = vsub.s32 0, %v1229
      %v1231 = vrot.slane %v773, %v1230
      %v1232 = vlaneseq
      %v1233 = vshrl.u32 %v1232, 7
      %v1234 = vsub.s32 1, %v1233
      %v1235 = vrot.slane %v773, %v1234
      %v1236 = vlaneseq
      %v1237 = vshrl.u32 %v1236, 7
      %v1238 = vsub.s32 2, %v1237
      %v1239 = vrot.slane %v773, %v1238
      %v1240 = vlaneseq
      %v1241 = vshrl.u32 %v1240, 7
      %v1242 = vsub.s32 3, %v1241
      %v1243 = vrot.slane %v773, %v1242
      %v1244 = vlaneseq
      %v1245 = vshrl.u32 %v1244, 7
      %v1246 = vsub.s32 4, %v1245
      %v1247 = vrot.slane %v773, %v1246
      %v1248 = vlaneseq
      %v1249 = vshrl.u32 %v1248, 7
      %v1250 = vsub.s32 5, %v1249
      %v1251 = vrot.slane %v773, %v1250
      %v1252 = vlaneseq
      %v1253 = vshrl.u32 %v1252, 7
      %v1254 = vsub.s32 6, %v1253
      %v1255 = vrot.slane %v773, %v1254
      %v1256 = vlaneseq
      %v1257 = vshrl.u32 %v1256, 7
      %v1258 = vsub.s32 7, %v1257
      %v1259 = vrot.slane %v773, %v1258
      %v1260 = vlaneseq
      %v1261 = vshrl.u32 %v1260, 7
      %v1262 = vsub.s32 0, %v1261
      %v1263 = vrot.slane %v775, %v1262
      %v1264 = vlaneseq
      %v1265 = vshrl.u32 %v1264, 7
      %v1266 = vsub.s32 1, %v1265
      %v1267 = vrot.slane %v775, %v1266
      %v1268 = vlaneseq
      %v1269 = vshrl.u32 %v1268, 7
      %v1270 = vsub.s32 2, %v1269
      %v1271 = vrot.slane %v775, %v1270
      %v1272 = vlaneseq
      %v1273 = vshrl.u32 %v1272, 7
      %v1274 = vsub.s32 3, %v1273
      %v1275 = vrot.slane %v775, %v1274
      %v1276 = vlaneseq
      %v1277 = vshrl.u32 %v1276, 7
      %v1278 = vsub.s32 4, %v1277
      %v1279 = vrot.slane %v775, %v1278
      %v1280 = vlaneseq
      %v1281 = vshrl.u32 %v1280, 7
      %v1282 = vsub.s32 5, %v1281
      %v1283 = vrot.slane %v775, %v1282
      %v1284 = vlaneseq
      %v1285 = vshrl.u32 %v1284, 7
      %v1286 = vsub.s32 6, %v1285
      %v1287 = vrot.slane %v775, %v1286
      %v1288 = vlaneseq
      %v1289 = vshrl.u32 %v1288, 7
      %v1290 = vsub.s32 7, %v1289
      %v1291 = vrot.slane %v775, %v1290
      %v1292 = vlaneseq
      %v1293 = vshrl.u32 %v1292, 7
      %v1294 = vsub.s32 0, %v1293
      %v1295 = vrot.slane %v777, %v1294
      %v1296 = vlaneseq
      %v1297 = vshrl.u32 %v1296, 7
      %v1298 = vsub.s32 1, %v1297
      %v1299 = vrot.slane %v777, %v1298
      %v1300 = vlaneseq
      %v1301 = vshrl.u32 %v1300, 7
      %v1302 = vsub.s32 2, %v1301
      %v1303 = vrot.slane %v777, %v1302
      %v1304 = vlaneseq
      %v1305 = vshrl.u32 %v1304, 7
      %v1306 = vsub.s32 3, %v1305
      %v1307 = vrot.slane %v777, %v1306
      %v1308 = vlaneseq
      %v1309 = vshrl.u32 %v1308, 7
      %v1310 = vsub.s32 4, %v1309
      %v1311 = vrot.slane %v777, %v1310
      %v1312 = vlaneseq
      %v1313 = vshrl.u32 %v1312, 7
      %v1314 = vsub.s32 5, %v1313
      %v1315 = vrot.slane %v777, %v1314
      %v1316 = vlaneseq
      %v1317 = vshrl.u32 %v1316, 7
      %v1318 = vsub.s32 6, %v1317
      %v1319 = vrot.slane %v777, %v1318
      %v1320 = vlaneseq
      %v1321 = vshrl.u32 %v1320, 7
      %v1322 = vsub.s32 7, %v1321
      %v1323 = vrot.slane %v777, %v1322
      %v1324 = vlaneseq
      %v1325 = vshrl.u32 %v1324, 7
      %v1326 = vsub.s32 0, %v1325
      %v1327 = vrot.slane %v779, %v1326
      %v1328 = vlaneseq
      %v1329 = vshrl.u32 %v1328, 7
      %v1330 = vsub.s32 1, %v1329
      %v1331 = vrot.slane %v779, %v1330
      %v1332 = vlaneseq
      %v1333 = vshrl.u32 %v1332, 7
      %v1334 = vsub.s32 2, %v1333
      %v1335 = vrot.slane %v779, %v1334
      %v1336 = vlaneseq
      %v1337 = vshrl.u32 %v1336, 7
      %v1338 = vsub.s32 3, %v1337
      %v1339 = vrot.slane %v779, %v1338
      %v1340 = vlaneseq
      %v1341 = vshrl.u32 %v1340, 7
      %v1342 = vsub.s32 4, %v1341
      %v1343 = vrot.slane %v779, %v1342
      %v1344 = vlaneseq
      %v1345 = vshrl.u32 %v1344, 7
      %v1346 = vsub.s32 5, %v1345
      %v1347 = vrot.slane %v779, %v1346
      %v1348 = vlaneseq
      %v1349 = vshrl.u32 %v1348, 7
      %v1350 = vsub.s32 6, %v1349
      %v1351 = vrot.slane %v779, %v1350
      %v1352 = vlaneseq
      %v1353 = vshrl.u32 %v1352, 7
      %v1354 = vsub.s32 7, %v1353
      %v1355 = vrot.slane %v779, %v1354
      %v1356 = vlaneseq
      %v1357 = vshrl.u32 %v1356, 7
      %v1358 = vsub.s32 0, %v1357
      %v1359 = vrot.slane %v781, %v1358
      %v1360 = vlaneseq
      %v1361 = vshrl.u32 %v1360, 7
      %v1362 = vsub.s32 1, %v1361
      %v1363 = vrot.slane %v781, %v1362
      %v1364 = vlaneseq
      %v1365 = vshrl.u32 %v1364, 7
      %v1366 = vsub.s32 2, %v1365
      %v1367 = vrot.slane %v781, %v1366
      %v1368 = vlaneseq
      %v1369 = vshrl.u32 %v1368, 7
      %v1370 = vsub.s32 3, %v1369
      %v1371 = vrot.slane %v781, %v1370
      %v1372 = vlaneseq
      %v1373 = vshrl.u32 %v1372, 7
      %v1374 = vsub.s32 4, %v1373
      %v1375 = vrot.slane %v781, %v1374
      %v1376 = vlaneseq
      %v1377 = vshrl.u32 %v1376, 7
      %v1378 = vsub.s32 5, %v1377
      %v1379 = vrot.slane %v781, %v1378
      %v1380 = vlaneseq
      %v1381 = vshrl.u32 %v1380, 7
      %v1382 = vsub.s32 6, %v1381
      %v1383 = vrot.slane %v781, %v1382
      %v1384 = vlaneseq
      %v1385 = vshrl.u32 %v1384, 7
      %v1386 = vsub.s32 7, %v1385
      %v1387 = vrot.slane %v781, %v1386
      %v1388 = vlaneseq
      %v1389 = vshrl.u32 %v1388, 7
      %v1390 = vsub.s32 0, %v1389
      %v1391 = vrot.slane %v783, %v1390
      %v1392 = vlaneseq
      %v1393 = vshrl.u32 %v1392, 7
      %v1394 = vsub.s32 1, %v1393
      %v1395 = vrot.slane %v783, %v1394
      %v1396 = vlaneseq
      %v1397 = vshrl.u32 %v1396, 7
      %v1398 = vsub.s32 2, %v1397
      %v1399 = vrot.slane %v783, %v1398
      %v1400 = vlaneseq
      %v1401 = vshrl.u32 %v1400, 7
      %v1402 = vsub.s32 3, %v1401
      %v1403 = vrot.slane %v783, %v1402
      %v1404 = vlaneseq
      %v1405 = vshrl.u32 %v1404, 7
      %v1406 = vsub.s32 4, %v1405
      %v1407 = vrot.slane %v783, %v1406
      %v1408 = vlaneseq
      %v1409 = vshrl.u32 %v1408, 7
      %v1410 = vsub.s32 5, %v1409
      %v1411 = vrot.slane %v783, %v1410
      %v1412 = vlaneseq
      %v1413 = vshrl.u32 %v1412, 7
      %v1414 = vsub.s32 6, %v1413
      %v1415 = vrot.slane %v783, %v1414
      %v1416 = vlaneseq
      %v1417 = vshrl.u32 %v1416, 7
      %v1418 = vsub.s32 7, %v1417
      %v1419 = vrot.slane %v783, %v1418
      %v1420 = vlaneseq
      %v1421 = vshrl.u32 %v1420, 7
      %v1422 = vsub.s32 0, %v1421
      %v1423 = vrot.slane %v785, %v1422
      %v1424 = vlaneseq
      %v1425 = vshrl.u32 %v1424, 7
      %v1426 = vsub.s32 1, %v1425
      %v1427 = vrot.slane %v785, %v1426
      %v1428 = vlaneseq
      %v1429 = vshrl.u32 %v1428, 7
      %v1430 = vsub.s32 2, %v1429
      %v1431 = vrot.slane %v785, %v1430
      %v1432 = vlaneseq
      %v1433 = vshrl.u32 %v1432, 7
      %v1434 = vsub.s32 3, %v1433
      %v1435 = vrot.slane %v785, %v1434
      %v1436 = vlaneseq
      %v1437 = vshrl.u32 %v1436, 7
      %v1438 = vsub.s32 4, %v1437
      %v1439 = vrot.slane %v785, %v1438
      %v1440 = vlaneseq
      %v1441 = vshrl.u32 %v1440, 7
      %v1442 = vsub.s32 5, %v1441
      %v1443 = vrot.slane %v785, %v1442
      %v1444 = vlaneseq
      %v1445 = vshrl.u32 %v1444, 7
      %v1446 = vsub.s32 6, %v1445
      %v1447 = vrot.slane %v785, %v1446
      %v1448 = vlaneseq
      %v1449 = vshrl.u32 %v1448, 7
      %v1450 = vsub.s32 7, %v1449
      %v1451 = vrot.slane %v785, %v1450
      %v1452 = vlaneseq
      %v1453 = vshrl.u32 %v1452, 7
      %v1454 = vsub.s32 0, %v1453
      %v1455 = vrot.slane %v787, %v1454
      %v1456 = vlaneseq
      %v1457 = vshrl.u32 %v1456, 7
      %v1458 = vsub.s32 1, %v1457
      %v1459 = vrot.slane %v787, %v1458
      %v1460 = vlaneseq
      %v1461 = vshrl.u32 %v1460, 7
      %v1462 = vsub.s32 2, %v1461
      %v1463 = vrot.slane %v787, %v1462
      %v1464 = vlaneseq
      %v1465 = vshrl.u32 %v1464, 7
      %v1466 = vsub.s32 3, %v1465
      %v1467 = vrot.slane %v787, %v1466
      %v1468 = vlaneseq
      %v1469 = vshrl.u32 %v1468, 7
      %v1470 = vsub.s32 4, %v1469
      %v1471 = vrot.slane %v787, %v1470
      %v1472 = vlaneseq
      %v1473 = vshrl.u32 %v1472, 7
      %v1474 = vsub.s32 5, %v1473
      %v1475 = vrot.slane %v787, %v1474
      %v1476 = vlaneseq
      %v1477 = vshrl.u32 %v1476, 7
      %v1478 = vsub.s32 6, %v1477
      %v1479 = vrot.slane %v787, %v1478
      %v1480 = vlaneseq
      %v1481 = vshrl.u32 %v1480, 7
      %v1482 = vsub.s32 7, %v1481
      %v1483 = vrot.slane %v787, %v1482
      %v1484 = vlaneseq
      %v1485 = vshrl.u32 %v1484, 7
      %v1486 = vsub.s32 0, %v1485
      %v1487 = vrot.slane %v789, %v1486
      %v1488 = vlaneseq
      %v1489 = vshrl.u32 %v1488, 7
      %v1490 = vsub.s32 1, %v1489
      %v1491 = vrot.slane %v789, %v1490
      %v1492 = vlaneseq
      %v1493 = vshrl.u32 %v1492, 7
      %v1494 = vsub.s32 2, %v1493
      %v1495 = vrot.slane %v789, %v1494
      %v1496 = vlaneseq
      %v1497 = vshrl.u32 %v1496, 7
      %v1498 = vsub.s32 3, %v1497
      %v1499 = vrot.slane %v789, %v1498
      %v1500 = vlaneseq
      %v1501 = vshrl.u32 %v1500, 7
      %v1502 = vsub.s32 4, %v1501
      %v1503 = vrot.slane %v789, %v1502
      %v1504 = vlaneseq
      %v1505 = vshrl.u32 %v1504, 7
      %v1506 = vsub.s32 5, %v1505
      %v1507 = vrot.slane %v789, %v1506
      %v1508 = vlaneseq
      %v1509 = vshrl.u32 %v1508, 7
      %v1510 = vsub.s32 6, %v1509
      %v1511 = vrot.slane %v789, %v1510
      %v1512 = vlaneseq
      %v1513 = vshrl.u32 %v1512, 7
      %v1514 = vsub.s32 7, %v1513
      %v1515 = vrot.slane %v789, %v1514
      %v1516 = vlaneseq
      %v1517 = vshrl.u32 %v1516, 7
      %v1518 = vsub.s32 0, %v1517
      %v1519 = vrot.slane %v791, %v1518
      %v1520 = vlaneseq
      %v1521 = vshrl.u32 %v1520, 7
      %v1522 = vsub.s32 1, %v1521
      %v1523 = vrot.slane %v791, %v1522
      %v1524 = vlaneseq
      %v1525 = vshrl.u32 %v1524, 7
      %v1526 = vsub.s32 2, %v1525
      %v1527 = vrot.slane %v791, %v1526
      %v1528 = vlaneseq
      %v1529 = vshrl.u32 %v1528, 7
      %v1530 = vsub.s32 3, %v1529
      %v1531 = vrot.slane %v791, %v1530
      %v1532 = vlaneseq
      %v1533 = vshrl.u32 %v1532, 7
      %v1534 = vsub.s32 4, %v1533
      %v1535 = vrot.slane %v791, %v1534
      %v1536 = vlaneseq
      %v1537 = vshrl.u32 %v1536, 7
      %v1538 = vsub.s32 5, %v1537
      %v1539 = vrot.slane %v791, %v1538
      %v1540 = vlaneseq
      %v1541 = vshrl.u32 %v1540, 7
      %v1542 = vsub.s32 6, %v1541
      %v1543 = vrot.slane %v791, %v1542
      %v1544 = vlaneseq
      %v1545 = vshrl.u32 %v1544, 7
      %v1546 = vsub.s32 7, %v1545
      %v1547 = vrot.slane %v791, %v1546
      %v1548 = vlaneseq
      %v1549 = vshrl.u32 %v1548, 7
      %v1550 = vsub.s32 0, %v1549
      %v1551 = vrot.slane %v793, %v1550
      %v1552 = vlaneseq
      %v1553 = vshrl.u32 %v1552, 7
      %v1554 = vsub.s32 1, %v1553
      %v1555 = vrot.slane %v793, %v1554
      %v1556 = vlaneseq
      %v1557 = vshrl.u32 %v1556, 7
      %v1558 = vsub.s32 2, %v1557
      %v1559 = vrot.slane %v793, %v1558
      %v1560 = vlaneseq
      %v1561 = vshrl.u32 %v1560, 7
      %v1562 = vsub.s32 3, %v1561
      %v1563 = vrot.slane %v793, %v1562
      %v1564 = vlaneseq
      %v1565 = vshrl.u32 %v1564, 7
      %v1566 = vsub.s32 4, %v1565
      %v1567 = vrot.slane %v793, %v1566
      %v1568 = vlaneseq
      %v1569 = vshrl.u32 %v1568, 7
      %v1570 = vsub.s32 5, %v1569
      %v1571 = vrot.slane %v793, %v1570
      %v1572 = vlaneseq
      %v1573 = vshrl.u32 %v1572, 7
      %v1574 = vsub.s32 6, %v1573
      %v1575 = vrot.slane %v793, %v1574
      %v1576 = vlaneseq
      %v1577 = vshrl.u32 %v1576, 7
      %v1578 = vsub.s32 7, %v1577
      %v1579 = vrot.slane %v793, %v1578
      %v1580 = vlaneseq
      %v1581 = vshrl.u32 %v1580, 7
      %v1582 = vsub.s32 0, %v1581
      %v1583 = vrot.slane %v795, %v1582
      %v1584 = vlaneseq
      %v1585 = vshrl.u32 %v1584, 7
      %v1586 = vsub.s32 1, %v1585
      %v1587 = vrot.slane %v795, %v1586
      %v1588 = vlaneseq
      %v1589 = vshrl.u32 %v1588, 7
      %v1590 = vsub.s32 2, %v1589
      %v1591 = vrot.slane %v795, %v1590
      %v1592 = vlaneseq
      %v1593 = vshrl.u32 %v1592, 7
      %v1594 = vsub.s32 3, %v1593
      %v1595 = vrot.slane %v795, %v1594
      %v1596 = vlaneseq
      %v1597 = vshrl.u32 %v1596, 7
      %v1598 = vsub.s32 4, %v1597
      %v1599 = vrot.slane %v795, %v1598
      %v1600 = vlaneseq
      %v1601 = vshrl.u32 %v1600, 7
      %v1602 = vsub.s32 5, %v1601
      %v1603 = vrot.slane %v795, %v1602
      %v1604 = vlaneseq
      %v1605 = vshrl.u32 %v1604, 7
      %v1606 = vsub.s32 6, %v1605
      %v1607 = vrot.slane %v795, %v1606
      %v1608 = vlaneseq
      %v1609 = vshrl.u32 %v1608, 7
      %v1610 = vsub.s32 7, %v1609
      %v1611 = vrot.slane %v795, %v1610
      %v1612 = vlaneseq
      %v1613 = vshrl.u32 %v1612, 7
      %v1614 = vsub.s32 0, %v1613
      %v1615 = vrot.slane %v797, %v1614
      %v1616 = vlaneseq
      %v1617 = vshrl.u32 %v1616, 7
      %v1618 = vsub.s32 1, %v1617
      %v1619 = vrot.slane %v797, %v1618
      %v1620 = vlaneseq
      %v1621 = vshrl.u32 %v1620, 7
      %v1622 = vsub.s32 2, %v1621
      %v1623 = vrot.slane %v797, %v1622
      %v1624 = vlaneseq
      %v1625 = vshrl.u32 %v1624, 7
      %v1626 = vsub.s32 3, %v1625
      %v1627 = vrot.slane %v797, %v1626
      %v1628 = vlaneseq
      %v1629 = vshrl.u32 %v1628, 7
      %v1630 = vsub.s32 4, %v1629
      %v1631 = vrot.slane %v797, %v1630
      %v1632 = vlaneseq
      %v1633 = vshrl.u32 %v1632, 7
      %v1634 = vsub.s32 5, %v1633
      %v1635 = vrot.slane %v797, %v1634
      %v1636 = vlaneseq
      %v1637 = vshrl.u32 %v1636, 7
      %v1638 = vsub.s32 6, %v1637
      %v1639 = vrot.slane %v797, %v1638
      %v1640 = vlaneseq
      %v1641 = vshrl.u32 %v1640, 7
      %v1642 = vsub.s32 7, %v1641
      %v1643 = vrot.slane %v797, %v1642
      %v1644 = vlaneseq
      %v1645 = vshrl.u32 %v1644, 7
      %v1646 = vsub.s32 0, %v1645
      %v1647 = vrot.slane %v799, %v1646
      %v1648 = vlaneseq
      %v1649 = vshrl.u32 %v1648, 7
      %v1650 = vsub.s32 1, %v1649
      %v1651 = vrot.slane %v799, %v1650
      %v1652 = vlaneseq
      %v1653 = vshrl.u32 %v1652, 7
      %v1654 = vsub.s32 2, %v1653
      %v1655 = vrot.slane %v799, %v1654
      %v1656 = vlaneseq
      %v1657 = vshrl.u32 %v1656, 7
      %v1658 = vsub.s32 3, %v1657
      %v1659 = vrot.slane %v799, %v1658
      %v1660 = vlaneseq
      %v1661 = vshrl.u32 %v1660, 7
      %v1662 = vsub.s32 4, %v1661
      %v1663 = vrot.slane %v799, %v1662
      %v1664 = vlaneseq
      %v1665 = vshrl.u32 %v1664, 7
      %v1666 = vsub.s32 5, %v1665
      %v1667 = vrot.slane %v799, %v1666
      %v1668 = vlaneseq
      %v1669 = vshrl.u32 %v1668, 7
      %v1670 = vsub.s32 6, %v1669
      %v1671 = vrot.slane %v799, %v1670
      %v1672 = vlaneseq
      %v1673 = vshrl.u32 %v1672, 7
      %v1674 = vsub.s32 7, %v1673
      %v1675 = vrot.slane %v799, %v1674
      %v1676 = vlaneseq
      %v1677 = vshrl.u32 %v1676, 7
      %v1678 = vsub.s32 0, %v1677
      %v1679 = vrot.slane %v801, %v1678
      %v1680 = vlaneseq
      %v1681 = vshrl.u32 %v1680, 7
      %v1682 = vsub.s32 1, %v1681
      %v1683 = vrot.slane %v801, %v1682
      %v1684 = vlaneseq
      %v1685 = vshrl.u32 %v1684, 7
      %v1686 = vsub.s32 2, %v1685
      %v1687 = vrot.slane %v801, %v1686
      %v1688 = vlaneseq
      %v1689 = vshrl.u32 %v1688, 7
      %v1690 = vsub.s32 3, %v1689
      %v1691 = vrot.slane %v801, %v1690
      %v1692 = vlaneseq
      %v1693 = vshrl.u32 %v1692, 7
      %v1694 = vsub.s32 4, %v1693
      %v1695 = vrot.slane %v801, %v1694
      %v1696 = vlaneseq
      %v1697 = vshrl.u32 %v1696, 7
      %v1698 = vsub.s32 5, %v1697
      %v1699 = vrot.slane %v801, %v1698
      %v1700 = vlaneseq
      %v1701 = vshrl.u32 %v1700, 7
      %v1702 = vsub.s32 6, %v1701
      %v1703 = vrot.slane %v801, %v1702
      %v1704 = vlaneseq
      %v1705 = vshrl.u32 %v1704, 7
      %v1706 = vsub.s32 7, %v1705
      %v1707 = vrot.slane %v801, %v1706
      %v1708 = vlaneseq
      %v1709 = vshrl.u32 %v1708, 7
      %v1710 = vsub.s32 0, %v1709
      %v1711 = vrot.slane %v803, %v1710
      %v1712 = vlaneseq
      %v1713 = vshrl.u32 %v1712, 7
      %v1714 = vsub.s32 1, %v1713
      %v1715 = vrot.slane %v803, %v1714
      %v1716 = vlaneseq
      %v1717 = vshrl.u32 %v1716, 7
      %v1718 = vsub.s32 2, %v1717
      %v1719 = vrot.slane %v803, %v1718
      %v1720 = vlaneseq
      %v1721 = vshrl.u32 %v1720, 7
      %v1722 = vsub.s32 3, %v1721
      %v1723 = vrot.slane %v803, %v1722
      %v1724 = vlaneseq
      %v1725 = vshrl.u32 %v1724, 7
      %v1726 = vsub.s32 4, %v1725
      %v1727 = vrot.slane %v803, %v1726
      %v1728 = vlaneseq
      %v1729 = vshrl.u32 %v1728, 7
      %v1730 = vsub.s32 5, %v1729
      %v1731 = vrot.slane %v803, %v1730
      %v1732 = vlaneseq
      %v1733 = vshrl.u32 %v1732, 7
      %v1734 = vsub.s32 6, %v1733
      %v1735 = vrot.slane %v803, %v1734
      %v1736 = vlaneseq
      %v1737 = vshrl.u32 %v1736, 7
      %v1738 = vsub.s32 7, %v1737
      %v1739 = vrot.slane %v803, %v1738
      %v1740 = vlaneseq
      %v1741 = vshrl.u32 %v1740, 7
      %v1742 = vsub.s32 0, %v1741
      %v1743 = vrot.slane %v805, %v1742
      %v1744 = vlaneseq
      %v1745 = vshrl.u32 %v1744, 7
      %v1746 = vsub.s32 1, %v1745
      %v1747 = vrot.slane %v805, %v1746
      %v1748 = vlaneseq
      %v1749 = vshrl.u32 %v1748, 7
      %v1750 = vsub.s32 2, %v1749
      %v1751 = vrot.slane %v805, %v1750
      %v1752 = vlaneseq
      %v1753 = vshrl.u32 %v1752, 7
      %v1754 = vsub.s32 3, %v1753
      %v1755 = vrot.slane %v805, %v1754
      %v1756 = vlaneseq
      %v1757 = vshrl.u32 %v1756, 7
      %v1758 = vsub.s32 4, %v1757
      %v1759 = vrot.slane %v805, %v1758
      %v1760 = vlaneseq
      %v1761 = vshrl.u32 %v1760, 7
      %v1762 = vsub.s32 5, %v1761
      %v1763 = vrot.slane %v805, %v1762
      %v1764 = vlaneseq
      %v1765 = vshrl.u32 %v1764, 7
      %v1766 = vsub.s32 6, %v1765
      %v1767 = vrot.slane %v805, %v1766
      %v1768 = vlaneseq
      %v1769 = vshrl.u32 %v1768, 7
      %v1770 = vsub.s32 7, %v1769
      %v1771 = vrot.slane %v805, %v1770
      %v1772 = vlaneseq
      %v1773 = vshrl.u32 %v1772, 7
      %v1774 = vsub.s32 0, %v1773
      %v1775 = vrot.slane %v807, %v1774
      %v1776 = vlaneseq
      %v1777 = vshrl.u32 %v1776, 7
      %v1778 = vsub.s32 1, %v1777
      %v1779 = vrot.slane %v807, %v1778
      %v1780 = vlaneseq
      %v1781 = vshrl.u32 %v1780, 7
      %v1782 = vsub.s32 2, %v1781
      %v1783 = vrot.slane %v807, %v1782
      %v1784 = vlaneseq
      %v1785 = vshrl.u32 %v1784, 7
      %v1786 = vsub.s32 3, %v1785
      %v1787 = vrot.slane %v807, %v1786
      %v1788 = vlaneseq
      %v1789 = vshrl.u32 %v1788, 7
      %v1790 = vsub.s32 4, %v1789
      %v1791 = vrot.slane %v807, %v1790
      %v1792 = vlaneseq
      %v1793 = vshrl.u32 %v1792, 7
      %v1794 = vsub.s32 5, %v1793
      %v1795 = vrot.slane %v807, %v1794
      %v1796 = vlaneseq
      %v1797 = vshrl.u32 %v1796, 7
      %v1798 = vsub.s32 6, %v1797
      %v1799 = vrot.slane %v807, %v1798
      %v1800 = vlaneseq
      %v1801 = vshrl.u32 %v1800, 7
      %v1802 = vsub.s32 7, %v1801
      %v1803 = vrot.slane %v807, %v1802
      %v1804 = vlaneseq
      %v1805 = vshrl.u32 %v1804, 7
      %v1806 = vsub.s32 0, %v1805
      %v1807 = vrot.slane %v809, %v1806
      %v1808 = vlaneseq
      %v1809 = vshrl.u32 %v1808, 7
      %v1810 = vsub.s32 1, %v1809
      %v1811 = vrot.slane %v809, %v1810
      %v1812 = vlaneseq
      %v1813 = vshrl.u32 %v1812, 7
      %v1814 = vsub.s32 2, %v1813
      %v1815 = vrot.slane %v809, %v1814
      %v1816 = vlaneseq
      %v1817 = vshrl.u32 %v1816, 7
      %v1818 = vsub.s32 3, %v1817
      %v1819 = vrot.slane %v809, %v1818
      %v1820 = vlaneseq
      %v1821 = vshrl.u32 %v1820, 7
      %v1822 = vsub.s32 4, %v1821
      %v1823 = vrot.slane %v809, %v1822
      %v1824 = vlaneseq
      %v1825 = vshrl.u32 %v1824, 7
      %v1826 = vsub.s32 5, %v1825
      %v1827 = vrot.slane %v809, %v1826
      %v1828 = vlaneseq
      %v1829 = vshrl.u32 %v1828, 7
      %v1830 = vsub.s32 6, %v1829
      %v1831 = vrot.slane %v809, %v1830
      %v1832 = vlaneseq
      %v1833 = vshrl.u32 %v1832, 7
      %v1834 = vsub.s32 7, %v1833
      %v1835 = vrot.slane %v809, %v1834
      %v1836 = vlaneseq
      %v1837 = vshrl.u32 %v1836, 7
      %v1838 = vsub.s32 0, %v1837
      %v1839 = vrot.slane %v811, %v1838
      %v1840 = vlaneseq
      %v1841 = vshrl.u32 %v1840, 7
      %v1842 = vsub.s32 1, %v1841
      %v1843 = vrot.slane %v811, %v1842
      %v1844 = vlaneseq
      %v1845 = vshrl.u32 %v1844, 7
      %v1846 = vsub.s32 2, %v1845
      %v1847 = vrot.slane %v811, %v1846
      %v1848 = vlaneseq
      %v1849 = vshrl.u32 %v1848, 7
      %v1850 = vsub.s32 3, %v1849
      %v1851 = vrot.slane %v811, %v1850
      %v1852 = vlaneseq
      %v1853 = vshrl.u32 %v1852, 7
      %v1854 = vsub.s32 4, %v1853
      %v1855 = vrot.slane %v811, %v1854
      %v1856 = vlaneseq
      %v1857 = vshrl.u32 %v1856, 7
      %v1858 = vsub.s32 5, %v1857
      %v1859 = vrot.slane %v811, %v1858
      %v1860 = vlaneseq
      %v1861 = vshrl.u32 %v1860, 7
      %v1862 = vsub.s32 6, %v1861
      %v1863 = vrot.slane %v811, %v1862
      %v1864 = vlaneseq
      %v1865 = vshrl.u32 %v1864, 7
      %v1866 = vsub.s32 7, %v1865
      %v1867 = vrot.slane %v811, %v1866
      %v1868 = vcombine.low %v847, %v851
      %v1869 = vcombine.low %v855, %v859
      %v1870 = vcombine.low %v863, %v867
      %v1871 = vcombine.low %v871, %v875
      %v1873 = vunpack.c.l.s4 1966171168
      %v1874 = vunpack.c.0.s8 %v1873
      %v1875 = vlaneseq
      %v1876 = vshrl.u32 %v1875, 7
      %v1877 = vsub.s32 %v1874, %v1876
      %v1878 = vrot.slane %v1868, %v1877
      %v1880 = vunpack.c.l.s4 1966171168
      %v1881 = vunpack.c.0.s8 %v1880
      %v1882 = vlaneseq
      %v1883 = vshrl.u32 %v1882, 7
      %v1884 = vsub.s32 %v1881, %v1883
      %v1885 = vrot.slane %v1869, %v1884
      %v1887 = vunpack.c.l.s4 1966171168
      %v1888 = vunpack.c.0.s8 %v1887
      %v1889 = vlaneseq
      %v1890 = vshrl.u32 %v1889, 7
      %v1891 = vsub.s32 %v1888, %v1890
      %v1892 = vrot.slane %v1870, %v1891
      %v1894 = vunpack.c.l.s4 1966171168
      %v1895 = vunpack.c.0.s8 %v1894
      %v1896 = vlaneseq
      %v1897 = vshrl.u32 %v1896, 7
      %v1898 = vsub.s32 %v1895, %v1897
      %v1899 = vrot.slane %v1871, %v1898
      %v1900 = vcombine.low %v1878, %v1885
      %v1901 = vcombine.low %v1892, %v1899
      %v1903 = vunpack.c.l.s4 1966171168
      %v1904 = vunpack.c.0.s8 %v1903
      %v1905 = vlaneseq
      %v1906 = vshrl.u32 %v1905, 7
      %v1907 = vsub.s32 %v1904, %v1906
      %v1908 = vrot.slane %v1900, %v1907
      %v1910 = vunpack.c.l.s4 1966171168
      %v1911 = vunpack.c.0.s8 %v1910
      %v1912 = vlaneseq
      %v1913 = vshrl.u32 %v1912, 7
      %v1914 = vsub.s32 %v1911, %v1913
      %v1915 = vrot.slane %v1901, %v1914
      %v1916 = vcombine.low %v1908, %v1915
      %v1917 = vcombine.low %v879, %v883
      %v1918 = vcombine.low %v887, %v891
      %v1919 = vcombine.low %v895, %v899
      %v1920 = vcombine.low %v903, %v907
      %v1922 = vunpack.c.l.s4 1966171168
      %v1923 = vunpack.c.0.s8 %v1922
      %v1924 = vlaneseq
      %v1925 = vshrl.u32 %v1924, 7
      %v1926 = vsub.s32 %v1923, %v1925
      %v1927 = vrot.slane %v1917, %v1926
      %v1929 = vunpack.c.l.s4 1966171168
      %v1930 = vunpack.c.0.s8 %v1929
      %v1931 = vlaneseq
      %v1932 = vshrl.u32 %v1931, 7
      %v1933 = vsub.s32 %v1930, %v1932
      %v1934 = vrot.slane %v1918, %v1933
      %v1936 = vunpack.c.l.s4 1966171168
      %v1937 = vunpack.c.0.s8 %v1936
      %v1938 = vlaneseq
      %v1939 = vshrl.u32 %v1938, 7
      %v1940 = vsub.s32 %v1937, %v1939
      %v1941 = vrot.slane %v1919, %v1940
      %v1943 = vunpack.c.l.s4 1966171168
      %v1944 = vunpack.c.0.s8 %v1943
      %v1945 = vlaneseq
      %v1946 = vshrl.u32 %v1945, 7
      %v1947 = vsub.s32 %v1944, %v1946
      %v1948 = vrot.slane %v1920, %v1947
      %v1949 = vcombine.low %v1927, %v1934
      %v1950 = vcombine.low %v1941, %v1948
      %v1952 = vunpack.c.l.s4 1966171168
      %v1953 = vunpack.c.0.s8 %v1952
      %v1954 = vlaneseq
      %v1955 = vshrl.u32 %v1954, 7
      %v1956 = vsub.s32 %v1953, %v1955
      %v1957 = vrot.slane %v1949, %v1956
      %v1959 = vunpack.c.l.s4 1966171168
      %v1960 = vunpack.c.0.s8 %v1959
      %v1961 = vlaneseq
      %v1962 = vshrl.u32 %v1961, 7
      %v1963 = vsub.s32 %v1960, %v1962
      %v1964 = vrot.slane %v1950, %v1963
      %v1965 = vcombine.low %v1957, %v1964
      %v1966 = vcombine.low %v911, %v915
      %v1967 = vcombine.low %v919, %v923
      %v1968 = vcombine.low %v927, %v931
      %v1969 = vcombine.low %v935, %v939
      %v1971 = vunpack.c.l.s4 1966171168
      %v1972 = vunpack.c.0.s8 %v1971
      %v1973 = vlaneseq
      %v1974 = vshrl.u32 %v1973, 7
      %v1975 = vsub.s32 %v1972, %v1974
      %v1976 = vrot.slane %v1966, %v1975
      %v1978 = vunpack.c.l.s4 1966171168
      %v1979 = vunpack.c.0.s8 %v1978
      %v1980 = vlaneseq
      %v1981 = vshrl.u32 %v1980, 7
      %v1982 = vsub.s32 %v1979, %v1981
      %v1983 = vrot.slane %v1967, %v1982
      %v1985 = vunpack.c.l.s4 1966171168
      %v1986 = vunpack.c.0.s8 %v1985
      %v1987 = vlaneseq
      %v1988 = vshrl.u32 %v1987, 7
      %v1989 = vsub.s32 %v1986, %v1988
      %v1990 = vrot.slane %v1968, %v1989
      %v1992 = vunpack.c.l.s4 1966171168
      %v1993 = vunpack.c.0.s8 %v1992
      %v1994 = vlaneseq
      %v1995 = vshrl.u32 %v1994, 7
      %v1996 = vsub.s32 %v1993, %v1995
      %v1997 = vrot.slane %v1969, %v1996
      %v1998 = vcombine.low %v1976, %v1983
      %v1999 = vcombine.low %v1990, %v1997
      %v2001 = vunpack.c.l.s4 1966171168
      %v2002 = vunpack.c.0.s8 %v2001
      %v2003 = vlaneseq
      %v2004 = vshrl.u32 %v2003, 7
      %v2005 = vsub.s32 %v2002, %v2004
      %v2006 = vrot.slane %v1998, %v2005
      %v2008 = vunpack.c.l.s4 1966171168
      %v2009 = vunpack.c.0.s8 %v2008
      %v2010 = vlaneseq
      %v2011 = vshrl.u32 %v2010, 7
      %v2012 = vsub.s32 %v2009, %v2011
      %v2013 = vrot.slane %v1999, %v2012
      %v2014 = vcombine.low %v2006, %v2013
      %v2015 = vcombine.low %v943, %v947
      %v2016 = vcombine.low %v951, %v955
      %v2017 = vcombine.low %v959, %v963
      %v2018 = vcombine.low %v967, %v971
      %v2020 = vunpack.c.l.s4 1966171168
      %v2021 = vunpack.c.0.s8 %v2020
      %v2022 = vlaneseq
      %v2023 = vshrl.u32 %v2022, 7
      %v2024 = vsub.s32 %v2021, %v2023
      %v2025 = vrot.slane %v2015, %v2024
      %v2027 = vunpack.c.l.s4 1966171168
      %v2028 = vunpack.c.0.s8 %v2027
      %v2029 = vlaneseq
      %v2030 = vshrl.u32 %v2029, 7
      %v2031 = vsub.s32 %v2028, %v2030
      %v2032 = vrot.slane %v2016, %v2031
      %v2034 = vunpack.c.l.s4 1966171168
      %v2035 = vunpack.c.0.s8 %v2034
      %v2036 = vlaneseq
      %v2037 = vshrl.u32 %v2036, 7
      %v2038 = vsub.s32 %v2035, %v2037
      %v2039 = vrot.slane %v2017, %v2038
      %v2041 = vunpack.c.l.s4 1966171168
      %v2042 = vunpack.c.0.s8 %v2041
      %v2043 = vlaneseq
      %v2044 = vshrl.u32 %v2043, 7
      %v2045 = vsub.s32 %v2042, %v2044
      %v2046 = vrot.slane %v2018, %v2045
      %v2047 = vcombine.low %v2025, %v2032
      %v2048 = vcombine.low %v2039, %v2046
      %v2050 = vunpack.c.l.s4 1966171168
      %v2051 = vunpack.c.0.s8 %v2050
      %v2052 = vlaneseq
      %v2053 = vshrl.u32 %v2052, 7
      %v2054 = vsub.s32 %v2051, %v2053
      %v2055 = vrot.slane %v2047, %v2054
      %v2057 = vunpack.c.l.s4 1966171168
      %v2058 = vunpack.c.0.s8 %v2057
      %v2059 = vlaneseq
      %v2060 = vshrl.u32 %v2059, 7
      %v2061 = vsub.s32 %v2058, %v2060
      %v2062 = vrot.slane %v2048, %v2061
      %v2063 = vcombine.low %v2055, %v2062
      %v2064 = vcombine.low %v975, %v979
      %v2065 = vcombine.low %v983, %v987
      %v2066 = vcombine.low %v991, %v995
      %v2067 = vcombine.low %v999, %v1003
      %v2069 = vunpack.c.l.s4 1966171168
      %v2070 = vunpack.c.0.s8 %v2069
      %v2071 = vlaneseq
      %v2072 = vshrl.u32 %v2071, 7
      %v2073 = vsub.s32 %v2070, %v2072
      %v2074 = vrot.slane %v2064, %v2073
      %v2076 = vunpack.c.l.s4 1966171168
      %v2077 = vunpack.c.0.s8 %v2076
      %v2078 = vlaneseq
      %v2079 = vshrl.u32 %v2078, 7
      %v2080 = vsub.s32 %v2077, %v2079
      %v2081 = vrot.slane %v2065, %v2080
      %v2083 = vunpack.c.l.s4 1966171168
      %v2084 = vunpack.c.0.s8 %v2083
      %v2085 = vlaneseq
      %v2086 = vshrl.u32 %v2085, 7
      %v2087 = vsub.s32 %v2084, %v2086
      %v2088 = vrot.slane %v2066, %v2087
      %v2090 = vunpack.c.l.s4 1966171168
      %v2091 = vunpack.c.0.s8 %v2090
      %v2092 = vlaneseq
      %v2093 = vshrl.u32 %v2092, 7
      %v2094 = vsub.s32 %v2091, %v2093
      %v2095 = vrot.slane %v2067, %v2094
      %v2096 = vcombine.low %v2074, %v2081
      %v2097 = vcombine.low %v2088, %v2095
      %v2099 = vunpack.c.l.s4 1966171168
      %v2100 = vunpack.c.0.s8 %v2099
      %v2101 = vlaneseq
      %v2102 = vshrl.u32 %v2101, 7
      %v2103 = vsub.s32 %v2100, %v2102
      %v2104 = vrot.slane %v2096, %v2103
      %v2106 = vunpack.c.l.s4 1966171168
      %v2107 = vunpack.c.0.s8 %v2106
      %v2108 = vlaneseq
      %v2109 = vshrl.u32 %v2108, 7
      %v2110 = vsub.s32 %v2107, %v2109
      %v2111 = vrot.slane %v2097, %v2110
      %v2112 = vcombine.low %v2104, %v2111
      %v2113 = vcombine.low %v1007, %v1011
      %v2114 = vcombine.low %v1015, %v1019
      %v2115 = vcombine.low %v1023, %v1027
      %v2116 = vcombine.low %v1031, %v1035
      %v2118 = vunpack.c.l.s4 1966171168
      %v2119 = vunpack.c.0.s8 %v2118
      %v2120 = vlaneseq
      %v2121 = vshrl.u32 %v2120, 7
      %v2122 = vsub.s32 %v2119, %v2121
      %v2123 = vrot.slane %v2113, %v2122
      %v2125 = vunpack.c.l.s4 1966171168
      %v2126 = vunpack.c.0.s8 %v2125
      %v2127 = vlaneseq
      %v2128 = vshrl.u32 %v2127, 7
      %v2129 = vsub.s32 %v2126, %v2128
      %v2130 = vrot.slane %v2114, %v2129
      %v2132 = vunpack.c.l.s4 1966171168
      %v2133 = vunpack.c.0.s8 %v2132
      %v2134 = vlaneseq
      %v2135 = vshrl.u32 %v2134, 7
      %v2136 = vsub.s32 %v2133, %v2135
      %v2137 = vrot.slane %v2115, %v2136
      %v2139 = vunpack.c.l.s4 1966171168
      %v2140 = vunpack.c.0.s8 %v2139
      %v2141 = vlaneseq
      %v2142 = vshrl.u32 %v2141, 7
      %v2143 = vsub.s32 %v2140, %v2142
      %v2144 = vrot.slane %v2116, %v2143
      %v2145 = vcombine.low %v2123, %v2130
      %v2146 = vcombine.low %v2137, %v2144
      %v2148 = vunpack.c.l.s4 1966171168
      %v2149 = vunpack.c.0.s8 %v2148
      %v2150 = vlaneseq
      %v2151 = vshrl.u32 %v2150, 7
      %v2152 = vsub.s32 %v2149, %v2151
      %v2153 = vrot.slane %v2145, %v2152
      %v2155 = vunpack.c.l.s4 1966171168
      %v2156 = vunpack.c.0.s8 %v2155
      %v2157 = vlaneseq
      %v2158 = vshrl.u32 %v2157, 7
      %v2159 = vsub.s32 %v2156, %v2158
      %v2160 = vrot.slane %v2146, %v2159
      %v2161 = vcombine.low %v2153, %v2160
      %v2162 = vcombine.low %v1039, %v1043
      %v2163 = vcombine.low %v1047, %v1051
      %v2164 = vcombine.low %v1055, %v1059
      %v2165 = vcombine.low %v1063, %v1067
      %v2167 = vunpack.c.l.s4 1966171168
      %v2168 = vunpack.c.0.s8 %v2167
      %v2169 = vlaneseq
      %v2170 = vshrl.u32 %v2169, 7
      %v2171 = vsub.s32 %v2168, %v2170
      %v2172 = vrot.slane %v2162, %v2171
      %v2174 = vunpack.c.l.s4 1966171168
      %v2175 = vunpack.c.0.s8 %v2174
      %v2176 = vlaneseq
      %v2177 = vshrl.u32 %v2176, 7
      %v2178 = vsub.s32 %v2175, %v2177
      %v2179 = vrot.slane %v2163, %v2178
      %v2181 = vunpack.c.l.s4 1966171168
      %v2182 = vunpack.c.0.s8 %v2181
      %v2183 = vlaneseq
      %v2184 = vshrl.u32 %v2183, 7
      %v2185 = vsub.s32 %v2182, %v2184
      %v2186 = vrot.slane %v2164, %v2185
      %v2188 = vunpack.c.l.s4 1966171168
      %v2189 = vunpack.c.0.s8 %v2188
      %v2190 = vlaneseq
      %v2191 = vshrl.u32 %v2190, 7
      %v2192 = vsub.s32 %v2189, %v2191
      %v2193 = vrot.slane %v2165, %v2192
      %v2194 = vcombine.low %v2172, %v2179
      %v2195 = vcombine.low %v2186, %v2193
      %v2197 = vunpack.c.l.s4 1966171168
      %v2198 = vunpack.c.0.s8 %v2197
      %v2199 = vlaneseq
      %v2200 = vshrl.u32 %v2199, 7
      %v2201 = vsub.s32 %v2198, %v2200
      %v2202 = vrot.slane %v2194, %v2201
      %v2204 = vunpack.c.l.s4 1966171168
      %v2205 = vunpack.c.0.s8 %v2204
      %v2206 = vlaneseq
      %v2207 = vshrl.u32 %v2206, 7
      %v2208 = vsub.s32 %v2205, %v2207
      %v2209 = vrot.slane %v2195, %v2208
      %v2210 = vcombine.low %v2202, %v2209
      %v2211 = vcombine.low %v1071, %v1075
      %v2212 = vcombine.low %v1079, %v1083
      %v2213 = vcombine.low %v1087, %v1091
      %v2214 = vcombine.low %v1095, %v1099
      %v2216 = vunpack.c.l.s4 1966171168
      %v2217 = vunpack.c.0.s8 %v2216
      %v2218 = vlaneseq
      %v2219 = vshrl.u32 %v2218, 7
      %v2220 = vsub.s32 %v2217, %v2219
      %v2221 = vrot.slane %v2211, %v2220
      %v2223 = vunpack.c.l.s4 1966171168
      %v2224 = vunpack.c.0.s8 %v2223
      %v2225 = vlaneseq
      %v2226 = vshrl.u32 %v2225, 7
      %v2227 = vsub.s32 %v2224, %v2226
      %v2228 = vrot.slane %v2212, %v2227
      %v2230 = vunpack.c.l.s4 1966171168
      %v2231 = vunpack.c.0.s8 %v2230
      %v2232 = vlaneseq
      %v2233 = vshrl.u32 %v2232, 7
      %v2234 = vsub.s32 %v2231, %v2233
      %v2235 = vrot.slane %v2213, %v2234
      %v2237 = vunpack.c.l.s4 1966171168
      %v2238 = vunpack.c.0.s8 %v2237
      %v2239 = vlaneseq
      %v2240 = vshrl.u32 %v2239, 7
      %v2241 = vsub.s32 %v2238, %v2240
      %v2242 = vrot.slane %v2214, %v2241
      %v2243 = vcombine.low %v2221, %v2228
      %v2244 = vcombine.low %v2235, %v2242
      %v2246 = vunpack.c.l.s4 1966171168
      %v2247 = vunpack.c.0.s8 %v2246
      %v2248 = vlaneseq
      %v2249 = vshrl.u32 %v2248, 7
      %v2250 = vsub.s32 %v2247, %v2249
      %v2251 = vrot.slane %v2243, %v2250
      %v2253 = vunpack.c.l.s4 1966171168
      %v2254 = vunpack.c.0.s8 %v2253
      %v2255 = vlaneseq
      %v2256 = vshrl.u32 %v2255, 7
      %v2257 = vsub.s32 %v2254, %v2256
      %v2258 = vrot.slane %v2244, %v2257
      %v2259 = vcombine.low %v2251, %v2258
      %v2260 = vcombine.low %v1103, %v1107
      %v2261 = vcombine.low %v1111, %v1115
      %v2262 = vcombine.low %v1119, %v1123
      %v2263 = vcombine.low %v1127, %v1131
      %v2265 = vunpack.c.l.s4 1966171168
      %v2266 = vunpack.c.0.s8 %v2265
      %v2267 = vlaneseq
      %v2268 = vshrl.u32 %v2267, 7
      %v2269 = vsub.s32 %v2266, %v2268
      %v2270 = vrot.slane %v2260, %v2269
      %v2272 = vunpack.c.l.s4 1966171168
      %v2273 = vunpack.c.0.s8 %v2272
      %v2274 = vlaneseq
      %v2275 = vshrl.u32 %v2274, 7
      %v2276 = vsub.s32 %v2273, %v2275
      %v2277 = vrot.slane %v2261, %v2276
      %v2279 = vunpack.c.l.s4 1966171168
      %v2280 = vunpack.c.0.s8 %v2279
      %v2281 = vlaneseq
      %v2282 = vshrl.u32 %v2281, 7
      %v2283 = vsub.s32 %v2280, %v2282
      %v2284 = vrot.slane %v2262, %v2283
      %v2286 = vunpack.c.l.s4 1966171168
      %v2287 = vunpack.c.0.s8 %v2286
      %v2288 = vlaneseq
      %v2289 = vshrl.u32 %v2288, 7
      %v2290 = vsub.s32 %v2287, %v2289
      %v2291 = vrot.slane %v2263, %v2290
      %v2292 = vcombine.low %v2270, %v2277
      %v2293 = vcombine.low %v2284, %v2291
      %v2295 = vunpack.c.l.s4 1966171168
      %v2296 = vunpack.c.0.s8 %v2295
      %v2297 = vlaneseq
      %v2298 = vshrl.u32 %v2297, 7
      %v2299 = vsub.s32 %v2296, %v2298
      %v2300 = vrot.slane %v2292, %v2299
      %v2302 = vunpack.c.l.s4 1966171168
      %v2303 = vunpack.c.0.s8 %v2302
      %v2304 = vlaneseq
      %v2305 = vshrl.u32 %v2304, 7
      %v2306 = vsub.s32 %v2303, %v2305
      %v2307 = vrot.slane %v2293, %v2306
      %v2308 = vcombine.low %v2300, %v2307
      %v2309 = vcombine.low %v1135, %v1139
      %v2310 = vcombine.low %v1143, %v1147
      %v2311 = vcombine.low %v1151, %v1155
      %v2312 = vcombine.low %v1159, %v1163
      %v2314 = vunpack.c.l.s4 1966171168
      %v2315 = vunpack.c.0.s8 %v2314
      %v2316 = vlaneseq
      %v2317 = vshrl.u32 %v2316, 7
      %v2318 = vsub.s32 %v2315, %v2317
      %v2319 = vrot.slane %v2309, %v2318
      %v2321 = vunpack.c.l.s4 1966171168
      %v2322 = vunpack.c.0.s8 %v2321
      %v2323 = vlaneseq
      %v2324 = vshrl.u32 %v2323, 7
      %v2325 = vsub.s32 %v2322, %v2324
      %v2326 = vrot.slane %v2310, %v2325
      %v2328 = vunpack.c.l.s4 1966171168
      %v2329 = vunpack.c.0.s8 %v2328
      %v2330 = vlaneseq
      %v2331 = vshrl.u32 %v2330, 7
      %v2332 = vsub.s32 %v2329, %v2331
      %v2333 = vrot.slane %v2311, %v2332
      %v2335 = vunpack.c.l.s4 1966171168
      %v2336 = vunpack.c.0.s8 %v2335
      %v2337 = vlaneseq
      %v2338 = vshrl.u32 %v2337, 7
      %v2339 = vsub.s32 %v2336, %v2338
      %v2340 = vrot.slane %v2312, %v2339
      %v2341 = vcombine.low %v2319, %v2326
      %v2342 = vcombine.low %v2333, %v2340
      %v2344 = vunpack.c.l.s4 1966171168
      %v2345 = vunpack.c.0.s8 %v2344
      %v2346 = vlaneseq
      %v2347 = vshrl.u32 %v2346, 7
      %v2348 = vsub.s32 %v2345, %v2347
      %v2349 = vrot.slane %v2341, %v2348
      %v2351 = vunpack.c.l.s4 1966171168
      %v2352 = vunpack.c.0.s8 %v2351
      %v2353 = vlaneseq
      %v2354 = vshrl.u32 %v2353, 7
      %v2355 = vsub.s32 %v2352, %v2354
      %v2356 = vrot.slane %v2342, %v2355
      %v2357 = vcombine.low %v2349, %v2356
      %v2358 = vcombine.low %v1167, %v1171
      %v2359 = vcombine.low %v1175, %v1179
      %v2360 = vcombine.low %v1183, %v1187
      %v2361 = vcombine.low %v1191, %v1195
      %v2363 = vunpack.c.l.s4 1966171168
      %v2364 = vunpack.c.0.s8 %v2363
      %v2365 = vlaneseq
      %v2366 = vshrl.u32 %v2365, 7
      %v2367 = vsub.s32 %v2364, %v2366
      %v2368 = vrot.slane %v2358, %v2367
      %v2370 = vunpack.c.l.s4 1966171168
      %v2371 = vunpack.c.0.s8 %v2370
      %v2372 = vlaneseq
      %v2373 = vshrl.u32 %v2372, 7
      %v2374 = vsub.s32 %v2371, %v2373
      %v2375 = vrot.slane %v2359, %v2374
      %v2377 = vunpack.c.l.s4 1966171168
      %v2378 = vunpack.c.0.s8 %v2377
      %v2379 = vlaneseq
      %v2380 = vshrl.u32 %v2379, 7
      %v2381 = vsub.s32 %v2378, %v2380
      %v2382 = vrot.slane %v2360, %v2381
      %v2384 = vunpack.c.l.s4 1966171168
      %v2385 = vunpack.c.0.s8 %v2384
      %v2386 = vlaneseq
      %v2387 = vshrl.u32 %v2386, 7
      %v2388 = vsub.s32 %v2385, %v2387
      %v2389 = vrot.slane %v2361, %v2388
      %v2390 = vcombine.low %v2368, %v2375
      %v2391 = vcombine.low %v2382, %v2389
      %v2393 = vunpack.c.l.s4 1966171168
      %v2394 = vunpack.c.0.s8 %v2393
      %v2395 = vlaneseq
      %v2396 = vshrl.u32 %v2395, 7
      %v2397 = vsub.s32 %v2394, %v2396
      %v2398 = vrot.slane %v2390, %v2397
      %v2400 = vunpack.c.l.s4 1966171168
      %v2401 = vunpack.c.0.s8 %v2400
      %v2402 = vlaneseq
      %v2403 = vshrl.u32 %v2402, 7
      %v2404 = vsub.s32 %v2401, %v2403
      %v2405 = vrot.slane %v2391, %v2404
      %v2406 = vcombine.low %v2398, %v2405
      %v2407 = vcombine.low %v1199, %v1203
      %v2408 = vcombine.low %v1207, %v1211
      %v2409 = vcombine.low %v1215, %v1219
      %v2410 = vcombine.low %v1223, %v1227
      %v2412 = vunpack.c.l.s4 1966171168
      %v2413 = vunpack.c.0.s8 %v2412
      %v2414 = vlaneseq
      %v2415 = vshrl.u32 %v2414, 7
      %v2416 = vsub.s32 %v2413, %v2415
      %v2417 = vrot.slane %v2407, %v2416
      %v2419 = vunpack.c.l.s4 1966171168
      %v2420 = vunpack.c.0.s8 %v2419
      %v2421 = vlaneseq
      %v2422 = vshrl.u32 %v2421, 7
      %v2423 = vsub.s32 %v2420, %v2422
      %v2424 = vrot.slane %v2408, %v2423
      %v2426 = vunpack.c.l.s4 1966171168
      %v2427 = vunpack.c.0.s8 %v2426
      %v2428 = vlaneseq
      %v2429 = vshrl.u32 %v2428, 7
      %v2430 = vsub.s32 %v2427, %v2429
      %v2431 = vrot.slane %v2409, %v2430
      %v2433 = vunpack.c.l.s4 1966171168
      %v2434 = vunpack.c.0.s8 %v2433
      %v2435 = vlaneseq
      %v2436 = vshrl.u32 %v2435, 7
      %v2437 = vsub.s32 %v2434, %v2436
      %v2438 = vrot.slane %v2410, %v2437
      %v2439 = vcombine.low %v2417, %v2424
      %v2440 = vcombine.low %v2431, %v2438
      %v2442 = vunpack.c.l.s4 1966171168
      %v2443 = vunpack.c.0.s8 %v2442
      %v2444 = vlaneseq
      %v2445 = vshrl.u32 %v2444, 7
      %v2446 = vsub.s32 %v2443, %v2445
      %v2447 = vrot.slane %v2439, %v2446
      %v2449 = vunpack.c.l.s4 1966171168
      %v2450 = vunpack.c.0.s8 %v2449
      %v2451 = vlaneseq
      %v2452 = vshrl.u32 %v2451, 7
      %v2453 = vsub.s32 %v2450, %v2452
      %v2454 = vrot.slane %v2440, %v2453
      %v2455 = vcombine.low %v2447, %v2454
      %v2456 = vcombine.low %v1231, %v1235
      %v2457 = vcombine.low %v1239, %v1243
      %v2458 = vcombine.low %v1247, %v1251
      %v2459 = vcombine.low %v1255, %v1259
      %v2461 = vunpack.c.l.s4 1966171168
      %v2462 = vunpack.c.0.s8 %v2461
      %v2463 = vlaneseq
      %v2464 = vshrl.u32 %v2463, 7
      %v2465 = vsub.s32 %v2462, %v2464
      %v2466 = vrot.slane %v2456, %v2465
      %v2468 = vunpack.c.l.s4 1966171168
      %v2469 = vunpack.c.0.s8 %v2468
      %v2470 = vlaneseq
      %v2471 = vshrl.u32 %v2470, 7
      %v2472 = vsub.s32 %v2469, %v2471
      %v2473 = vrot.slane %v2457, %v2472
      %v2475 = vunpack.c.l.s4 1966171168
      %v2476 = vunpack.c.0.s8 %v2475
      %v2477 = vlaneseq
      %v2478 = vshrl.u32 %v2477, 7
      %v2479 = vsub.s32 %v2476, %v2478
      %v2480 = vrot.slane %v2458, %v2479
      %v2482 = vunpack.c.l.s4 1966171168
      %v2483 = vunpack.c.0.s8 %v2482
      %v2484 = vlaneseq
      %v2485 = vshrl.u32 %v2484, 7
      %v2486 = vsub.s32 %v2483, %v2485
      %v2487 = vrot.slane %v2459, %v2486
      %v2488 = vcombine.low %v2466, %v2473
      %v2489 = vcombine.low %v2480, %v2487
      %v2491 = vunpack.c.l.s4 1966171168
      %v2492 = vunpack.c.0.s8 %v2491
      %v2493 = vlaneseq
      %v2494 = vshrl.u32 %v2493, 7
      %v2495 = vsub.s32 %v2492, %v2494
      %v2496 = vrot.slane %v2488, %v2495
      %v2498 = vunpack.c.l.s4 1966171168
      %v2499 = vunpack.c.0.s8 %v2498
      %v2500 = vlaneseq
      %v2501 = vshrl.u32 %v2500, 7
      %v2502 = vsub.s32 %v2499, %v2501
      %v2503 = vrot.slane %v2489, %v2502
      %v2504 = vcombine.low %v2496, %v2503
      %v2505 = vcombine.low %v1263, %v1267
      %v2506 = vcombine.low %v1271, %v1275
      %v2507 = vcombine.low %v1279, %v1283
      %v2508 = vcombine.low %v1287, %v1291
      %v2510 = vunpack.c.l.s4 1966171168
      %v2511 = vunpack.c.0.s8 %v2510
      %v2512 = vlaneseq
      %v2513 = vshrl.u32 %v2512, 7
      %v2514 = vsub.s32 %v2511, %v2513
      %v2515 = vrot.slane %v2505, %v2514
      %v2517 = vunpack.c.l.s4 1966171168
      %v2518 = vunpack.c.0.s8 %v2517
      %v2519 = vlaneseq
      %v2520 = vshrl.u32 %v2519, 7
      %v2521 = vsub.s32 %v2518, %v2520
      %v2522 = vrot.slane %v2506, %v2521
      %v2524 = vunpack.c.l.s4 1966171168
      %v2525 = vunpack.c.0.s8 %v2524
      %v2526 = vlaneseq
      %v2527 = vshrl.u32 %v2526, 7
      %v2528 = vsub.s32 %v2525, %v2527
      %v2529 = vrot.slane %v2507, %v2528
      %v2531 = vunpack.c.l.s4 1966171168
      %v2532 = vunpack.c.0.s8 %v2531
      %v2533 = vlaneseq
      %v2534 = vshrl.u32 %v2533, 7
      %v2535 = vsub.s32 %v2532, %v2534
      %v2536 = vrot.slane %v2508, %v2535
      %v2537 = vcombine.low %v2515, %v2522
      %v2538 = vcombine.low %v2529, %v2536
      %v2540 = vunpack.c.l.s4 1966171168
      %v2541 = vunpack.c.0.s8 %v2540
      %v2542 = vlaneseq
      %v2543 = vshrl.u32 %v2542, 7
      %v2544 = vsub.s32 %v2541, %v2543
      %v2545 = vrot.slane %v2537, %v2544
      %v2547 = vunpack.c.l.s4 1966171168
      %v2548 = vunpack.c.0.s8 %v2547
      %v2549 = vlaneseq
      %v2550 = vshrl.u32 %v2549, 7
      %v2551 = vsub.s32 %v2548, %v2550
      %v2552 = vrot.slane %v2538, %v2551
      %v2553 = vcombine.low %v2545, %v2552
      %v2554 = vcombine.low %v1295, %v1299
      %v2555 = vcombine.low %v1303, %v1307
      %v2556 = vcombine.low %v1311, %v1315
      %v2557 = vcombine.low %v1319, %v1323
      %v2559 = vunpack.c.l.s4 1966171168
      %v2560 = vunpack.c.0.s8 %v2559
      %v2561 = vlaneseq
      %v2562 = vshrl.u32 %v2561, 7
      %v2563 = vsub.s32 %v2560, %v2562
      %v2564 = vrot.slane %v2554, %v2563
      %v2566 = vunpack.c.l.s4 1966171168
      %v2567 = vunpack.c.0.s8 %v2566
      %v2568 = vlaneseq
      %v2569 = vshrl.u32 %v2568, 7
      %v2570 = vsub.s32 %v2567, %v2569
      %v2571 = vrot.slane %v2555, %v2570
      %v2573 = vunpack.c.l.s4 1966171168
      %v2574 = vunpack.c.0.s8 %v2573
      %v2575 = vlaneseq
      %v2576 = vshrl.u32 %v2575, 7
      %v2577 = vsub.s32 %v2574, %v2576
      %v2578 = vrot.slane %v2556, %v2577
      %v2580 = vunpack.c.l.s4 1966171168
      %v2581 = vunpack.c.0.s8 %v2580
      %v2582 = vlaneseq
      %v2583 = vshrl.u32 %v2582, 7
      %v2584 = vsub.s32 %v2581, %v2583
      %v2585 = vrot.slane %v2557, %v2584
      %v2586 = vcombine.low %v2564, %v2571
      %v2587 = vcombine.low %v2578, %v2585
      %v2589 = vunpack.c.l.s4 1966171168
      %v2590 = vunpack.c.0.s8 %v2589
      %v2591 = vlaneseq
      %v2592 = vshrl.u32 %v2591, 7
      %v2593 = vsub.s32 %v2590, %v2592
      %v2594 = vrot.slane %v2586, %v2593
      %v2596 = vunpack.c.l.s4 1966171168
      %v2597 = vunpack.c.0.s8 %v2596
      %v2598 = vlaneseq
      %v2599 = vshrl.u32 %v2598, 7
      %v2600 = vsub.s32 %v2597, %v2599
      %v2601 = vrot.slane %v2587, %v2600
      %v2602 = vcombine.low %v2594, %v2601
      %v2603 = vcombine.low %v1327, %v1331
      %v2604 = vcombine.low %v1335, %v1339
      %v2605 = vcombine.low %v1343, %v1347
      %v2606 = vcombine.low %v1351, %v1355
      %v2608 = vunpack.c.l.s4 1966171168
      %v2609 = vunpack.c.0.s8 %v2608
      %v2610 = vlaneseq
      %v2611 = vshrl.u32 %v2610, 7
      %v2612 = vsub.s32 %v2609, %v2611
      %v2613 = vrot.slane %v2603, %v2612
      %v2615 = vunpack.c.l.s4 1966171168
      %v2616 = vunpack.c.0.s8 %v2615
      %v2617 = vlaneseq
      %v2618 = vshrl.u32 %v2617, 7
      %v2619 = vsub.s32 %v2616, %v2618
      %v2620 = vrot.slane %v2604, %v2619
      %v2622 = vunpack.c.l.s4 1966171168
      %v2623 = vunpack.c.0.s8 %v2622
      %v2624 = vlaneseq
      %v2625 = vshrl.u32 %v2624, 7
      %v2626 = vsub.s32 %v2623, %v2625
      %v2627 = vrot.slane %v2605, %v2626
      %v2629 = vunpack.c.l.s4 1966171168
      %v2630 = vunpack.c.0.s8 %v2629
      %v2631 = vlaneseq
      %v2632 = vshrl.u32 %v2631, 7
      %v2633 = vsub.s32 %v2630, %v2632
      %v2634 = vrot.slane %v2606, %v2633
      %v2635 = vcombine.low %v2613, %v2620
      %v2636 = vcombine.low %v2627, %v2634
      %v2638 = vunpack.c.l.s4 1966171168
      %v2639 = vunpack.c.0.s8 %v2638
      %v2640 = vlaneseq
      %v2641 = vshrl.u32 %v2640, 7
      %v2642 = vsub.s32 %v2639, %v2641
      %v2643 = vrot.slane %v2635, %v2642
      %v2645 = vunpack.c.l.s4 1966171168
      %v2646 = vunpack.c.0.s8 %v2645
      %v2647 = vlaneseq
      %v2648 = vshrl.u32 %v2647, 7
      %v2649 = vsub.s32 %v2646, %v2648
      %v2650 = vrot.slane %v2636, %v2649
      %v2651 = vcombine.low %v2643, %v2650
      %v2652 = vcombine.low %v1359, %v1363
      %v2653 = vcombine.low %v1367, %v1371
      %v2654 = vcombine.low %v1375, %v1379
      %v2655 = vcombine.low %v1383, %v1387
      %v2657 = vunpack.c.l.s4 1966171168
      %v2658 = vunpack.c.0.s8 %v2657
      %v2659 = vlaneseq
      %v2660 = vshrl.u32 %v2659, 7
      %v2661 = vsub.s32 %v2658, %v2660
      %v2662 = vrot.slane %v2652, %v2661
      %v2664 = vunpack.c.l.s4 1966171168
      %v2665 = vunpack.c.0.s8 %v2664
      %v2666 = vlaneseq
      %v2667 = vshrl.u32 %v2666, 7
      %v2668 = vsub.s32 %v2665, %v2667
      %v2669 = vrot.slane %v2653, %v2668
      %v2671 = vunpack.c.l.s4 1966171168
      %v2672 = vunpack.c.0.s8 %v2671
      %v2673 = vlaneseq
      %v2674 = vshrl.u32 %v2673, 7
      %v2675 = vsub.s32 %v2672, %v2674
      %v2676 = vrot.slane %v2654, %v2675
      %v2678 = vunpack.c.l.s4 1966171168
      %v2679 = vunpack.c.0.s8 %v2678
      %v2680 = vlaneseq
      %v2681 = vshrl.u32 %v2680, 7
      %v2682 = vsub.s32 %v2679, %v2681
      %v2683 = vrot.slane %v2655, %v2682
      %v2684 = vcombine.low %v2662, %v2669
      %v2685 = vcombine.low %v2676, %v2683
      %v2687 = vunpack.c.l.s4 1966171168
      %v2688 = vunpack.c.0.s8 %v2687
      %v2689 = vlaneseq
      %v2690 = vshrl.u32 %v2689, 7
      %v2691 = vsub.s32 %v2688, %v2690
      %v2692 = vrot.slane %v2684, %v2691
      %v2694 = vunpack.c.l.s4 1966171168
      %v2695 = vunpack.c.0.s8 %v2694
      %v2696 = vlaneseq
      %v2697 = vshrl.u32 %v2696, 7
      %v2698 = vsub.s32 %v2695, %v2697
      %v2699 = vrot.slane %v2685, %v2698
      %v2700 = vcombine.low %v2692, %v2699
      %v2701 = vcombine.low %v1391, %v1395
      %v2702 = vcombine.low %v1399, %v1403
      %v2703 = vcombine.low %v1407, %v1411
      %v2704 = vcombine.low %v1415, %v1419
      %v2706 = vunpack.c.l.s4 1966171168
      %v2707 = vunpack.c.0.s8 %v2706
      %v2708 = vlaneseq
      %v2709 = vshrl.u32 %v2708, 7
      %v2710 = vsub.s32 %v2707, %v2709
      %v2711 = vrot.slane %v2701, %v2710
      %v2713 = vunpack.c.l.s4 1966171168
      %v2714 = vunpack.c.0.s8 %v2713
      %v2715 = vlaneseq
      %v2716 = vshrl.u32 %v2715, 7
      %v2717 = vsub.s32 %v2714, %v2716
      %v2718 = vrot.slane %v2702, %v2717
      %v2720 = vunpack.c.l.s4 1966171168
      %v2721 = vunpack.c.0.s8 %v2720
      %v2722 = vlaneseq
      %v2723 = vshrl.u32 %v2722, 7
      %v2724 = vsub.s32 %v2721, %v2723
      %v2725 = vrot.slane %v2703, %v2724
      %v2727 = vunpack.c.l.s4 1966171168
      %v2728 = vunpack.c.0.s8 %v2727
      %v2729 = vlaneseq
      %v2730 = vshrl.u32 %v2729, 7
      %v2731 = vsub.s32 %v2728, %v2730
      %v2732 = vrot.slane %v2704, %v2731
      %v2733 = vcombine.low %v2711, %v2718
      %v2734 = vcombine.low %v2725, %v2732
      %v2736 = vunpack.c.l.s4 1966171168
      %v2737 = vunpack.c.0.s8 %v2736
      %v2738 = vlaneseq
      %v2739 = vshrl.u32 %v2738, 7
      %v2740 = vsub.s32 %v2737, %v2739
      %v2741 = vrot.slane %v2733, %v2740
      %v2743 = vunpack.c.l.s4 1966171168
      %v2744 = vunpack.c.0.s8 %v2743
      %v2745 = vlaneseq
      %v2746 = vshrl.u32 %v2745, 7
      %v2747 = vsub.s32 %v2744, %v2746
      %v2748 = vrot.slane %v2734, %v2747
      %v2749 = vcombine.low %v2741, %v2748
      %v2750 = vcombine.low %v1423, %v1427
      %v2751 = vcombine.low %v1431, %v1435
      %v2752 = vcombine.low %v1439, %v1443
      %v2753 = vcombine.low %v1447, %v1451
      %v2755 = vunpack.c.l.s4 1966171168
      %v2756 = vunpack.c.0.s8 %v2755
      %v2757 = vlaneseq
      %v2758 = vshrl.u32 %v2757, 7
      %v2759 = vsub.s32 %v2756, %v2758
      %v2760 = vrot.slane %v2750, %v2759
      %v2762 = vunpack.c.l.s4 1966171168
      %v2763 = vunpack.c.0.s8 %v2762
      %v2764 = vlaneseq
      %v2765 = vshrl.u32 %v2764, 7
      %v2766 = vsub.s32 %v2763, %v2765
      %v2767 = vrot.slane %v2751, %v2766
      %v2769 = vunpack.c.l.s4 1966171168
      %v2770 = vunpack.c.0.s8 %v2769
      %v2771 = vlaneseq
      %v2772 = vshrl.u32 %v2771, 7
      %v2773 = vsub.s32 %v2770, %v2772
      %v2774 = vrot.slane %v2752, %v2773
      %v2776 = vunpack.c.l.s4 1966171168
      %v2777 = vunpack.c.0.s8 %v2776
      %v2778 = vlaneseq
      %v2779 = vshrl.u32 %v2778, 7
      %v2780 = vsub.s32 %v2777, %v2779
      %v2781 = vrot.slane %v2753, %v2780
      %v2782 = vcombine.low %v2760, %v2767
      %v2783 = vcombine.low %v2774, %v2781
      %v2785 = vunpack.c.l.s4 1966171168
      %v2786 = vunpack.c.0.s8 %v2785
      %v2787 = vlaneseq
      %v2788 = vshrl.u32 %v2787, 7
      %v2789 = vsub.s32 %v2786, %v2788
      %v2790 = vrot.slane %v2782, %v2789
      %v2792 = vunpack.c.l.s4 1966171168
      %v2793 = vunpack.c.0.s8 %v2792
      %v2794 = vlaneseq
      %v2795 = vshrl.u32 %v2794, 7
      %v2796 = vsub.s32 %v2793, %v2795
      %v2797 = vrot.slane %v2783, %v2796
      %v2798 = vcombine.low %v2790, %v2797
      %v2799 = vcombine.low %v1455, %v1459
      %v2800 = vcombine.low %v1463, %v1467
      %v2801 = vcombine.low %v1471, %v1475
      %v2802 = vcombine.low %v1479, %v1483
      %v2804 = vunpack.c.l.s4 1966171168
      %v2805 = vunpack.c.0.s8 %v2804
      %v2806 = vlaneseq
      %v2807 = vshrl.u32 %v2806, 7
      %v2808 = vsub.s32 %v2805, %v2807
      %v2809 = vrot.slane %v2799, %v2808
      %v2811 = vunpack.c.l.s4 1966171168
      %v2812 = vunpack.c.0.s8 %v2811
      %v2813 = vlaneseq
      %v2814 = vshrl.u32 %v2813, 7
      %v2815 = vsub.s32 %v2812, %v2814
      %v2816 = vrot.slane %v2800, %v2815
      %v2818 = vunpack.c.l.s4 1966171168
      %v2819 = vunpack.c.0.s8 %v2818
      %v2820 = vlaneseq
      %v2821 = vshrl.u32 %v2820, 7
      %v2822 = vsub.s32 %v2819, %v2821
      %v2823 = vrot.slane %v2801, %v2822
      %v2825 = vunpack.c.l.s4 1966171168
      %v2826 = vunpack.c.0.s8 %v2825
      %v2827 = vlaneseq
      %v2828 = vshrl.u32 %v2827, 7
      %v2829 = vsub.s32 %v2826, %v2828
      %v2830 = vrot.slane %v2802, %v2829
      %v2831 = vcombine.low %v2809, %v2816
      %v2832 = vcombine.low %v2823, %v2830
      %v2834 = vunpack.c.l.s4 1966171168
      %v2835 = vunpack.c.0.s8 %v2834
      %v2836 = vlaneseq
      %v2837 = vshrl.u32 %v2836, 7
      %v2838 = vsub.s32 %v2835, %v2837
      %v2839 = vrot.slane %v2831, %v2838
      %v2841 = vunpack.c.l.s4 1966171168
      %v2842 = vunpack.c.0.s8 %v2841
      %v2843 = vlaneseq
      %v2844 = vshrl.u32 %v2843, 7
      %v2845 = vsub.s32 %v2842, %v2844
      %v2846 = vrot.slane %v2832, %v2845
      %v2847 = vcombine.low %v2839, %v2846
      %v2848 = vcombine.low %v1487, %v1491
      %v2849 = vcombine.low %v1495, %v1499
      %v2850 = vcombine.low %v1503, %v1507
      %v2851 = vcombine.low %v1511, %v1515
      %v2853 = vunpack.c.l.s4 1966171168
      %v2854 = vunpack.c.0.s8 %v2853
      %v2855 = vlaneseq
      %v2856 = vshrl.u32 %v2855, 7
      %v2857 = vsub.s32 %v2854, %v2856
      %v2858 = vrot.slane %v2848, %v2857
      %v2860 = vunpack.c.l.s4 1966171168
      %v2861 = vunpack.c.0.s8 %v2860
      %v2862 = vlaneseq
      %v2863 = vshrl.u32 %v2862, 7
      %v2864 = vsub.s32 %v2861, %v2863
      %v2865 = vrot.slane %v2849, %v2864
      %v2867 = vunpack.c.l.s4 1966171168
      %v2868 = vunpack.c.0.s8 %v2867
      %v2869 = vlaneseq
      %v2870 = vshrl.u32 %v2869, 7
      %v2871 = vsub.s32 %v2868, %v2870
      %v2872 = vrot.slane %v2850, %v2871
      %v2874 = vunpack.c.l.s4 1966171168
      %v2875 = vunpack.c.0.s8 %v2874
      %v2876 = vlaneseq
      %v2877 = vshrl.u32 %v2876, 7
      %v2878 = vsub.s32 %v2875, %v2877
      %v2879 = vrot.slane %v2851, %v2878
      %v2880 = vcombine.low %v2858, %v2865
      %v2881 = vcombine.low %v2872, %v2879
      %v2883 = vunpack.c.l.s4 1966171168
      %v2884 = vunpack.c.0.s8 %v2883
      %v2885 = vlaneseq
      %v2886 = vshrl.u32 %v2885, 7
      %v2887 = vsub.s32 %v2884, %v2886
      %v2888 = vrot.slane %v2880, %v2887
      %v2890 = vunpack.c.l.s4 1966171168
      %v2891 = vunpack.c.0.s8 %v2890
      %v2892 = vlaneseq
      %v2893 = vshrl.u32 %v2892, 7
      %v2894 = vsub.s32 %v2891, %v2893
      %v2895 = vrot.slane %v2881, %v2894
      %v2896 = vcombine.low %v2888, %v2895
      %v2897 = vcombine.low %v1519, %v1523
      %v2898 = vcombine.low %v1527, %v1531
      %v2899 = vcombine.low %v1535, %v1539
      %v2900 = vcombine.low %v1543, %v1547
      %v2902 = vunpack.c.l.s4 1966171168
      %v2903 = vunpack.c.0.s8 %v2902
      %v2904 = vlaneseq
      %v2905 = vshrl.u32 %v2904, 7
      %v2906 = vsub.s32 %v2903, %v2905
      %v2907 = vrot.slane %v2897, %v2906
      %v2909 = vunpack.c.l.s4 1966171168
      %v2910 = vunpack.c.0.s8 %v2909
      %v2911 = vlaneseq
      %v2912 = vshrl.u32 %v2911, 7
      %v2913 = vsub.s32 %v2910, %v2912
      %v2914 = vrot.slane %v2898, %v2913
      %v2916 = vunpack.c.l.s4 1966171168
      %v2917 = vunpack.c.0.s8 %v2916
      %v2918 = vlaneseq
      %v2919 = vshrl.u32 %v2918, 7
      %v2920 = vsub.s32 %v2917, %v2919
      %v2921 = vrot.slane %v2899, %v2920
      %v2923 = vunpack.c.l.s4 1966171168
      %v2924 = vunpack.c.0.s8 %v2923
      %v2925 = vlaneseq
      %v2926 = vshrl.u32 %v2925, 7
      %v2927 = vsub.s32 %v2924, %v2926
      %v2928 = vrot.slane %v2900, %v2927
      %v2929 = vcombine.low %v2907, %v2914
      %v2930 = vcombine.low %v2921, %v2928
      %v2932 = vunpack.c.l.s4 1966171168
      %v2933 = vunpack.c.0.s8 %v2932
      %v2934 = vlaneseq
      %v2935 = vshrl.u32 %v2934, 7
      %v2936 = vsub.s32 %v2933, %v2935
      %v2937 = vrot.slane %v2929, %v2936
      %v2939 = vunpack.c.l.s4 1966171168
      %v2940 = vunpack.c.0.s8 %v2939
      %v2941 = vlaneseq
      %v2942 = vshrl.u32 %v2941, 7
      %v2943 = vsub.s32 %v2940, %v2942
      %v2944 = vrot.slane %v2930, %v2943
      %v2945 = vcombine.low %v2937, %v2944
      %v2946 = vcombine.low %v1551, %v1555
      %v2947 = vcombine.low %v1559, %v1563
      %v2948 = vcombine.low %v1567, %v1571
      %v2949 = vcombine.low %v1575, %v1579
      %v2951 = vunpack.c.l.s4 1966171168
      %v2952 = vunpack.c.0.s8 %v2951
      %v2953 = vlaneseq
      %v2954 = vshrl.u32 %v2953, 7
      %v2955 = vsub.s32 %v2952, %v2954
      %v2956 = vrot.slane %v2946, %v2955
      %v2958 = vunpack.c.l.s4 1966171168
      %v2959 = vunpack.c.0.s8 %v2958
      %v2960 = vlaneseq
      %v2961 = vshrl.u32 %v2960, 7
      %v2962 = vsub.s32 %v2959, %v2961
      %v2963 = vrot.slane %v2947, %v2962
      %v2965 = vunpack.c.l.s4 1966171168
      %v2966 = vunpack.c.0.s8 %v2965
      %v2967 = vlaneseq
      %v2968 = vshrl.u32 %v2967, 7
      %v2969 = vsub.s32 %v2966, %v2968
      %v2970 = vrot.slane %v2948, %v2969
      %v2972 = vunpack.c.l.s4 1966171168
      %v2973 = vunpack.c.0.s8 %v2972
      %v2974 = vlaneseq
      %v2975 = vshrl.u32 %v2974, 7
      %v2976 = vsub.s32 %v2973, %v2975
      %v2977 = vrot.slane %v2949, %v2976
      %v2978 = vcombine.low %v2956, %v2963
      %v2979 = vcombine.low %v2970, %v2977
      %v2981 = vunpack.c.l.s4 1966171168
      %v2982 = vunpack.c.0.s8 %v2981
      %v2983 = vlaneseq
      %v2984 = vshrl.u32 %v2983, 7
      %v2985 = vsub.s32 %v2982, %v2984
      %v2986 = vrot.slane %v2978, %v2985
      %v2988 = vunpack.c.l.s4 1966171168
      %v2989 = vunpack.c.0.s8 %v2988
      %v2990 = vlaneseq
      %v2991 = vshrl.u32 %v2990, 7
      %v2992 = vsub.s32 %v2989, %v2991
      %v2993 = vrot.slane %v2979, %v2992
      %v2994 = vcombine.low %v2986, %v2993
      %v2995 = vcombine.low %v1583, %v1587
      %v2996 = vcombine.low %v1591, %v1595
      %v2997 = vcombine.low %v1599, %v1603
      %v2998 = vcombine.low %v1607, %v1611
      %v3000 = vunpack.c.l.s4 1966171168
      %v3001 = vunpack.c.0.s8 %v3000
      %v3002 = vlaneseq
      %v3003 = vshrl.u32 %v3002, 7
      %v3004 = vsub.s32 %v3001, %v3003
      %v3005 = vrot.slane %v2995, %v3004
      %v3007 = vunpack.c.l.s4 1966171168
      %v3008 = vunpack.c.0.s8 %v3007
      %v3009 = vlaneseq
      %v3010 = vshrl.u32 %v3009, 7
      %v3011 = vsub.s32 %v3008, %v3010
      %v3012 = vrot.slane %v2996, %v3011
      %v3014 = vunpack.c.l.s4 1966171168
      %v3015 = vunpack.c.0.s8 %v3014
      %v3016 = vlaneseq
      %v3017 = vshrl.u32 %v3016, 7
      %v3018 = vsub.s32 %v3015, %v3017
      %v3019 = vrot.slane %v2997, %v3018
      %v3021 = vunpack.c.l.s4 1966171168
      %v3022 = vunpack.c.0.s8 %v3021
      %v3023 = vlaneseq
      %v3024 = vshrl.u32 %v3023, 7
      %v3025 = vsub.s32 %v3022, %v3024
      %v3026 = vrot.slane %v2998, %v3025
      %v3027 = vcombine.low %v3005, %v3012
      %v3028 = vcombine.low %v3019, %v3026
      %v3030 = vunpack.c.l.s4 1966171168
      %v3031 = vunpack.c.0.s8 %v3030
      %v3032 = vlaneseq
      %v3033 = vshrl.u32 %v3032, 7
      %v3034 = vsub.s32 %v3031, %v3033
      %v3035 = vrot.slane %v3027, %v3034
      %v3037 = vunpack.c.l.s4 1966171168
      %v3038 = vunpack.c.0.s8 %v3037
      %v3039 = vlaneseq
      %v3040 = vshrl.u32 %v3039, 7
      %v3041 = vsub.s32 %v3038, %v3040
      %v3042 = vrot.slane %v3028, %v3041
      %v3043 = vcombine.low %v3035, %v3042
      %v3044 = vcombine.low %v1615, %v1619
      %v3045 = vcombine.low %v1623, %v1627
      %v3046 = vcombine.low %v1631, %v1635
      %v3047 = vcombine.low %v1639, %v1643
      %v3049 = vunpack.c.l.s4 1966171168
      %v3050 = vunpack.c.0.s8 %v3049
      %v3051 = vlaneseq
      %v3052 = vshrl.u32 %v3051, 7
      %v3053 = vsub.s32 %v3050, %v3052
      %v3054 = vrot.slane %v3044, %v3053
      %v3056 = vunpack.c.l.s4 1966171168
      %v3057 = vunpack.c.0.s8 %v3056
      %v3058 = vlaneseq
      %v3059 = vshrl.u32 %v3058, 7
      %v3060 = vsub.s32 %v3057, %v3059
      %v3061 = vrot.slane %v3045, %v3060
      %v3063 = vunpack.c.l.s4 1966171168
      %v3064 = vunpack.c.0.s8 %v3063
      %v3065 = vlaneseq
      %v3066 = vshrl.u32 %v3065, 7
      %v3067 = vsub.s32 %v3064, %v3066
      %v3068 = vrot.slane %v3046, %v3067
      %v3070 = vunpack.c.l.s4 1966171168
      %v3071 = vunpack.c.0.s8 %v3070
      %v3072 = vlaneseq
      %v3073 = vshrl.u32 %v3072, 7
      %v3074 = vsub.s32 %v3071, %v3073
      %v3075 = vrot.slane %v3047, %v3074
      %v3076 = vcombine.low %v3054, %v3061
      %v3077 = vcombine.low %v3068, %v3075
      %v3079 = vunpack.c.l.s4 1966171168
      %v3080 = vunpack.c.0.s8 %v3079
      %v3081 = vlaneseq
      %v3082 = vshrl.u32 %v3081, 7
      %v3083 = vsub.s32 %v3080, %v3082
      %v3084 = vrot.slane %v3076, %v3083
      %v3086 = vunpack.c.l.s4 1966171168
      %v3087 = vunpack.c.0.s8 %v3086
      %v3088 = vlaneseq
      %v3089 = vshrl.u32 %v3088, 7
      %v3090 = vsub.s32 %v3087, %v3089
      %v3091 = vrot.slane %v3077, %v3090
      %v3092 = vcombine.low %v3084, %v3091
      %v3093 = vcombine.low %v1647, %v1651
      %v3094 = vcombine.low %v1655, %v1659
      %v3095 = vcombine.low %v1663, %v1667
      %v3096 = vcombine.low %v1671, %v1675
      %v3098 = vunpack.c.l.s4 1966171168
      %v3099 = vunpack.c.0.s8 %v3098
      %v3100 = vlaneseq
      %v3101 = vshrl.u32 %v3100, 7
      %v3102 = vsub.s32 %v3099, %v3101
      %v3103 = vrot.slane %v3093, %v3102
      %v3105 = vunpack.c.l.s4 1966171168
      %v3106 = vunpack.c.0.s8 %v3105
      %v3107 = vlaneseq
      %v3108 = vshrl.u32 %v3107, 7
      %v3109 = vsub.s32 %v3106, %v3108
      %v3110 = vrot.slane %v3094, %v3109
      %v3112 = vunpack.c.l.s4 1966171168
      %v3113 = vunpack.c.0.s8 %v3112
      %v3114 = vlaneseq
      %v3115 = vshrl.u32 %v3114, 7
      %v3116 = vsub.s32 %v3113, %v3115
      %v3117 = vrot.slane %v3095, %v3116
      %v3119 = vunpack.c.l.s4 1966171168
      %v3120 = vunpack.c.0.s8 %v3119
      %v3121 = vlaneseq
      %v3122 = vshrl.u32 %v3121, 7
      %v3123 = vsub.s32 %v3120, %v3122
      %v3124 = vrot.slane %v3096, %v3123
      %v3125 = vcombine.low %v3103, %v3110
      %v3126 = vcombine.low %v3117, %v3124
      %v3128 = vunpack.c.l.s4 1966171168
      %v3129 = vunpack.c.0.s8 %v3128
      %v3130 = vlaneseq
      %v3131 = vshrl.u32 %v3130, 7
      %v3132 = vsub.s32 %v3129, %v3131
      %v3133 = vrot.slane %v3125, %v3132
      %v3135 = vunpack.c.l.s4 1966171168
      %v3136 = vunpack.c.0.s8 %v3135
      %v3137 = vlaneseq
      %v3138 = vshrl.u32 %v3137, 7
      %v3139 = vsub.s32 %v3136, %v3138
      %v3140 = vrot.slane %v3126, %v3139
      %v3141 = vcombine.low %v3133, %v3140
      %v3142 = vcombine.low %v1679, %v1683
      %v3143 = vcombine.low %v1687, %v1691
      %v3144 = vcombine.low %v1695, %v1699
      %v3145 = vcombine.low %v1703, %v1707
      %v3147 = vunpack.c.l.s4 1966171168
      %v3148 = vunpack.c.0.s8 %v3147
      %v3149 = vlaneseq
      %v3150 = vshrl.u32 %v3149, 7
      %v3151 = vsub.s32 %v3148, %v3150
      %v3152 = vrot.slane %v3142, %v3151
      %v3154 = vunpack.c.l.s4 1966171168
      %v3155 = vunpack.c.0.s8 %v3154
      %v3156 = vlaneseq
      %v3157 = vshrl.u32 %v3156, 7
      %v3158 = vsub.s32 %v3155, %v3157
      %v3159 = vrot.slane %v3143, %v3158
      %v3161 = vunpack.c.l.s4 1966171168
      %v3162 = vunpack.c.0.s8 %v3161
      %v3163 = vlaneseq
      %v3164 = vshrl.u32 %v3163, 7
      %v3165 = vsub.s32 %v3162, %v3164
      %v3166 = vrot.slane %v3144, %v3165
      %v3168 = vunpack.c.l.s4 1966171168
      %v3169 = vunpack.c.0.s8 %v3168
      %v3170 = vlaneseq
      %v3171 = vshrl.u32 %v3170, 7
      %v3172 = vsub.s32 %v3169, %v3171
      %v3173 = vrot.slane %v3145, %v3172
      %v3174 = vcombine.low %v3152, %v3159
      %v3175 = vcombine.low %v3166, %v3173
      %v3177 = vunpack.c.l.s4 1966171168
      %v3178 = vunpack.c.0.s8 %v3177
      %v3179 = vlaneseq
      %v3180 = vshrl.u32 %v3179, 7
      %v3181 = vsub.s32 %v3178, %v3180
      %v3182 = vrot.slane %v3174, %v3181
      %v3184 = vunpack.c.l.s4 1966171168
      %v3185 = vunpack.c.0.s8 %v3184
      %v3186 = vlaneseq
      %v3187 = vshrl.u32 %v3186, 7
      %v3188 = vsub.s32 %v3185, %v3187
      %v3189 = vrot.slane %v3175, %v3188
      %v3190 = vcombine.low %v3182, %v3189
      %v3191 = vcombine.low %v1711, %v1715
      %v3192 = vcombine.low %v1719, %v1723
      %v3193 = vcombine.low %v1727, %v1731
      %v3194 = vcombine.low %v1735, %v1739
      %v3196 = vunpack.c.l.s4 1966171168
      %v3197 = vunpack.c.0.s8 %v3196
      %v3198 = vlaneseq
      %v3199 = vshrl.u32 %v3198, 7
      %v3200 = vsub.s32 %v3197, %v3199
      %v3201 = vrot.slane %v3191, %v3200
      %v3203 = vunpack.c.l.s4 1966171168
      %v3204 = vunpack.c.0.s8 %v3203
      %v3205 = vlaneseq
      %v3206 = vshrl.u32 %v3205, 7
      %v3207 = vsub.s32 %v3204, %v3206
      %v3208 = vrot.slane %v3192, %v3207
      %v3210 = vunpack.c.l.s4 1966171168
      %v3211 = vunpack.c.0.s8 %v3210
      %v3212 = vlaneseq
      %v3213 = vshrl.u32 %v3212, 7
      %v3214 = vsub.s32 %v3211, %v3213
      %v3215 = vrot.slane %v3193, %v3214
      %v3217 = vunpack.c.l.s4 1966171168
      %v3218 = vunpack.c.0.s8 %v3217
      %v3219 = vlaneseq
      %v3220 = vshrl.u32 %v3219, 7
      %v3221 = vsub.s32 %v3218, %v3220
      %v3222 = vrot.slane %v3194, %v3221
      %v3223 = vcombine.low %v3201, %v3208
      %v3224 = vcombine.low %v3215, %v3222
      %v3226 = vunpack.c.l.s4 1966171168
      %v3227 = vunpack.c.0.s8 %v3226
      %v3228 = vlaneseq
      %v3229 = vshrl.u32 %v3228, 7
      %v3230 = vsub.s32 %v3227, %v3229
      %v3231 = vrot.slane %v3223, %v3230
      %v3233 = vunpack.c.l.s4 1966171168
      %v3234 = vunpack.c.0.s8 %v3233
      %v3235 = vlaneseq
      %v3236 = vshrl.u32 %v3235, 7
      %v3237 = vsub.s32 %v3234, %v3236
      %v3238 = vrot.slane %v3224, %v3237
      %v3239 = vcombine.low %v3231, %v3238
      %v3240 = vcombine.low %v1743, %v1747
      %v3241 = vcombine.low %v1751, %v1755
      %v3242 = vcombine.low %v1759, %v1763
      %v3243 = vcombine.low %v1767, %v1771
      %v3245 = vunpack.c.l.s4 1966171168
      %v3246 = vunpack.c.0.s8 %v3245
      %v3247 = vlaneseq
      %v3248 = vshrl.u32 %v3247, 7
      %v3249 = vsub.s32 %v3246, %v3248
      %v3250 = vrot.slane %v3240, %v3249
      %v3252 = vunpack.c.l.s4 1966171168
      %v3253 = vunpack.c.0.s8 %v3252
      %v3254 = vlaneseq
      %v3255 = vshrl.u32 %v3254, 7
      %v3256 = vsub.s32 %v3253, %v3255
      %v3257 = vrot.slane %v3241, %v3256
      %v3259 = vunpack.c.l.s4 1966171168
      %v3260 = vunpack.c.0.s8 %v3259
      %v3261 = vlaneseq
      %v3262 = vshrl.u32 %v3261, 7
      %v3263 = vsub.s32 %v3260, %v3262
      %v3264 = vrot.slane %v3242, %v3263
      %v3266 = vunpack.c.l.s4 1966171168
      %v3267 = vunpack.c.0.s8 %v3266
      %v3268 = vlaneseq
      %v3269 = vshrl.u32 %v3268, 7
      %v3270 = vsub.s32 %v3267, %v3269
      %v3271 = vrot.slane %v3243, %v3270
      %v3272 = vcombine.low %v3250, %v3257
      %v3273 = vcombine.low %v3264, %v3271
      %v3275 = vunpack.c.l.s4 1966171168
      %v3276 = vunpack.c.0.s8 %v3275
      %v3277 = vlaneseq
      %v3278 = vshrl.u32 %v3277, 7
      %v3279 = vsub.s32 %v3276, %v3278
      %v3280 = vrot.slane %v3272, %v3279
      %v3282 = vunpack.c.l.s4 1966171168
      %v3283 = vunpack.c.0.s8 %v3282
      %v3284 = vlaneseq
      %v3285 = vshrl.u32 %v3284, 7
      %v3286 = vsub.s32 %v3283, %v3285
      %v3287 = vrot.slane %v3273, %v3286
      %v3288 = vcombine.low %v3280, %v3287
      %v3289 = vcombine.low %v1775, %v1779
      %v3290 = vcombine.low %v1783, %v1787
      %v3291 = vcombine.low %v1791, %v1795
      %v3292 = vcombine.low %v1799, %v1803
      %v3294 = vunpack.c.l.s4 1966171168
      %v3295 = vunpack.c.0.s8 %v3294
      %v3296 = vlaneseq
      %v3297 = vshrl.u32 %v3296, 7
      %v3298 = vsub.s32 %v3295, %v3297
      %v3299 = vrot.slane %v3289, %v3298
      %v3301 = vunpack.c.l.s4 1966171168
      %v3302 = vunpack.c.0.s8 %v3301
      %v3303 = vlaneseq
      %v3304 = vshrl.u32 %v3303, 7
      %v3305 = vsub.s32 %v3302, %v3304
      %v3306 = vrot.slane %v3290, %v3305
      %v3308 = vunpack.c.l.s4 1966171168
      %v3309 = vunpack.c.0.s8 %v3308
      %v3310 = vlaneseq
      %v3311 = vshrl.u32 %v3310, 7
      %v3312 = vsub.s32 %v3309, %v3311
      %v3313 = vrot.slane %v3291, %v3312
      %v3315 = vunpack.c.l.s4 1966171168
      %v3316 = vunpack.c.0.s8 %v3315
      %v3317 = vlaneseq
      %v3318 = vshrl.u32 %v3317, 7
      %v3319 = vsub.s32 %v3316, %v3318
      %v3320 = vrot.slane %v3292, %v3319
      %v3321 = vcombine.low %v3299, %v3306
      %v3322 = vcombine.low %v3313, %v3320
      %v3324 = vunpack.c.l.s4 1966171168
      %v3325 = vunpack.c.0.s8 %v3324
      %v3326 = vlaneseq
      %v3327 = vshrl.u32 %v3326, 7
      %v3328 = vsub.s32 %v3325, %v3327
      %v3329 = vrot.slane %v3321, %v3328
      %v3331 = vunpack.c.l.s4 1966171168
      %v3332 = vunpack.c.0.s8 %v3331
      %v3333 = vlaneseq
      %v3334 = vshrl.u32 %v3333, 7
      %v3335 = vsub.s32 %v3332, %v3334
      %v3336 = vrot.slane %v3322, %v3335
      %v3337 = vcombine.low %v3329, %v3336
      %v3338 = vcombine.low %v1807, %v1811
      %v3339 = vcombine.low %v1815, %v1819
      %v3340 = vcombine.low %v1823, %v1827
      %v3341 = vcombine.low %v1831, %v1835
      %v3343 = vunpack.c.l.s4 1966171168
      %v3344 = vunpack.c.0.s8 %v3343
      %v3345 = vlaneseq
      %v3346 = vshrl.u32 %v3345, 7
      %v3347 = vsub.s32 %v3344, %v3346
      %v3348 = vrot.slane %v3338, %v3347
      %v3350 = vunpack.c.l.s4 1966171168
      %v3351 = vunpack.c.0.s8 %v3350
      %v3352 = vlaneseq
      %v3353 = vshrl.u32 %v3352, 7
      %v3354 = vsub.s32 %v3351, %v3353
      %v3355 = vrot.slane %v3339, %v3354
      %v3357 = vunpack.c.l.s4 1966171168
      %v3358 = vunpack.c.0.s8 %v3357
      %v3359 = vlaneseq
      %v3360 = vshrl.u32 %v3359, 7
      %v3361 = vsub.s32 %v3358, %v3360
      %v3362 = vrot.slane %v3340, %v3361
      %v3364 = vunpack.c.l.s4 1966171168
      %v3365 = vunpack.c.0.s8 %v3364
      %v3366 = vlaneseq
      %v3367 = vshrl.u32 %v3366, 7
      %v3368 = vsub.s32 %v3365, %v3367
      %v3369 = vrot.slane %v3341, %v3368
      %v3370 = vcombine.low %v3348, %v3355
      %v3371 = vcombine.low %v3362, %v3369
      %v3373 = vunpack.c.l.s4 1966171168
      %v3374 = vunpack.c.0.s8 %v3373
      %v3375 = vlaneseq
      %v3376 = vshrl.u32 %v3375, 7
      %v3377 = vsub.s32 %v3374, %v3376
      %v3378 = vrot.slane %v3370, %v3377
      %v3380 = vunpack.c.l.s4 1966171168
      %v3381 = vunpack.c.0.s8 %v3380
      %v3382 = vlaneseq
      %v3383 = vshrl.u32 %v3382, 7
      %v3384 = vsub.s32 %v3381, %v3383
      %v3385 = vrot.slane %v3371, %v3384
      %v3386 = vcombine.low %v3378, %v3385
      %v3387 = vcombine.low %v1839, %v1843
      %v3388 = vcombine.low %v1847, %v1851
      %v3389 = vcombine.low %v1855, %v1859
      %v3390 = vcombine.low %v1863, %v1867
      %v3392 = vunpack.c.l.s4 1966171168
      %v3393 = vunpack.c.0.s8 %v3392
      %v3394 = vlaneseq
      %v3395 = vshrl.u32 %v3394, 7
      %v3396 = vsub.s32 %v3393, %v3395
      %v3397 = vrot.slane %v3387, %v3396
      %v3399 = vunpack.c.l.s4 1966171168
      %v3400 = vunpack.c.0.s8 %v3399
      %v3401 = vlaneseq
      %v3402 = vshrl.u32 %v3401, 7
      %v3403 = vsub.s32 %v3400, %v3402
      %v3404 = vrot.slane %v3388, %v3403
      %v3406 = vunpack.c.l.s4 1966171168
      %v3407 = vunpack.c.0.s8 %v3406
      %v3408 = vlaneseq
      %v3409 = vshrl.u32 %v3408, 7
      %v3410 = vsub.s32 %v3407, %v3409
      %v3411 = vrot.slane %v3389, %v3410
      %v3413 = vunpack.c.l.s4 1966171168
      %v3414 = vunpack.c.0.s8 %v3413
      %v3415 = vlaneseq
      %v3416 = vshrl.u32 %v3415, 7
      %v3417 = vsub.s32 %v3414, %v3416
      %v3418 = vrot.slane %v3390, %v3417
      %v3419 = vcombine.low %v3397, %v3404
      %v3420 = vcombine.low %v3411, %v3418
      %v3422 = vunpack.c.l.s4 1966171168
      %v3423 = vunpack.c.0.s8 %v3422
      %v3424 = vlaneseq
      %v3425 = vshrl.u32 %v3424, 7
      %v3426 = vsub.s32 %v3423, %v3425
      %v3427 = vrot.slane %v3419, %v3426
      %v3429 = vunpack.c.l.s4 1966171168
      %v3430 = vunpack.c.0.s8 %v3429
      %v3431 = vlaneseq
      %v3432 = vshrl.u32 %v3431, 7
      %v3433 = vsub.s32 %v3430, %v3432
      %v3434 = vrot.slane %v3420, %v3433
      %v3435 = vcombine.low %v3427, %v3434
      %3436 = vset.pattern.permute.xlu0 0
      %3437 = vperm.xlu0 %3436, %v1916
      %v3438 = vpop.permute.xlu0 %3437
      %3439 = vset.pattern.permute.xlu0 0
      %3440 = vperm.xlu0 %3439, %v1965
      %v3441 = vpop.permute.xlu0 %3440
      %3442 = vset.pattern.permute.xlu0 0
      %3443 = vperm.xlu0 %3442, %v2014
      %v3444 = vpop.permute.xlu0 %3443
      %3445 = vset.pattern.permute.xlu0 0
      %3446 = vperm.xlu0 %3445, %v2063
      %v3447 = vpop.permute.xlu0 %3446
      %3448 = vset.pattern.permute.xlu0 0
      %3449 = vperm.xlu0 %3448, %v2112
      %v3450 = vpop.permute.xlu0 %3449
      %3451 = vset.pattern.permute.xlu0 0
      %3452 = vperm.xlu0 %3451, %v2161
      %v3453 = vpop.permute.xlu0 %3452
      %3454 = vset.pattern.permute.xlu0 0
      %3455 = vperm.xlu0 %3454, %v2210
      %v3456 = vpop.permute.xlu0 %3455
      %3457 = vset.pattern.permute.xlu0 0
      %3458 = vperm.xlu0 %3457, %v2259
      %v3459 = vpop.permute.xlu0 %3458
      %3460 = vset.pattern.permute.xlu0 0
      %3461 = vperm.xlu0 %3460, %v2308
      %v3462 = vpop.permute.xlu0 %3461
      %3463 = vset.pattern.permute.xlu0 0
      %3464 = vperm.xlu0 %3463, %v2357
      %v3465 = vpop.permute.xlu0 %3464
      %3466 = vset.pattern.permute.xlu0 0
      %3467 = vperm.xlu0 %3466, %v2406
      %v3468 = vpop.permute.xlu0 %3467
      %3469 = vset.pattern.permute.xlu0 0
      %3470 = vperm.xlu0 %3469, %v2455
      %v3471 = vpop.permute.xlu0 %3470
      %3472 = vset.pattern.permute.xlu0 0
      %3473 = vperm.xlu0 %3472, %v2504
      %v3474 = vpop.permute.xlu0 %3473
      %3475 = vset.pattern.permute.xlu0 0
      %3476 = vperm.xlu0 %3475, %v2553
      %v3477 = vpop.permute.xlu0 %3476
      %3478 = vset.pattern.permute.xlu0 0
      %3479 = vperm.xlu0 %3478, %v2602
      %v3480 = vpop.permute.xlu0 %3479
      %3481 = vset.pattern.permute.xlu0 0
      %3482 = vperm.xlu0 %3481, %v2651
      %v3483 = vpop.permute.xlu0 %3482
      %3484 = vset.pattern.permute.xlu0 0
      %3485 = vperm.xlu0 %3484, %v2700
      %v3486 = vpop.permute.xlu0 %3485
      %3487 = vset.pattern.permute.xlu0 0
      %3488 = vperm.xlu0 %3487, %v2749
      %v3489 = vpop.permute.xlu0 %3488
      %3490 = vset.pattern.permute.xlu0 0
      %3491 = vperm.xlu0 %3490, %v2798
      %v3492 = vpop.permute.xlu0 %3491
      %3493 = vset.pattern.permute.xlu0 0
      %3494 = vperm.xlu0 %3493, %v2847
      %v3495 = vpop.permute.xlu0 %3494
      %3496 = vset.pattern.permute.xlu0 0
      %3497 = vperm.xlu0 %3496, %v2896
      %v3498 = vpop.permute.xlu0 %3497
      %3499 = vset.pattern.permute.xlu0 0
      %3500 = vperm.xlu0 %3499, %v2945
      %v3501 = vpop.permute.xlu0 %3500
      %3502 = vset.pattern.permute.xlu0 0
      %3503 = vperm.xlu0 %3502, %v2994
      %v3504 = vpop.permute.xlu0 %3503
      %3505 = vset.pattern.permute.xlu0 0
      %3506 = vperm.xlu0 %3505, %v3043
      %v3507 = vpop.permute.xlu0 %3506
      %3508 = vset.pattern.permute.xlu0 0
      %3509 = vperm.xlu0 %3508, %v3092
      %v3510 = vpop.permute.xlu0 %3509
      %3511 = vset.pattern.permute.xlu0 0
      %3512 = vperm.xlu0 %3511, %v3141
      %v3513 = vpop.permute.xlu0 %3512
      %3514 = vset.pattern.permute.xlu0 0
      %3515 = vperm.xlu0 %3514, %v3190
      %v3516 = vpop.permute.xlu0 %3515
      %3517 = vset.pattern.permute.xlu0 0
      %3518 = vperm.xlu0 %3517, %v3239
      %v3519 = vpop.permute.xlu0 %3518
      %3520 = vset.pattern.permute.xlu0 0
      %3521 = vperm.xlu0 %3520, %v3288
      %v3522 = vpop.permute.xlu0 %3521
      %3523 = vset.pattern.permute.xlu0 0
      %3524 = vperm.xlu0 %3523, %v3337
      %v3525 = vpop.permute.xlu0 %3524
      %3526 = vset.pattern.permute.xlu0 0
      %3527 = vperm.xlu0 %3526, %v3386
      %v3528 = vpop.permute.xlu0 %3527
      %3529 = vset.pattern.permute.xlu0 0
      %3530 = vperm.xlu0 %3529, %v3435
      %v3531 = vpop.permute.xlu0 %3530
      %v3532 = vlaneseq
      %v3533 = vand.u32 %v3532, 127
      %v3534 = vlaneseq
      %v3535 = vshrl.u32 %v3534, 7
      %v3536 = vsub.s32 %v3533, %v3535
      %v3537 = vrot.slane %v3438, %v3536
      %v3538 = vadd.s32 %v3533, 4294967288
      %v3539 = vlaneseq
      %v3540 = vshrl.u32 %v3539, 7
      %v3541 = vsub.s32 %v3538, %v3540
      %v3542 = vrot.slane %v3441, %v3541
      %vm3543 = vcmask 130112
      %v3544 = vsel %vm3543, %v3542, %v3537
      %v3545 = vadd.s32 %v3533, 4294967280
      %v3546 = vlaneseq
      %v3547 = vshrl.u32 %v3546, 7
      %v3548 = vsub.s32 %v3545, %v3547
      %v3549 = vrot.slane %v3444, %v3548
      %vm3550 = vcmask 195712
      %v3551 = vsel %vm3550, %v3549, %v3544
      %v3552 = vadd.s32 %v3533, 4294967272
      %v3553 = vlaneseq
      %v3554 = vshrl.u32 %v3553, 7
      %v3555 = vsub.s32 %v3552, %v3554
      %v3556 = vrot.slane %v3447, %v3555
      %vm3557 = vcmask 261312
      %v3558 = vsel %vm3557, %v3556, %v3551
      %v3559 = vadd.s32 %v3533, 4294967264
      %v3560 = vlaneseq
      %v3561 = vshrl.u32 %v3560, 7
      %v3562 = vsub.s32 %v3559, %v3561
      %v3563 = vrot.slane %v3450, %v3562
      %vm3564 = vcmask 326912
      %v3565 = vsel %vm3564, %v3563, %v3558
      %v3566 = vadd.s32 %v3533, 4294967256
      %v3567 = vlaneseq
      %v3568 = vshrl.u32 %v3567, 7
      %v3569 = vsub.s32 %v3566, %v3568
      %v3570 = vrot.slane %v3453, %v3569
      %vm3571 = vcmask 392512
      %v3572 = vsel %vm3571, %v3570, %v3565
      %v3573 = vadd.s32 %v3533, 4294967248
      %v3574 = vlaneseq
      %v3575 = vshrl.u32 %v3574, 7
      %v3576 = vsub.s32 %v3573, %v3575
      %v3577 = vrot.slane %v3456, %v3576
      %vm3578 = vcmask 458112
      %v3579 = vsel %vm3578, %v3577, %v3572
      %v3580 = vadd.s32 %v3533, 4294967240
      %v3581 = vlaneseq
      %v3582 = vshrl.u32 %v3581, 7
      %v3583 = vsub.s32 %v3580, %v3582
      %v3584 = vrot.slane %v3459, %v3583
      %vm3585 = vcmask 523712
      %v3586 = vsel %vm3585, %v3584, %v3579
      %v3587 = vadd.s32 %v3533, 4294967232
      %v3588 = vlaneseq
      %v3589 = vshrl.u32 %v3588, 7
      %v3590 = vsub.s32 %v3587, %v3589
      %v3591 = vrot.slane %v3462, %v3590
      %vm3592 = vcmask 589312
      %v3593 = vsel %vm3592, %v3591, %v3586
      %v3594 = vadd.s32 %v3533, 4294967224
      %v3595 = vlaneseq
      %v3596 = vshrl.u32 %v3595, 7
      %v3597 = vsub.s32 %v3594, %v3596
      %v3598 = vrot.slane %v3465, %v3597
      %vm3599 = vcmask 654912
      %v3600 = vsel %vm3599, %v3598, %v3593
      %v3601 = vadd.s32 %v3533, 4294967216
      %v3602 = vlaneseq
      %v3603 = vshrl.u32 %v3602, 7
      %v3604 = vsub.s32 %v3601, %v3603
      %v3605 = vrot.slane %v3468, %v3604
      %vm3606 = vcmask 720512
      %v3607 = vsel %vm3606, %v3605, %v3600
      %v3608 = vadd.s32 %v3533, 4294967208
      %v3609 = vlaneseq
      %v3610 = vshrl.u32 %v3609, 7
      %v3611 = vsub.s32 %v3608, %v3610
      %v3612 = vrot.slane %v3471, %v3611
      %vm3613 = vcmask 786112
      %v3614 = vsel %vm3613, %v3612, %v3607
      %v3615 = vadd.s32 %v3533, 4294967200
      %v3616 = vlaneseq
      %v3617 = vshrl.u32 %v3616, 7
      %v3618 = vsub.s32 %v3615, %v3617
      %v3619 = vrot.slane %v3474, %v3618
      %vm3620 = vcmask 851712
      %v3621 = vsel %vm3620, %v3619, %v3614
      %v3622 = vadd.s32 %v3533, 4294967192
      %v3623 = vlaneseq
      %v3624 = vshrl.u32 %v3623, 7
      %v3625 = vsub.s32 %v3622, %v3624
      %v3626 = vrot.slane %v3477, %v3625
      %vm3627 = vcmask 917312
      %v3628 = vsel %vm3627, %v3626, %v3621
      %v3629 = vadd.s32 %v3533, 4294967184
      %v3630 = vlaneseq
      %v3631 = vshrl.u32 %v3630, 7
      %v3632 = vsub.s32 %v3629, %v3631
      %v3633 = vrot.slane %v3480, %v3632
      %vm3634 = vcmask 982912
      %v3635 = vsel %vm3634, %v3633, %v3628
      %v3636 = vadd.s32 %v3533, 4294967176
      %v3637 = vlaneseq
      %v3638 = vshrl.u32 %v3637, 7
      %v3639 = vsub.s32 %v3636, %v3638
      %v3640 = vrot.slane %v3483, %v3639
      %vm3641 = vcmask 1048512
      %v3642 = vsel %vm3641, %v3640, %v3635
      %v3643 = vlaneseq
      %v3644 = vshrl.u32 %v3643, 7
      %v3645 = vsub.s32 %v3533, %v3644
      %v3646 = vrot.slane %v3486, %v3645
      %v3647 = vlaneseq
      %v3648 = vshrl.u32 %v3647, 7
      %v3649 = vsub.s32 %v3538, %v3648
      %v3650 = vrot.slane %v3489, %v3649
      %v3651 = vsel %vm3543, %v3650, %v3646
      %v3652 = vlaneseq
      %v3653 = vshrl.u32 %v3652, 7
      %v3654 = vsub.s32 %v3545, %v3653
      %v3655 = vrot.slane %v3492, %v3654
      %v3656 = vsel %vm3550, %v3655, %v3651
      %v3657 = vlaneseq
      %v3658 = vshrl.u32 %v3657, 7
      %v3659 = vsub.s32 %v3552, %v3658
      %v3660 = vrot.slane %v3495, %v3659
      %v3661 = vsel %vm3557, %v3660, %v3656
      %v3662 = vlaneseq
      %v3663 = vshrl.u32 %v3662, 7
      %v3664 = vsub.s32 %v3559, %v3663
      %v3665 = vrot.slane %v3498, %v3664
      %v3666 = vsel %vm3564, %v3665, %v3661
      %v3667 = vlaneseq
      %v3668 = vshrl.u32 %v3667, 7
      %v3669 = vsub.s32 %v3566, %v3668
      %v3670 = vrot.slane %v3501, %v3669
      %v3671 = vsel %vm3571, %v3670, %v3666
      %v3672 = vlaneseq
      %v3673 = vshrl.u32 %v3672, 7
      %v3674 = vsub.s32 %v3573, %v3673
      %v3675 = vrot.slane %v3504, %v3674
      %v3676 = vsel %vm3578, %v3675, %v3671
      %v3677 = vlaneseq
      %v3678 = vshrl.u32 %v3677, 7
      %v3679 = vsub.s32 %v3580, %v3678
      %v3680 = vrot.slane %v3507, %v3679
      %v3681 = vsel %vm3585, %v3680, %v3676
      %v3682 = vlaneseq
      %v3683 = vshrl.u32 %v3682, 7
      %v3684 = vsub.s32 %v3587, %v3683
      %v3685 = vrot.slane %v3510, %v3684
      %v3686 = vsel %vm3592, %v3685, %v3681
      %v3687 = vlaneseq
      %v3688 = vshrl.u32 %v3687, 7
      %v3689 = vsub.s32 %v3594, %v3688
      %v3690 = vrot.slane %v3513, %v3689
      %v3691 = vsel %vm3599, %v3690, %v3686
      %v3692 = vlaneseq
      %v3693 = vshrl.u32 %v3692, 7
      %v3694 = vsub.s32 %v3601, %v3693
      %v3695 = vrot.slane %v3516, %v3694
      %v3696 = vsel %vm3606, %v3695, %v3691
      %v3697 = vlaneseq
      %v3698 = vshrl.u32 %v3697, 7
      %v3699 = vsub.s32 %v3608, %v3698
      %v3700 = vrot.slane %v3519, %v3699
      %v3701 = vsel %vm3613, %v3700, %v3696
      %v3702 = vlaneseq
      %v3703 = vshrl.u32 %v3702, 7
      %v3704 = vsub.s32 %v3615, %v3703
      %v3705 = vrot.slane %v3522, %v3704
      %v3706 = vsel %vm3620, %v3705, %v3701
      %v3707 = vlaneseq
      %v3708 = vshrl.u32 %v3707, 7
      %v3709 = vsub.s32 %v3622, %v3708
      %v3710 = vrot.slane %v3525, %v3709
      %v3711 = vsel %vm3627, %v3710, %v3706
      %v3712 = vlaneseq
      %v3713 = vshrl.u32 %v3712, 7
      %v3714 = vsub.s32 %v3629, %v3713
      %v3715 = vrot.slane %v3528, %v3714
      %v3716 = vsel %vm3634, %v3715, %v3711
      %v3717 = vlaneseq
      %v3718 = vshrl.u32 %v3717, 7
      %v3719 = vsub.s32 %v3636, %v3718
      %v3720 = vrot.slane %v3531, %v3719
      %v3721 = vsel %vm3641, %v3720, %v3716
      %v3722 = vcombine.low %v3642, %v3721
      %v3724 = vunpack.c.l.s4 1966171168
      %v3725 = vunpack.c.0.s8 %v3724
      %v3726 = vlaneseq
      %v3727 = vshrl.u32 %v3726, 7
      %v3728 = vsub.s32 %v3725, %v3727
      %v3729 = vrot.slane %v3722, %v3728
      %v3731 = vunpack.c.l.s4 1966171168
      %v3732 = vunpack.c.0.s8 %v3731
      %v3733 = vlaneseq
      %v3734 = vshrl.u32 %v3733, 7
      %v3735 = vsub.s32 %v3732, %v3734
      %v3736 = vrot.slane %v3729, %v3735
      %v3738 = vlaneseq
      %vm3739 = vcmp.ge.s32.totalorder %v3738, 0
      %vm3740 = vcmp.lt.s32.totalorder %v3738, 256
      %vm3741 = vmand %vm3739, %vm3740
      %s3742 = sshra.s32 %s65, 3
      %s3743 = sand.u32 %s65, 7
      %s3744 = sshra.s32 %s65, 3
      %s3745 = sand.u32 %s65, 7
      %s3746 = smul.u32 %s3742, 2
      %s3747 = smul.u32 %s3746, 8
      %s3748 = sadd.s32 %s3747, %s3745
      %s3749 = scalar_lea.vmem [#allocation8], %s3748
      %3750 = vst.msk [vmem:[%s3749] ss:$8 sm:$0x3] %vm3741, %v3736
      %3751 = vst.msk [vmem:[%s3749] ss:$8 sm:$0x0] %vm3741, %v3736
    $region34: #{tpu_custom_call.1} parent=1 // loop_footer
      %s69 = sadd.s32 1, %s65
    $region35: #{tpu_custom_call.1} parent=1 // loop_footer_branch
      %64 = sbr.rel target = $region31
    $region36: #{tpu_custom_call.1} parent=1 // loop_exit
      _
    loop: start=0, step=1, limit=8
    $region37: #{tpu_custom_call.1} parent=1 // loop_pre_header
      _
    $region38: #{tpu_custom_call.1} parent=1 // loop_header
      %s3753 = sphi 0, %s3757
      %p3754 = scmp.ge.s32.totalorder %s3753, 8
    $region39: #{tpu_custom_call.1} parent=1 // loop_header_branch
      %3756 = sbr.rel (%p3754) target = $region43
    $region40: #{tpu_custom_call.1} parent=1 // loop_body
      %s3758 = smul.u32 %s3753, 32
      %s3759 = smul.addr %s3758, 4
      %s3760 = scalar_lea.vmem [#allocation5], %s3759
      %v3761 = vld [vmem:[%s3760] sm:$0xf]
      %v3762 = vld [vmem:[%s3760 + $0x4] sm:$0xf]
      %v3763 = vld [vmem:[%s3760 + $0x8] sm:$0xf]
      %v3764 = vld [vmem:[%s3760 + $0xc] sm:$0xf]
      %v3765 = vld [vmem:[%s3760 + $0x10] sm:$0xf]
      %v3766 = vld [vmem:[%s3760 + $0x14] sm:$0xf]
      %v3767 = vld [vmem:[%s3760 + $0x18] sm:$0xf]
      %v3768 = vld [vmem:[%s3760 + $0x1c] sm:$0xf]
      %v3769 = vld [vmem:[%s3760 + $0x20] sm:$0xf]
      %v3770 = vld [vmem:[%s3760 + $0x24] sm:$0xf]
      %v3771 = vld [vmem:[%s3760 + $0x28] sm:$0xf]
      %v3772 = vld [vmem:[%s3760 + $0x2c] sm:$0xf]
      %v3773 = vld [vmem:[%s3760 + $0x30] sm:$0xf]
      %v3774 = vld [vmem:[%s3760 + $0x34] sm:$0xf]
      %v3775 = vld [vmem:[%s3760 + $0x38] sm:$0xf]
      %v3776 = vld [vmem:[%s3760 + $0x3c] sm:$0xf]
      %v3777 = vld [vmem:[%s3760 + $0x40] sm:$0xf]
      %v3778 = vld [vmem:[%s3760 + $0x44] sm:$0xf]
      %v3779 = vld [vmem:[%s3760 + $0x48] sm:$0xf]
      %v3780 = vld [vmem:[%s3760 + $0x4c] sm:$0xf]
      %v3781 = vld [vmem:[%s3760 + $0x50] sm:$0xf]
      %v3782 = vld [vmem:[%s3760 + $0x54] sm:$0xf]
      %v3783 = vld [vmem:[%s3760 + $0x58] sm:$0xf]
      %v3784 = vld [vmem:[%s3760 + $0x5c] sm:$0xf]
      %v3785 = vld [vmem:[%s3760 + $0x60] sm:$0xf]
      %v3786 = vld [vmem:[%s3760 + $0x64] sm:$0xf]
      %v3787 = vld [vmem:[%s3760 + $0x68] sm:$0xf]
      %v3788 = vld [vmem:[%s3760 + $0x6c] sm:$0xf]
      %v3789 = vld [vmem:[%s3760 + $0x70] sm:$0xf]
      %v3790 = vld [vmem:[%s3760 + $0x74] sm:$0xf]
      %v3791 = vld [vmem:[%s3760 + $0x78] sm:$0xf]
      %v3792 = vld [vmem:[%s3760 + $0x7c] sm:$0xf]
      %v3793 = vld [vmem:[#allocation7] sm:$0xff]
      %v3794 = vld [vmem:[#allocation7 + $0x8] sm:$0xff]
      %v3795 = vld [vmem:[#allocation7 + $0x10] sm:$0xff]
      %v3796 = vld [vmem:[#allocation7 + $0x18] sm:$0xff]
      %v3797 = vld [vmem:[#allocation7 + $0x20] sm:$0xff]
      %v3798 = vld [vmem:[#allocation7 + $0x28] sm:$0xff]
      %v3799 = vld [vmem:[#allocation7 + $0x30] sm:$0xff]
      %v3800 = vld [vmem:[#allocation7 + $0x38] sm:$0xff]
      %v3801 = vld [vmem:[#allocation7 + $0x40] sm:$0xff]
      %v3802 = vld [vmem:[#allocation7 + $0x48] sm:$0xff]
      %v3803 = vld [vmem:[#allocation7 + $0x50] sm:$0xff]
      %v3804 = vld [vmem:[#allocation7 + $0x58] sm:$0xff]
      %v3805 = vld [vmem:[#allocation7 + $0x60] sm:$0xff]
      %v3806 = vld [vmem:[#allocation7 + $0x68] sm:$0xff]
      %v3807 = vld [vmem:[#allocation7 + $0x70] sm:$0xff]
      %v3808 = vld [vmem:[#allocation7 + $0x78] sm:$0xff]
      %v3809 = vld [vmem:[#allocation7 + $0x80] sm:$0xff]
      %v3810 = vld [vmem:[#allocation7 + $0x88] sm:$0xff]
      %v3811 = vld [vmem:[#allocation7 + $0x90] sm:$0xff]
      %v3812 = vld [vmem:[#allocation7 + $0x98] sm:$0xff]
      %v3813 = vld [vmem:[#allocation7 + $0xa0] sm:$0xff]
      %v3814 = vld [vmem:[#allocation7 + $0xa8] sm:$0xff]
      %v3815 = vld [vmem:[#allocation7 + $0xb0] sm:$0xff]
      %v3816 = vld [vmem:[#allocation7 + $0xb8] sm:$0xff]
      %v3817 = vld [vmem:[#allocation7 + $0xc0] sm:$0xff]
      %v3818 = vld [vmem:[#allocation7 + $0xc8] sm:$0xff]
      %v3819 = vld [vmem:[#allocation7 + $0xd0] sm:$0xff]
      %v3820 = vld [vmem:[#allocation7 + $0xd8] sm:$0xff]
      %v3821 = vld [vmem:[#allocation7 + $0xe0] sm:$0xff]
      %v3822 = vld [vmem:[#allocation7 + $0xe8] sm:$0xff]
      %v3823 = vld [vmem:[#allocation7 + $0xf0] sm:$0xff]
      %v3824 = vld [vmem:[#allocation7 + $0xf8] sm:$0xff]
      %v3857 = vunpack.c.l.b16 %v3793
      %v3858 = vunpack.c.h.b16 %v3793
      %v3859 = vunpack.c.l.b16 %v3794
      %v3860 = vunpack.c.h.b16 %v3794
      %v3861 = vunpack.c.l.b16 %v3795
      %v3862 = vunpack.c.h.b16 %v3795
      %v3863 = vunpack.c.l.b16 %v3796
      %v3864 = vunpack.c.h.b16 %v3796
      %v3865 = vunpack.c.l.b16 %v3797
      %v3866 = vunpack.c.h.b16 %v3797
      %v3867 = vunpack.c.l.b16 %v3798
      %v3868 = vunpack.c.h.b16 %v3798
      %v3869 = vunpack.c.l.b16 %v3799
      %v3870 = vunpack.c.h.b16 %v3799
      %v3871 = vunpack.c.l.b16 %v3800
      %v3872 = vunpack.c.h.b16 %v3800
      %v3873 = vunpack.c.l.b16 %v3801
      %v3874 = vunpack.c.h.b16 %v3801
      %v3875 = vunpack.c.l.b16 %v3802
      %v3876 = vunpack.c.h.b16 %v3802
      %v3877 = vunpack.c.l.b16 %v3803
      %v3878 = vunpack.c.h.b16 %v3803
      %v3879 = vunpack.c.l.b16 %v3804
      %v3880 = vunpack.c.h.b16 %v3804
      %v3881 = vunpack.c.l.b16 %v3805
      %v3882 = vunpack.c.h.b16 %v3805
      %v3883 = vunpack.c.l.b16 %v3806
      %v3884 = vunpack.c.h.b16 %v3806
      %v3885 = vunpack.c.l.b16 %v3807
      %v3886 = vunpack.c.h.b16 %v3807
      %v3887 = vunpack.c.l.b16 %v3808
      %v3888 = vunpack.c.h.b16 %v3808
      %v3889 = vunpack.c.l.b16 %v3809
      %v3890 = vunpack.c.h.b16 %v3809
      %v3891 = vunpack.c.l.b16 %v3810
      %v3892 = vunpack.c.h.b16 %v3810
      %v3893 = vunpack.c.l.b16 %v3811
      %v3894 = vunpack.c.h.b16 %v3811
      %v3895 = vunpack.c.l.b16 %v3812
      %v3896 = vunpack.c.h.b16 %v3812
      %v3897 = vunpack.c.l.b16 %v3813
      %v3898 = vunpack.c.h.b16 %v3813
      %v3899 = vunpack.c.l.b16 %v3814
      %v3900 = vunpack.c.h.b16 %v3814
      %v3901 = vunpack.c.l.b16 %v3815
      %v3902 = vunpack.c.h.b16 %v3815
      %v3903 = vunpack.c.l.b16 %v3816
      %v3904 = vunpack.c.h.b16 %v3816
      %v3905 = vunpack.c.l.b16 %v3817
      %v3906 = vunpack.c.h.b16 %v3817
      %v3907 = vunpack.c.l.b16 %v3818
      %v3908 = vunpack.c.h.b16 %v3818
      %v3909 = vunpack.c.l.b16 %v3819
      %v3910 = vunpack.c.h.b16 %v3819
      %v3911 = vunpack.c.l.b16 %v3820
      %v3912 = vunpack.c.h.b16 %v3820
      %v3913 = vunpack.c.l.b16 %v3821
      %v3914 = vunpack.c.h.b16 %v3821
      %v3915 = vunpack.c.l.b16 %v3822
      %v3916 = vunpack.c.h.b16 %v3822
      %v3917 = vunpack.c.l.b16 %v3823
      %v3918 = vunpack.c.h.b16 %v3823
      %v3919 = vunpack.c.l.b16 %v3824
      %v3920 = vunpack.c.h.b16 %v3824
      %v3921 = vpack.c.b16 %v3859, %v3857
      %v3922 = vpack.c.b16 %v3860, %v3858
      %v3923 = vpack.c.b16 %v3863, %v3861
      %v3924 = vpack.c.b16 %v3864, %v3862
      %v3925 = vpack.c.b16 %v3867, %v3865
      %v3926 = vpack.c.b16 %v3868, %v3866
      %v3927 = vpack.c.b16 %v3871, %v3869
      %v3928 = vpack.c.b16 %v3872, %v3870
      %v3929 = vpack.c.b16 %v3875, %v3873
      %v3930 = vpack.c.b16 %v3876, %v3874
      %v3931 = vpack.c.b16 %v3879, %v3877
      %v3932 = vpack.c.b16 %v3880, %v3878
      %v3933 = vpack.c.b16 %v3883, %v3881
      %v3934 = vpack.c.b16 %v3884, %v3882
      %v3935 = vpack.c.b16 %v3887, %v3885
      %v3936 = vpack.c.b16 %v3888, %v3886
      %v3937 = vpack.c.b16 %v3891, %v3889
      %v3938 = vpack.c.b16 %v3892, %v3890
      %v3939 = vpack.c.b16 %v3895, %v3893
      %v3940 = vpack.c.b16 %v3896, %v3894
      %v3941 = vpack.c.b16 %v3899, %v3897
      %v3942 = vpack.c.b16 %v3900, %v3898
      %v3943 = vpack.c.b16 %v3903, %v3901
      %v3944 = vpack.c.b16 %v3904, %v3902
      %v3945 = vpack.c.b16 %v3907, %v3905
      %v3946 = vpack.c.b16 %v3908, %v3906
      %v3947 = vpack.c.b16 %v3911, %v3909
      %v3948 = vpack.c.b16 %v3912, %v3910
      %v3949 = vpack.c.b16 %v3915, %v3913
      %v3950 = vpack.c.b16 %v3916, %v3914
      %v3951 = vpack.c.b16 %v3919, %v3917
      %v3952 = vpack.c.b16 %v3920, %v3918
      %v4017 = vunpack.c.l.b16 %v3761
      %v4018 = vunpack.c.l.b16 %v3762
      %v4019 = vunpack.c.l.b16 %v3763
      %v4020 = vunpack.c.l.b16 %v3764
      %v4021 = vunpack.c.l.b16 %v3765
      %v4022 = vunpack.c.l.b16 %v3766
      %v4023 = vunpack.c.l.b16 %v3767
      %v4024 = vunpack.c.l.b16 %v3768
      %v4025 = vunpack.c.l.b16 %v3769
      %v4026 = vunpack.c.l.b16 %v3770
      %v4027 = vunpack.c.l.b16 %v3771
      %v4028 = vunpack.c.l.b16 %v3772
      %v4029 = vunpack.c.l.b16 %v3773
      %v4030 = vunpack.c.l.b16 %v3774
      %v4031 = vunpack.c.l.b16 %v3775
      %v4032 = vunpack.c.l.b16 %v3776
      %v4033 = vunpack.c.l.b16 %v3777
      %v4034 = vunpack.c.l.b16 %v3778
      %v4035 = vunpack.c.l.b16 %v3779
      %v4036 = vunpack.c.l.b16 %v3780
      %v4037 = vunpack.c.l.b16 %v3781
      %v4038 = vunpack.c.l.b16 %v3782
      %v4039 = vunpack.c.l.b16 %v3783
      %v4040 = vunpack.c.l.b16 %v3784
      %v4041 = vunpack.c.l.b16 %v3785
      %v4042 = vunpack.c.l.b16 %v3786
      %v4043 = vunpack.c.l.b16 %v3787
      %v4044 = vunpack.c.l.b16 %v3788
      %v4045 = vunpack.c.l.b16 %v3789
      %v4046 = vunpack.c.l.b16 %v3790
      %v4047 = vunpack.c.l.b16 %v3791
      %v4048 = vunpack.c.l.b16 %v3792
      %v4049 = vpack.c.b16 %v4018, %v4017
      %v4050 = vpack.c.b16 %v4020, %v4019
      %v4051 = vpack.c.b16 %v4022, %v4021
      %v4052 = vpack.c.b16 %v4024, %v4023
      %v4053 = vpack.c.b16 %v4026, %v4025
      %v4054 = vpack.c.b16 %v4028, %v4027
      %v4055 = vpack.c.b16 %v4030, %v4029
      %v4056 = vpack.c.b16 %v4032, %v4031
      %v4057 = vpack.c.b16 %v4034, %v4033
      %v4058 = vpack.c.b16 %v4036, %v4035
      %v4059 = vpack.c.b16 %v4038, %v4037
      %v4060 = vpack.c.b16 %v4040, %v4039
      %v4061 = vpack.c.b16 %v4042, %v4041
      %v4062 = vpack.c.b16 %v4044, %v4043
      %v4063 = vpack.c.b16 %v4046, %v4045
      %v4064 = vpack.c.b16 %v4048, %v4047
      %4081 = vmatprep.subr.bf16.mxu0 0
      %4082 = vmatpush1.bf16.msra.mxu0 %v4056
      %4083 = vmatprep.subr.bf16.mxu0 0
      %4084 = vmatpush1.bf16.msra.mxu0 %v4055
      %4085 = vmatprep.subr.bf16.mxu0 0
      %4086 = vmatpush1.bf16.msra.mxu0 %v4054
      %4087 = vmatprep.subr.bf16.mxu0 0
      %4088 = vmatpush1.bf16.msra.mxu0 %v4053
      %4089 = vmatprep.subr.bf16.mxu0 0
      %4090 = vmatpush1.bf16.msra.mxu0 %v4052
      %4091 = vmatprep.subr.bf16.mxu0 0
      %4092 = vmatpush1.bf16.msra.mxu0 %v4051
      %4093 = vmatprep.subr.bf16.mxu0 0
      %4094 = vmatpush1.bf16.msra.mxu0 %v4050
      %4095 = vmatprep.subr.bf16.mxu0 0
      %4096 = vmatpush1.bf16.msra.mxu0 %v4049
      %4097 = vmatprep.subr.bf16.mxu0 0
      %4098 = vmatpush2.bf16.msra.mxu0 %v4064
      %4099 = vmatprep.subr.bf16.mxu0 0
      %4100 = vmatpush2.bf16.msra.mxu0 %v4063
      %4101 = vmatprep.subr.bf16.mxu0 0
      %4102 = vmatpush2.bf16.msra.mxu0 %v4062
      %4103 = vmatprep.subr.bf16.mxu0 0
      %4104 = vmatpush2.bf16.msra.mxu0 %v4061
      %4105 = vmatprep.subr.bf16.mxu0 0
      %4106 = vmatpush2.bf16.msra.mxu0 %v4060
      %4107 = vmatprep.subr.bf16.mxu0 0
      %4108 = vmatpush2.bf16.msra.mxu0 %v4059
      %4109 = vmatprep.subr.bf16.mxu0 0
      %4110 = vmatpush2.bf16.msra.mxu0 %v4058
      %4111 = vmatprep.subr.bf16.mxu0 0
      %4112 = vmatpush2.bf16.msra.mxu0 %v4057
      %4113 = vmatprep.mubr.bf16.mxu0 %v3922
      %4114 = vmatmul.mubr.bf16.gmra.mxu0 %v3921
      %v4115 = vpop.f32.mrf.mxu0
      %v4116 = vadd.f32 0.0, %v4115
      %v4117 = vpop.f32.mrf.mxu0
      %v4118 = vpop.f32.mrf.mxu0
      %v4119 = vadd.f32 0.0, %v4118
      %v4120 = vpop.f32.mrf.mxu0
      %4121 = vmatprep.mubr.bf16.mxu0 %v3924
      %4122 = vmatmul.mubr.bf16.gmra.mxu0 %v3923
      %v4123 = vpop.f32.mrf.mxu0
      %v4124 = vadd.f32 0.0, %v4123
      %v4125 = vpop.f32.mrf.mxu0
      %v4126 = vpop.f32.mrf.mxu0
      %v4127 = vadd.f32 0.0, %v4126
      %v4128 = vpop.f32.mrf.mxu0
      %4129 = vmatprep.mubr.bf16.mxu0 %v3926
      %4130 = vmatmul.mubr.bf16.gmra.mxu0 %v3925
      %v4131 = vpop.f32.mrf.mxu0
      %v4132 = vadd.f32 0.0, %v4131
      %v4133 = vpop.f32.mrf.mxu0
      %v4134 = vpop.f32.mrf.mxu0
      %v4135 = vadd.f32 0.0, %v4134
      %v4136 = vpop.f32.mrf.mxu0
      %4137 = vmatprep.mubr.bf16.mxu0 %v3928
      %4138 = vmatmul.mubr.bf16.gmra.mxu0 %v3927
      %v4139 = vpop.f32.mrf.mxu0
      %v4140 = vadd.f32 0.0, %v4139
      %v4141 = vpop.f32.mrf.mxu0
      %v4142 = vpop.f32.mrf.mxu0
      %v4143 = vadd.f32 0.0, %v4142
      %v4144 = vpop.f32.mrf.mxu0
      %4145 = vmatprep.mubr.bf16.mxu0 %v3930
      %4146 = vmatmul.mubr.bf16.gmra.mxu0 %v3929
      %v4147 = vpop.f32.mrf.mxu0
      %v4148 = vadd.f32 0.0, %v4147
      %v4149 = vpop.f32.mrf.mxu0
      %v4150 = vpop.f32.mrf.mxu0
      %v4151 = vadd.f32 0.0, %v4150
      %v4152 = vpop.f32.mrf.mxu0
      %4153 = vmatprep.mubr.bf16.mxu0 %v3932
      %4154 = vmatmul.mubr.bf16.gmra.mxu0 %v3931
      %v4155 = vpop.f32.mrf.mxu0
      %v4156 = vadd.f32 0.0, %v4155
      %v4157 = vpop.f32.mrf.mxu0
      %v4158 = vpop.f32.mrf.mxu0
      %v4159 = vadd.f32 0.0, %v4158
      %v4160 = vpop.f32.mrf.mxu0
      %4161 = vmatprep.mubr.bf16.mxu0 %v3934
      %4162 = vmatmul.mubr.bf16.gmra.mxu0 %v3933
      %v4163 = vpop.f32.mrf.mxu0
      %v4164 = vadd.f32 0.0, %v4163
      %v4165 = vpop.f32.mrf.mxu0
      %v4166 = vpop.f32.mrf.mxu0
      %v4167 = vadd.f32 0.0, %v4166
      %v4168 = vpop.f32.mrf.mxu0
      %4169 = vmatprep.mubr.bf16.mxu0 %v3936
      %4170 = vmatmul.mubr.bf16.gmra.mxu0 %v3935
      %v4171 = vpop.f32.mrf.mxu0
      %v4172 = vadd.f32 0.0, %v4171
      %v4173 = vpop.f32.mrf.mxu0
      %v4174 = vpop.f32.mrf.mxu0
      %v4175 = vadd.f32 0.0, %v4174
      %v4176 = vpop.f32.mrf.mxu0
      %4177 = vmatprep.mubr.bf16.mxu0 %v3938
      %4178 = vmatmul.mubr.bf16.gmra.mxu0 %v3937
      %v4179 = vpop.f32.mrf.mxu0
      %v4180 = vadd.f32 0.0, %v4179
      %v4181 = vpop.f32.mrf.mxu0
      %v4182 = vpop.f32.mrf.mxu0
      %v4183 = vadd.f32 0.0, %v4182
      %v4184 = vpop.f32.mrf.mxu0
      %4185 = vmatprep.mubr.bf16.mxu0 %v3940
      %4186 = vmatmul.mubr.bf16.gmra.mxu0 %v3939
      %v4187 = vpop.f32.mrf.mxu0
      %v4188 = vadd.f32 0.0, %v4187
      %v4189 = vpop.f32.mrf.mxu0
      %v4190 = vpop.f32.mrf.mxu0
      %v4191 = vadd.f32 0.0, %v4190
      %v4192 = vpop.f32.mrf.mxu0
      %4193 = vmatprep.mubr.bf16.mxu0 %v3942
      %4194 = vmatmul.mubr.bf16.gmra.mxu0 %v3941
      %v4195 = vpop.f32.mrf.mxu0
      %v4196 = vadd.f32 0.0, %v4195
      %v4197 = vpop.f32.mrf.mxu0
      %v4198 = vpop.f32.mrf.mxu0
      %v4199 = vadd.f32 0.0, %v4198
      %v4200 = vpop.f32.mrf.mxu0
      %4201 = vmatprep.mubr.bf16.mxu0 %v3944
      %4202 = vmatmul.mubr.bf16.gmra.mxu0 %v3943
      %v4203 = vpop.f32.mrf.mxu0
      %v4204 = vadd.f32 0.0, %v4203
      %v4205 = vpop.f32.mrf.mxu0
      %v4206 = vpop.f32.mrf.mxu0
      %v4207 = vadd.f32 0.0, %v4206
      %v4208 = vpop.f32.mrf.mxu0
      %4209 = vmatprep.mubr.bf16.mxu0 %v3946
      %4210 = vmatmul.mubr.bf16.gmra.mxu0 %v3945
      %v4211 = vpop.f32.mrf.mxu0
      %v4212 = vadd.f32 0.0, %v4211
      %v4213 = vpop.f32.mrf.mxu0
      %v4214 = vpop.f32.mrf.mxu0
      %v4215 = vadd.f32 0.0, %v4214
      %v4216 = vpop.f32.mrf.mxu0
      %4217 = vmatprep.mubr.bf16.mxu0 %v3948
      %4218 = vmatmul.mubr.bf16.gmra.mxu0 %v3947
      %v4219 = vpop.f32.mrf.mxu0
      %v4220 = vadd.f32 0.0, %v4219
      %v4221 = vpop.f32.mrf.mxu0
      %v4222 = vpop.f32.mrf.mxu0
      %v4223 = vadd.f32 0.0, %v4222
      %v4224 = vpop.f32.mrf.mxu0
      %4225 = vmatprep.mubr.bf16.mxu0 %v3950
      %4226 = vmatmul.mubr.bf16.gmra.mxu0 %v3949
      %v4227 = vpop.f32.mrf.mxu0
      %v4228 = vadd.f32 0.0, %v4227
      %v4229 = vpop.f32.mrf.mxu0
      %v4230 = vpop.f32.mrf.mxu0
      %v4231 = vadd.f32 0.0, %v4230
      %v4232 = vpop.f32.mrf.mxu0
      %4233 = vmatprep.mubr.bf16.mxu0 %v3952
      %4234 = vmatmul.mubr.bf16.gmra.mxu0 %v3951
      %v4235 = vpop.f32.mrf.mxu0
      %v4236 = vadd.f32 0.0, %v4235
      %v4237 = vpop.f32.mrf.mxu0
      %v4238 = vpop.f32.mrf.mxu0
      %v4239 = vadd.f32 0.0, %v4238
      %v4240 = vpop.f32.mrf.mxu0
      %4241 = vdwg.mxu0
      %v4242 = vtanh.pop %v4116
      %v4243 = vtanh.pop %v4119
      %v4244 = vtanh.pop %v4124
      %v4245 = vtanh.pop %v4127
      %v4246 = vtanh.pop %v4132
      %v4247 = vtanh.pop %v4135
      %v4248 = vtanh.pop %v4140
      %v4249 = vtanh.pop %v4143
      %v4250 = vtanh.pop %v4148
      %v4251 = vtanh.pop %v4151
      %v4252 = vtanh.pop %v4156
      %v4253 = vtanh.pop %v4159
      %v4254 = vtanh.pop %v4164
      %v4255 = vtanh.pop %v4167
      %v4256 = vtanh.pop %v4172
      %v4257 = vtanh.pop %v4175
      %v4258 = vtanh.pop %v4180
      %v4259 = vtanh.pop %v4183
      %v4260 = vtanh.pop %v4188
      %v4261 = vtanh.pop %v4191
      %v4262 = vtanh.pop %v4196
      %v4263 = vtanh.pop %v4199
      %v4264 = vtanh.pop %v4204
      %v4265 = vtanh.pop %v4207
      %v4266 = vtanh.pop %v4212
      %v4267 = vtanh.pop %v4215
      %v4268 = vtanh.pop %v4220
      %v4269 = vtanh.pop %v4223
      %v4270 = vtanh.pop %v4228
      %v4271 = vtanh.pop %v4231
      %v4272 = vtanh.pop %v4236
      %v4273 = vtanh.pop %v4239
      %v4275 = vlaneseq
      %v4276 = vshrl.u32 %v4275, 7
      %v4277 = vsub.s32 0, %v4276
      %v4278 = vrot.slane %v63, %v4277
      %v4279 = vlaneseq
      %v4280 = vshrl.u32 %v4279, 7
      %v4281 = vsub.s32 1, %v4280
      %v4282 = vrot.slane %v63, %v4281
      %4285 = vmatprep.subr.mxu0 0.0
      %4286 = vmatpush1.msra.mxu0 %v4257
      %4287 = vmatprep.subr.mxu0 0.0
      %4288 = vmatpush1.msra.mxu0 %v4256
      %4289 = vmatprep.subr.mxu0 0.0
      %4290 = vmatpush1.msra.mxu0 %v4255
      %4291 = vmatprep.subr.mxu0 0.0
      %4292 = vmatpush1.msra.mxu0 %v4254
      %4293 = vmatprep.subr.mxu0 0.0
      %4294 = vmatpush1.msra.mxu0 %v4253
      %4295 = vmatprep.subr.mxu0 0.0
      %4296 = vmatpush1.msra.mxu0 %v4252
      %4297 = vmatprep.subr.mxu0 0.0
      %4298 = vmatpush1.msra.mxu0 %v4251
      %4299 = vmatprep.subr.mxu0 0.0
      %4300 = vmatpush1.msra.mxu0 %v4250
      %4301 = vmatprep.subr.mxu0 0.0
      %4302 = vmatpush1.msra.mxu0 %v4249
      %4303 = vmatprep.subr.mxu0 0.0
      %4304 = vmatpush1.msra.mxu0 %v4248
      %4305 = vmatprep.subr.mxu0 0.0
      %4306 = vmatpush1.msra.mxu0 %v4247
      %4307 = vmatprep.subr.mxu0 0.0
      %4308 = vmatpush1.msra.mxu0 %v4246
      %4309 = vmatprep.subr.mxu0 0.0
      %4310 = vmatpush1.msra.mxu0 %v4245
      %4311 = vmatprep.subr.mxu0 0.0
      %4312 = vmatpush1.msra.mxu0 %v4244
      %4313 = vmatprep.subr.mxu0 0.0
      %4314 = vmatpush1.msra.mxu0 %v4243
      %4315 = vmatprep.subr.mxu0 0.0
      %4316 = vmatpush1.msra.mxu0 %v4242
      %4317 = vmatprep.subr.mxu0 0.0
      %4318 = vmatpush2.msra.mxu0 %v4273
      %4319 = vmatprep.subr.mxu0 0.0
      %4320 = vmatpush2.msra.mxu0 %v4272
      %4321 = vmatprep.subr.mxu0 0.0
      %4322 = vmatpush2.msra.mxu0 %v4271
      %4323 = vmatprep.subr.mxu0 0.0
      %4324 = vmatpush2.msra.mxu0 %v4270
      %4325 = vmatprep.subr.mxu0 0.0
      %4326 = vmatpush2.msra.mxu0 %v4269
      %4327 = vmatprep.subr.mxu0 0.0
      %4328 = vmatpush2.msra.mxu0 %v4268
      %4329 = vmatprep.subr.mxu0 0.0
      %4330 = vmatpush2.msra.mxu0 %v4267
      %4331 = vmatprep.subr.mxu0 0.0
      %4332 = vmatpush2.msra.mxu0 %v4266
      %4333 = vmatprep.subr.mxu0 0.0
      %4334 = vmatpush2.msra.mxu0 %v4265
      %4335 = vmatprep.subr.mxu0 0.0
      %4336 = vmatpush2.msra.mxu0 %v4264
      %4337 = vmatprep.subr.mxu0 0.0
      %4338 = vmatpush2.msra.mxu0 %v4263
      %4339 = vmatprep.subr.mxu0 0.0
      %4340 = vmatpush2.msra.mxu0 %v4262
      %4341 = vmatprep.subr.mxu0 0.0
      %4342 = vmatpush2.msra.mxu0 %v4261
      %4343 = vmatprep.subr.mxu0 0.0
      %4344 = vmatpush2.msra.mxu0 %v4260
      %4345 = vmatprep.subr.mxu0 0.0
      %4346 = vmatpush2.msra.mxu0 %v4259
      %4347 = vmatprep.subr.mxu0 0.0
      %4348 = vmatpush2.msra.mxu0 %v4258
      %4349 = vmatprep.mubr.f32.mxu0 %v4282
      %4350 = vmatmul.mubr.f32.gmra.mxu0 %v4278
      %v4351 = vpop.f32.mrf.mxu0
      %v4352 = vadd.f32 0.0, %v4351
      %v4353 = vpop.f32.mrf.mxu0
      %4354 = vdwg.mxu0
      %v4355 = vmul.f32 %v4352, 0.0625
      %vm4356 = vcmask 1040384
      %v4357 = vsel %vm4356, %v4355, -inf
      %4358 = vmax.xlane.f32.xlu0 %v4357
      %v4359 = vpop.xlane.xlu0 %4358
      %v4360 = vsub.f32 %v4355, %v4359
      %v4361 = vmul.f32 %v4360, 1.442695
      %v4362 = vpow.pop %v4361
      %v4363 = vsel %vm4356, %v4362, 0.0
      %4364 = vadd.xlane.f32.xlu0 %v4363
      %v4365 = vpop.xlane.xlu0 %4364
      %v4366 = vrcp.pop %v4365
      %v4367 = vmul.f32 %v4362, %v4366
      %v4368 = vunpack.c.l.bf16 %v3761
      %v4369 = vunpack.c.l.bf16 %v3762
      %v4370 = vunpack.c.l.bf16 %v3763
      %v4371 = vunpack.c.l.bf16 %v3764
      %v4372 = vunpack.c.l.bf16 %v3765
      %v4373 = vunpack.c.l.bf16 %v3766
      %v4374 = vunpack.c.l.bf16 %v3767
      %v4375 = vunpack.c.l.bf16 %v3768
      %v4376 = vunpack.c.l.bf16 %v3769
      %v4377 = vunpack.c.l.bf16 %v3770
      %v4378 = vunpack.c.l.bf16 %v3771
      %v4379 = vunpack.c.l.bf16 %v3772
      %v4380 = vunpack.c.l.bf16 %v3773
      %v4381 = vunpack.c.l.bf16 %v3774
      %v4382 = vunpack.c.l.bf16 %v3775
      %v4383 = vunpack.c.l.bf16 %v3776
      %v4384 = vunpack.c.l.bf16 %v3777
      %v4385 = vunpack.c.l.bf16 %v3778
      %v4386 = vunpack.c.l.bf16 %v3779
      %v4387 = vunpack.c.l.bf16 %v3780
      %v4388 = vunpack.c.l.bf16 %v3781
      %v4389 = vunpack.c.l.bf16 %v3782
      %v4390 = vunpack.c.l.bf16 %v3783
      %v4391 = vunpack.c.l.bf16 %v3784
      %v4392 = vunpack.c.l.bf16 %v3785
      %v4393 = vunpack.c.l.bf16 %v3786
      %v4394 = vunpack.c.l.bf16 %v3787
      %v4395 = vunpack.c.l.bf16 %v3788
      %v4396 = vunpack.c.l.bf16 %v3789
      %v4397 = vunpack.c.l.bf16 %v3790
      %v4398 = vunpack.c.l.bf16 %v3791
      %v4399 = vunpack.c.l.bf16 %v3792
      %v4400 = vlaneseq
      %v4401 = vshrl.u32 %v4400, 7
      %v4402 = vsub.s32 0, %v4401
      %v4403 = vrot.slane %v4367, %v4402
      %v4404 = vmul.f32 %v4368, %v4403
      %v4405 = vmul.f32 %v4369, %v4403
      %v4406 = vmul.f32 %v4370, %v4403
      %v4407 = vmul.f32 %v4371, %v4403
      %v4408 = vmul.f32 %v4372, %v4403
      %v4409 = vmul.f32 %v4373, %v4403
      %v4410 = vmul.f32 %v4374, %v4403
      %v4411 = vmul.f32 %v4375, %v4403
      %v4412 = vmul.f32 %v4376, %v4403
      %v4413 = vmul.f32 %v4377, %v4403
      %v4414 = vmul.f32 %v4378, %v4403
      %v4415 = vmul.f32 %v4379, %v4403
      %v4416 = vmul.f32 %v4380, %v4403
      %v4417 = vmul.f32 %v4381, %v4403
      %v4418 = vmul.f32 %v4382, %v4403
      %v4419 = vmul.f32 %v4383, %v4403
      %v4420 = vmul.f32 %v4384, %v4403
      %v4421 = vmul.f32 %v4385, %v4403
      %v4422 = vmul.f32 %v4386, %v4403
      %v4423 = vmul.f32 %v4387, %v4403
      %v4424 = vmul.f32 %v4388, %v4403
      %v4425 = vmul.f32 %v4389, %v4403
      %v4426 = vmul.f32 %v4390, %v4403
      %v4427 = vmul.f32 %v4391, %v4403
      %v4428 = vmul.f32 %v4392, %v4403
      %v4429 = vmul.f32 %v4393, %v4403
      %v4430 = vmul.f32 %v4394, %v4403
      %v4431 = vmul.f32 %v4395, %v4403
      %v4432 = vmul.f32 %v4396, %v4403
      %v4433 = vmul.f32 %v4397, %v4403
      %v4434 = vmul.f32 %v4398, %v4403
      %v4435 = vmul.f32 %v4399, %v4403
      %4436 = vadd.xlane.f32.xlu0 %v4404
      %v4437 = vpop.xlane.xlu0 %4436
      %4438 = vadd.xlane.f32.xlu0 %v4405
      %v4439 = vpop.xlane.xlu0 %4438
      %4440 = vadd.xlane.f32.xlu0 %v4406
      %v4441 = vpop.xlane.xlu0 %4440
      %4442 = vadd.xlane.f32.xlu0 %v4407
      %v4443 = vpop.xlane.xlu0 %4442
      %4444 = vadd.xlane.f32.xlu0 %v4408
      %v4445 = vpop.xlane.xlu0 %4444
      %4446 = vadd.xlane.f32.xlu0 %v4409
      %v4447 = vpop.xlane.xlu0 %4446
      %4448 = vadd.xlane.f32.xlu0 %v4410
      %v4449 = vpop.xlane.xlu0 %4448
      %4450 = vadd.xlane.f32.xlu0 %v4411
      %v4451 = vpop.xlane.xlu0 %4450
      %4452 = vadd.xlane.f32.xlu0 %v4412
      %v4453 = vpop.xlane.xlu0 %4452
      %4454 = vadd.xlane.f32.xlu0 %v4413
      %v4455 = vpop.xlane.xlu0 %4454
      %4456 = vadd.xlane.f32.xlu0 %v4414
      %v4457 = vpop.xlane.xlu0 %4456
      %4458 = vadd.xlane.f32.xlu0 %v4415
      %v4459 = vpop.xlane.xlu0 %4458
      %4460 = vadd.xlane.f32.xlu0 %v4416
      %v4461 = vpop.xlane.xlu0 %4460
      %4462 = vadd.xlane.f32.xlu0 %v4417
      %v4463 = vpop.xlane.xlu0 %4462
      %4464 = vadd.xlane.f32.xlu0 %v4418
      %v4465 = vpop.xlane.xlu0 %4464
      %4466 = vadd.xlane.f32.xlu0 %v4419
      %v4467 = vpop.xlane.xlu0 %4466
      %4468 = vadd.xlane.f32.xlu0 %v4420
      %v4469 = vpop.xlane.xlu0 %4468
      %4470 = vadd.xlane.f32.xlu0 %v4421
      %v4471 = vpop.xlane.xlu0 %4470
      %4472 = vadd.xlane.f32.xlu0 %v4422
      %v4473 = vpop.xlane.xlu0 %4472
      %4474 = vadd.xlane.f32.xlu0 %v4423
      %v4475 = vpop.xlane.xlu0 %4474
      %4476 = vadd.xlane.f32.xlu0 %v4424
      %v4477 = vpop.xlane.xlu0 %4476
      %4478 = vadd.xlane.f32.xlu0 %v4425
      %v4479 = vpop.xlane.xlu0 %4478
      %4480 = vadd.xlane.f32.xlu0 %v4426
      %v4481 = vpop.xlane.xlu0 %4480
      %4482 = vadd.xlane.f32.xlu0 %v4427
      %v4483 = vpop.xlane.xlu0 %4482
      %4484 = vadd.xlane.f32.xlu0 %v4428
      %v4485 = vpop.xlane.xlu0 %4484
      %4486 = vadd.xlane.f32.xlu0 %v4429
      %v4487 = vpop.xlane.xlu0 %4486
      %4488 = vadd.xlane.f32.xlu0 %v4430
      %v4489 = vpop.xlane.xlu0 %4488
      %4490 = vadd.xlane.f32.xlu0 %v4431
      %v4491 = vpop.xlane.xlu0 %4490
      %4492 = vadd.xlane.f32.xlu0 %v4432
      %v4493 = vpop.xlane.xlu0 %4492
      %4494 = vadd.xlane.f32.xlu0 %v4433
      %v4495 = vpop.xlane.xlu0 %4494
      %4496 = vadd.xlane.f32.xlu0 %v4434
      %v4497 = vpop.xlane.xlu0 %4496
      %4498 = vadd.xlane.f32.xlu0 %v4435
      %v4499 = vpop.xlane.xlu0 %4498
      %v4532 = vlaneseq
      %v4533 = vshrl.u32 %v4532, 7
      %v4534 = vsub.s32 0, %v4533
      %v4535 = vrot.slane %v4437, %v4534
      %v4536 = vlaneseq
      %v4537 = vshrl.u32 %v4536, 7
      %v4538 = vsub.s32 1, %v4537
      %v4539 = vrot.slane %v4437, %v4538
      %v4540 = vlaneseq
      %v4541 = vshrl.u32 %v4540, 7
      %v4542 = vsub.s32 2, %v4541
      %v4543 = vrot.slane %v4437, %v4542
      %v4544 = vlaneseq
      %v4545 = vshrl.u32 %v4544, 7
      %v4546 = vsub.s32 3, %v4545
      %v4547 = vrot.slane %v4437, %v4546
      %v4548 = vlaneseq
      %v4549 = vshrl.u32 %v4548, 7
      %v4550 = vsub.s32 4, %v4549
      %v4551 = vrot.slane %v4437, %v4550
      %v4552 = vlaneseq
      %v4553 = vshrl.u32 %v4552, 7
      %v4554 = vsub.s32 5, %v4553
      %v4555 = vrot.slane %v4437, %v4554
      %v4556 = vlaneseq
      %v4557 = vshrl.u32 %v4556, 7
      %v4558 = vsub.s32 6, %v4557
      %v4559 = vrot.slane %v4437, %v4558
      %v4560 = vlaneseq
      %v4561 = vshrl.u32 %v4560, 7
      %v4562 = vsub.s32 7, %v4561
      %v4563 = vrot.slane %v4437, %v4562
      %v4564 = vlaneseq
      %v4565 = vshrl.u32 %v4564, 7
      %v4566 = vsub.s32 0, %v4565
      %v4567 = vrot.slane %v4439, %v4566
      %v4568 = vlaneseq
      %v4569 = vshrl.u32 %v4568, 7
      %v4570 = vsub.s32 1, %v4569
      %v4571 = vrot.slane %v4439, %v4570
      %v4572 = vlaneseq
      %v4573 = vshrl.u32 %v4572, 7
      %v4574 = vsub.s32 2, %v4573
      %v4575 = vrot.slane %v4439, %v4574
      %v4576 = vlaneseq
      %v4577 = vshrl.u32 %v4576, 7
      %v4578 = vsub.s32 3, %v4577
      %v4579 = vrot.slane %v4439, %v4578
      %v4580 = vlaneseq
      %v4581 = vshrl.u32 %v4580, 7
      %v4582 = vsub.s32 4, %v4581
      %v4583 = vrot.slane %v4439, %v4582
      %v4584 = vlaneseq
      %v4585 = vshrl.u32 %v4584, 7
      %v4586 = vsub.s32 5, %v4585
      %v4587 = vrot.slane %v4439, %v4586
      %v4588 = vlaneseq
      %v4589 = vshrl.u32 %v4588, 7
      %v4590 = vsub.s32 6, %v4589
      %v4591 = vrot.slane %v4439, %v4590
      %v4592 = vlaneseq
      %v4593 = vshrl.u32 %v4592, 7
      %v4594 = vsub.s32 7, %v4593
      %v4595 = vrot.slane %v4439, %v4594
      %v4596 = vlaneseq
      %v4597 = vshrl.u32 %v4596, 7
      %v4598 = vsub.s32 0, %v4597
      %v4599 = vrot.slane %v4441, %v4598
      %v4600 = vlaneseq
      %v4601 = vshrl.u32 %v4600, 7
      %v4602 = vsub.s32 1, %v4601
      %v4603 = vrot.slane %v4441, %v4602
      %v4604 = vlaneseq
      %v4605 = vshrl.u32 %v4604, 7
      %v4606 = vsub.s32 2, %v4605
      %v4607 = vrot.slane %v4441, %v4606
      %v4608 = vlaneseq
      %v4609 = vshrl.u32 %v4608, 7
      %v4610 = vsub.s32 3, %v4609
      %v4611 = vrot.slane %v4441, %v4610
      %v4612 = vlaneseq
      %v4613 = vshrl.u32 %v4612, 7
      %v4614 = vsub.s32 4, %v4613
      %v4615 = vrot.slane %v4441, %v4614
      %v4616 = vlaneseq
      %v4617 = vshrl.u32 %v4616, 7
      %v4618 = vsub.s32 5, %v4617
      %v4619 = vrot.slane %v4441, %v4618
      %v4620 = vlaneseq
      %v4621 = vshrl.u32 %v4620, 7
      %v4622 = vsub.s32 6, %v4621
      %v4623 = vrot.slane %v4441, %v4622
      %v4624 = vlaneseq
      %v4625 = vshrl.u32 %v4624, 7
      %v4626 = vsub.s32 7, %v4625
      %v4627 = vrot.slane %v4441, %v4626
      %v4628 = vlaneseq
      %v4629 = vshrl.u32 %v4628, 7
      %v4630 = vsub.s32 0, %v4629
      %v4631 = vrot.slane %v4443, %v4630
      %v4632 = vlaneseq
      %v4633 = vshrl.u32 %v4632, 7
      %v4634 = vsub.s32 1, %v4633
      %v4635 = vrot.slane %v4443, %v4634
      %v4636 = vlaneseq
      %v4637 = vshrl.u32 %v4636, 7
      %v4638 = vsub.s32 2, %v4637
      %v4639 = vrot.slane %v4443, %v4638
      %v4640 = vlaneseq
      %v4641 = vshrl.u32 %v4640, 7
      %v4642 = vsub.s32 3, %v4641
      %v4643 = vrot.slane %v4443, %v4642
      %v4644 = vlaneseq
      %v4645 = vshrl.u32 %v4644, 7
      %v4646 = vsub.s32 4, %v4645
      %v4647 = vrot.slane %v4443, %v4646
      %v4648 = vlaneseq
      %v4649 = vshrl.u32 %v4648, 7
      %v4650 = vsub.s32 5, %v4649
      %v4651 = vrot.slane %v4443, %v4650
      %v4652 = vlaneseq
      %v4653 = vshrl.u32 %v4652, 7
      %v4654 = vsub.s32 6, %v4653
      %v4655 = vrot.slane %v4443, %v4654
      %v4656 = vlaneseq
      %v4657 = vshrl.u32 %v4656, 7
      %v4658 = vsub.s32 7, %v4657
      %v4659 = vrot.slane %v4443, %v4658
      %v4660 = vlaneseq
      %v4661 = vshrl.u32 %v4660, 7
      %v4662 = vsub.s32 0, %v4661
      %v4663 = vrot.slane %v4445, %v4662
      %v4664 = vlaneseq
      %v4665 = vshrl.u32 %v4664, 7
      %v4666 = vsub.s32 1, %v4665
      %v4667 = vrot.slane %v4445, %v4666
      %v4668 = vlaneseq
      %v4669 = vshrl.u32 %v4668, 7
      %v4670 = vsub.s32 2, %v4669
      %v4671 = vrot.slane %v4445, %v4670
      %v4672 = vlaneseq
      %v4673 = vshrl.u32 %v4672, 7
      %v4674 = vsub.s32 3, %v4673
      %v4675 = vrot.slane %v4445, %v4674
      %v4676 = vlaneseq
      %v4677 = vshrl.u32 %v4676, 7
      %v4678 = vsub.s32 4, %v4677
      %v4679 = vrot.slane %v4445, %v4678
      %v4680 = vlaneseq
      %v4681 = vshrl.u32 %v4680, 7
      %v4682 = vsub.s32 5, %v4681
      %v4683 = vrot.slane %v4445, %v4682
      %v4684 = vlaneseq
      %v4685 = vshrl.u32 %v4684, 7
      %v4686 = vsub.s32 6, %v4685
      %v4687 = vrot.slane %v4445, %v4686
      %v4688 = vlaneseq
      %v4689 = vshrl.u32 %v4688, 7
      %v4690 = vsub.s32 7, %v4689
      %v4691 = vrot.slane %v4445, %v4690
      %v4692 = vlaneseq
      %v4693 = vshrl.u32 %v4692, 7
      %v4694 = vsub.s32 0, %v4693
      %v4695 = vrot.slane %v4447, %v4694
      %v4696 = vlaneseq
      %v4697 = vshrl.u32 %v4696, 7
      %v4698 = vsub.s32 1, %v4697
      %v4699 = vrot.slane %v4447, %v4698
      %v4700 = vlaneseq
      %v4701 = vshrl.u32 %v4700, 7
      %v4702 = vsub.s32 2, %v4701
      %v4703 = vrot.slane %v4447, %v4702
      %v4704 = vlaneseq
      %v4705 = vshrl.u32 %v4704, 7
      %v4706 = vsub.s32 3, %v4705
      %v4707 = vrot.slane %v4447, %v4706
      %v4708 = vlaneseq
      %v4709 = vshrl.u32 %v4708, 7
      %v4710 = vsub.s32 4, %v4709
      %v4711 = vrot.slane %v4447, %v4710
      %v4712 = vlaneseq
      %v4713 = vshrl.u32 %v4712, 7
      %v4714 = vsub.s32 5, %v4713
      %v4715 = vrot.slane %v4447, %v4714
      %v4716 = vlaneseq
      %v4717 = vshrl.u32 %v4716, 7
      %v4718 = vsub.s32 6, %v4717
      %v4719 = vrot.slane %v4447, %v4718
      %v4720 = vlaneseq
      %v4721 = vshrl.u32 %v4720, 7
      %v4722 = vsub.s32 7, %v4721
      %v4723 = vrot.slane %v4447, %v4722
      %v4724 = vlaneseq
      %v4725 = vshrl.u32 %v4724, 7
      %v4726 = vsub.s32 0, %v4725
      %v4727 = vrot.slane %v4449, %v4726
      %v4728 = vlaneseq
      %v4729 = vshrl.u32 %v4728, 7
      %v4730 = vsub.s32 1, %v4729
      %v4731 = vrot.slane %v4449, %v4730
      %v4732 = vlaneseq
      %v4733 = vshrl.u32 %v4732, 7
      %v4734 = vsub.s32 2, %v4733
      %v4735 = vrot.slane %v4449, %v4734
      %v4736 = vlaneseq
      %v4737 = vshrl.u32 %v4736, 7
      %v4738 = vsub.s32 3, %v4737
      %v4739 = vrot.slane %v4449, %v4738
      %v4740 = vlaneseq
      %v4741 = vshrl.u32 %v4740, 7
      %v4742 = vsub.s32 4, %v4741
      %v4743 = vrot.slane %v4449, %v4742
      %v4744 = vlaneseq
      %v4745 = vshrl.u32 %v4744, 7
      %v4746 = vsub.s32 5, %v4745
      %v4747 = vrot.slane %v4449, %v4746
      %v4748 = vlaneseq
      %v4749 = vshrl.u32 %v4748, 7
      %v4750 = vsub.s32 6, %v4749
      %v4751 = vrot.slane %v4449, %v4750
      %v4752 = vlaneseq
      %v4753 = vshrl.u32 %v4752, 7
      %v4754 = vsub.s32 7, %v4753
      %v4755 = vrot.slane %v4449, %v4754
      %v4756 = vlaneseq
      %v4757 = vshrl.u32 %v4756, 7
      %v4758 = vsub.s32 0, %v4757
      %v4759 = vrot.slane %v4451, %v4758
      %v4760 = vlaneseq
      %v4761 = vshrl.u32 %v4760, 7
      %v4762 = vsub.s32 1, %v4761
      %v4763 = vrot.slane %v4451, %v4762
      %v4764 = vlaneseq
      %v4765 = vshrl.u32 %v4764, 7
      %v4766 = vsub.s32 2, %v4765
      %v4767 = vrot.slane %v4451, %v4766
      %v4768 = vlaneseq
      %v4769 = vshrl.u32 %v4768, 7
      %v4770 = vsub.s32 3, %v4769
      %v4771 = vrot.slane %v4451, %v4770
      %v4772 = vlaneseq
      %v4773 = vshrl.u32 %v4772, 7
      %v4774 = vsub.s32 4, %v4773
      %v4775 = vrot.slane %v4451, %v4774
      %v4776 = vlaneseq
      %v4777 = vshrl.u32 %v4776, 7
      %v4778 = vsub.s32 5, %v4777
      %v4779 = vrot.slane %v4451, %v4778
      %v4780 = vlaneseq
      %v4781 = vshrl.u32 %v4780, 7
      %v4782 = vsub.s32 6, %v4781
      %v4783 = vrot.slane %v4451, %v4782
      %v4784 = vlaneseq
      %v4785 = vshrl.u32 %v4784, 7
      %v4786 = vsub.s32 7, %v4785
      %v4787 = vrot.slane %v4451, %v4786
      %v4788 = vlaneseq
      %v4789 = vshrl.u32 %v4788, 7
      %v4790 = vsub.s32 0, %v4789
      %v4791 = vrot.slane %v4453, %v4790
      %v4792 = vlaneseq
      %v4793 = vshrl.u32 %v4792, 7
      %v4794 = vsub.s32 1, %v4793
      %v4795 = vrot.slane %v4453, %v4794
      %v4796 = vlaneseq
      %v4797 = vshrl.u32 %v4796, 7
      %v4798 = vsub.s32 2, %v4797
      %v4799 = vrot.slane %v4453, %v4798
      %v4800 = vlaneseq
      %v4801 = vshrl.u32 %v4800, 7
      %v4802 = vsub.s32 3, %v4801
      %v4803 = vrot.slane %v4453, %v4802
      %v4804 = vlaneseq
      %v4805 = vshrl.u32 %v4804, 7
      %v4806 = vsub.s32 4, %v4805
      %v4807 = vrot.slane %v4453, %v4806
      %v4808 = vlaneseq
      %v4809 = vshrl.u32 %v4808, 7
      %v4810 = vsub.s32 5, %v4809
      %v4811 = vrot.slane %v4453, %v4810
      %v4812 = vlaneseq
      %v4813 = vshrl.u32 %v4812, 7
      %v4814 = vsub.s32 6, %v4813
      %v4815 = vrot.slane %v4453, %v4814
      %v4816 = vlaneseq
      %v4817 = vshrl.u32 %v4816, 7
      %v4818 = vsub.s32 7, %v4817
      %v4819 = vrot.slane %v4453, %v4818
      %v4820 = vlaneseq
      %v4821 = vshrl.u32 %v4820, 7
      %v4822 = vsub.s32 0, %v4821
      %v4823 = vrot.slane %v4455, %v4822
      %v4824 = vlaneseq
      %v4825 = vshrl.u32 %v4824, 7
      %v4826 = vsub.s32 1, %v4825
      %v4827 = vrot.slane %v4455, %v4826
      %v4828 = vlaneseq
      %v4829 = vshrl.u32 %v4828, 7
      %v4830 = vsub.s32 2, %v4829
      %v4831 = vrot.slane %v4455, %v4830
      %v4832 = vlaneseq
      %v4833 = vshrl.u32 %v4832, 7
      %v4834 = vsub.s32 3, %v4833
      %v4835 = vrot.slane %v4455, %v4834
      %v4836 = vlaneseq
      %v4837 = vshrl.u32 %v4836, 7
      %v4838 = vsub.s32 4, %v4837
      %v4839 = vrot.slane %v4455, %v4838
      %v4840 = vlaneseq
      %v4841 = vshrl.u32 %v4840, 7
      %v4842 = vsub.s32 5, %v4841
      %v4843 = vrot.slane %v4455, %v4842
      %v4844 = vlaneseq
      %v4845 = vshrl.u32 %v4844, 7
      %v4846 = vsub.s32 6, %v4845
      %v4847 = vrot.slane %v4455, %v4846
      %v4848 = vlaneseq
      %v4849 = vshrl.u32 %v4848, 7
      %v4850 = vsub.s32 7, %v4849
      %v4851 = vrot.slane %v4455, %v4850
      %v4852 = vlaneseq
      %v4853 = vshrl.u32 %v4852, 7
      %v4854 = vsub.s32 0, %v4853
      %v4855 = vrot.slane %v4457, %v4854
      %v4856 = vlaneseq
      %v4857 = vshrl.u32 %v4856, 7
      %v4858 = vsub.s32 1, %v4857
      %v4859 = vrot.slane %v4457, %v4858
      %v4860 = vlaneseq
      %v4861 = vshrl.u32 %v4860, 7
      %v4862 = vsub.s32 2, %v4861
      %v4863 = vrot.slane %v4457, %v4862
      %v4864 = vlaneseq
      %v4865 = vshrl.u32 %v4864, 7
      %v4866 = vsub.s32 3, %v4865
      %v4867 = vrot.slane %v4457, %v4866
      %v4868 = vlaneseq
      %v4869 = vshrl.u32 %v4868, 7
      %v4870 = vsub.s32 4, %v4869
      %v4871 = vrot.slane %v4457, %v4870
      %v4872 = vlaneseq
      %v4873 = vshrl.u32 %v4872, 7
      %v4874 = vsub.s32 5, %v4873
      %v4875 = vrot.slane %v4457, %v4874
      %v4876 = vlaneseq
      %v4877 = vshrl.u32 %v4876, 7
      %v4878 = vsub.s32 6, %v4877
      %v4879 = vrot.slane %v4457, %v4878
      %v4880 = vlaneseq
      %v4881 = vshrl.u32 %v4880, 7
      %v4882 = vsub.s32 7, %v4881
      %v4883 = vrot.slane %v4457, %v4882
      %v4884 = vlaneseq
      %v4885 = vshrl.u32 %v4884, 7
      %v4886 = vsub.s32 0, %v4885
      %v4887 = vrot.slane %v4459, %v4886
      %v4888 = vlaneseq
      %v4889 = vshrl.u32 %v4888, 7
      %v4890 = vsub.s32 1, %v4889
      %v4891 = vrot.slane %v4459, %v4890
      %v4892 = vlaneseq
      %v4893 = vshrl.u32 %v4892, 7
      %v4894 = vsub.s32 2, %v4893
      %v4895 = vrot.slane %v4459, %v4894
      %v4896 = vlaneseq
      %v4897 = vshrl.u32 %v4896, 7
      %v4898 = vsub.s32 3, %v4897
      %v4899 = vrot.slane %v4459, %v4898
      %v4900 = vlaneseq
      %v4901 = vshrl.u32 %v4900, 7
      %v4902 = vsub.s32 4, %v4901
      %v4903 = vrot.slane %v4459, %v4902
      %v4904 = vlaneseq
      %v4905 = vshrl.u32 %v4904, 7
      %v4906 = vsub.s32 5, %v4905
      %v4907 = vrot.slane %v4459, %v4906
      %v4908 = vlaneseq
      %v4909 = vshrl.u32 %v4908, 7
      %v4910 = vsub.s32 6, %v4909
      %v4911 = vrot.slane %v4459, %v4910
      %v4912 = vlaneseq
      %v4913 = vshrl.u32 %v4912, 7
      %v4914 = vsub.s32 7, %v4913
      %v4915 = vrot.slane %v4459, %v4914
      %v4916 = vlaneseq
      %v4917 = vshrl.u32 %v4916, 7
      %v4918 = vsub.s32 0, %v4917
      %v4919 = vrot.slane %v4461, %v4918
      %v4920 = vlaneseq
      %v4921 = vshrl.u32 %v4920, 7
      %v4922 = vsub.s32 1, %v4921
      %v4923 = vrot.slane %v4461, %v4922
      %v4924 = vlaneseq
      %v4925 = vshrl.u32 %v4924, 7
      %v4926 = vsub.s32 2, %v4925
      %v4927 = vrot.slane %v4461, %v4926
      %v4928 = vlaneseq
      %v4929 = vshrl.u32 %v4928, 7
      %v4930 = vsub.s32 3, %v4929
      %v4931 = vrot.slane %v4461, %v4930
      %v4932 = vlaneseq
      %v4933 = vshrl.u32 %v4932, 7
      %v4934 = vsub.s32 4, %v4933
      %v4935 = vrot.slane %v4461, %v4934
      %v4936 = vlaneseq
      %v4937 = vshrl.u32 %v4936, 7
      %v4938 = vsub.s32 5, %v4937
      %v4939 = vrot.slane %v4461, %v4938
      %v4940 = vlaneseq
      %v4941 = vshrl.u32 %v4940, 7
      %v4942 = vsub.s32 6, %v4941
      %v4943 = vrot.slane %v4461, %v4942
      %v4944 = vlaneseq
      %v4945 = vshrl.u32 %v4944, 7
      %v4946 = vsub.s32 7, %v4945
      %v4947 = vrot.slane %v4461, %v4946
      %v4948 = vlaneseq
      %v4949 = vshrl.u32 %v4948, 7
      %v4950 = vsub.s32 0, %v4949
      %v4951 = vrot.slane %v4463, %v4950
      %v4952 = vlaneseq
      %v4953 = vshrl.u32 %v4952, 7
      %v4954 = vsub.s32 1, %v4953
      %v4955 = vrot.slane %v4463, %v4954
      %v4956 = vlaneseq
      %v4957 = vshrl.u32 %v4956, 7
      %v4958 = vsub.s32 2, %v4957
      %v4959 = vrot.slane %v4463, %v4958
      %v4960 = vlaneseq
      %v4961 = vshrl.u32 %v4960, 7
      %v4962 = vsub.s32 3, %v4961
      %v4963 = vrot.slane %v4463, %v4962
      %v4964 = vlaneseq
      %v4965 = vshrl.u32 %v4964, 7
      %v4966 = vsub.s32 4, %v4965
      %v4967 = vrot.slane %v4463, %v4966
      %v4968 = vlaneseq
      %v4969 = vshrl.u32 %v4968, 7
      %v4970 = vsub.s32 5, %v4969
      %v4971 = vrot.slane %v4463, %v4970
      %v4972 = vlaneseq
      %v4973 = vshrl.u32 %v4972, 7
      %v4974 = vsub.s32 6, %v4973
      %v4975 = vrot.slane %v4463, %v4974
      %v4976 = vlaneseq
      %v4977 = vshrl.u32 %v4976, 7
      %v4978 = vsub.s32 7, %v4977
      %v4979 = vrot.slane %v4463, %v4978
      %v4980 = vlaneseq
      %v4981 = vshrl.u32 %v4980, 7
      %v4982 = vsub.s32 0, %v4981
      %v4983 = vrot.slane %v4465, %v4982
      %v4984 = vlaneseq
      %v4985 = vshrl.u32 %v4984, 7
      %v4986 = vsub.s32 1, %v4985
      %v4987 = vrot.slane %v4465, %v4986
      %v4988 = vlaneseq
      %v4989 = vshrl.u32 %v4988, 7
      %v4990 = vsub.s32 2, %v4989
      %v4991 = vrot.slane %v4465, %v4990
      %v4992 = vlaneseq
      %v4993 = vshrl.u32 %v4992, 7
      %v4994 = vsub.s32 3, %v4993
      %v4995 = vrot.slane %v4465, %v4994
      %v4996 = vlaneseq
      %v4997 = vshrl.u32 %v4996, 7
      %v4998 = vsub.s32 4, %v4997
      %v4999 = vrot.slane %v4465, %v4998
      %v5000 = vlaneseq
      %v5001 = vshrl.u32 %v5000, 7
      %v5002 = vsub.s32 5, %v5001
      %v5003 = vrot.slane %v4465, %v5002
      %v5004 = vlaneseq
      %v5005 = vshrl.u32 %v5004, 7
      %v5006 = vsub.s32 6, %v5005
      %v5007 = vrot.slane %v4465, %v5006
      %v5008 = vlaneseq
      %v5009 = vshrl.u32 %v5008, 7
      %v5010 = vsub.s32 7, %v5009
      %v5011 = vrot.slane %v4465, %v5010
      %v5012 = vlaneseq
      %v5013 = vshrl.u32 %v5012, 7
      %v5014 = vsub.s32 0, %v5013
      %v5015 = vrot.slane %v4467, %v5014
      %v5016 = vlaneseq
      %v5017 = vshrl.u32 %v5016, 7
      %v5018 = vsub.s32 1, %v5017
      %v5019 = vrot.slane %v4467, %v5018
      %v5020 = vlaneseq
      %v5021 = vshrl.u32 %v5020, 7
      %v5022 = vsub.s32 2, %v5021
      %v5023 = vrot.slane %v4467, %v5022
      %v5024 = vlaneseq
      %v5025 = vshrl.u32 %v5024, 7
      %v5026 = vsub.s32 3, %v5025
      %v5027 = vrot.slane %v4467, %v5026
      %v5028 = vlaneseq
      %v5029 = vshrl.u32 %v5028, 7
      %v5030 = vsub.s32 4, %v5029
      %v5031 = vrot.slane %v4467, %v5030
      %v5032 = vlaneseq
      %v5033 = vshrl.u32 %v5032, 7
      %v5034 = vsub.s32 5, %v5033
      %v5035 = vrot.slane %v4467, %v5034
      %v5036 = vlaneseq
      %v5037 = vshrl.u32 %v5036, 7
      %v5038 = vsub.s32 6, %v5037
      %v5039 = vrot.slane %v4467, %v5038
      %v5040 = vlaneseq
      %v5041 = vshrl.u32 %v5040, 7
      %v5042 = vsub.s32 7, %v5041
      %v5043 = vrot.slane %v4467, %v5042
      %v5044 = vlaneseq
      %v5045 = vshrl.u32 %v5044, 7
      %v5046 = vsub.s32 0, %v5045
      %v5047 = vrot.slane %v4469, %v5046
      %v5048 = vlaneseq
      %v5049 = vshrl.u32 %v5048, 7
      %v5050 = vsub.s32 1, %v5049
      %v5051 = vrot.slane %v4469, %v5050
      %v5052 = vlaneseq
      %v5053 = vshrl.u32 %v5052, 7
      %v5054 = vsub.s32 2, %v5053
      %v5055 = vrot.slane %v4469, %v5054
      %v5056 = vlaneseq
      %v5057 = vshrl.u32 %v5056, 7
      %v5058 = vsub.s32 3, %v5057
      %v5059 = vrot.slane %v4469, %v5058
      %v5060 = vlaneseq
      %v5061 = vshrl.u32 %v5060, 7
      %v5062 = vsub.s32 4, %v5061
      %v5063 = vrot.slane %v4469, %v5062
      %v5064 = vlaneseq
      %v5065 = vshrl.u32 %v5064, 7
      %v5066 = vsub.s32 5, %v5065
      %v5067 = vrot.slane %v4469, %v5066
      %v5068 = vlaneseq
      %v5069 = vshrl.u32 %v5068, 7
      %v5070 = vsub.s32 6, %v5069
      %v5071 = vrot.slane %v4469, %v5070
      %v5072 = vlaneseq
      %v5073 = vshrl.u32 %v5072, 7
      %v5074 = vsub.s32 7, %v5073
      %v5075 = vrot.slane %v4469, %v5074
      %v5076 = vlaneseq
      %v5077 = vshrl.u32 %v5076, 7
      %v5078 = vsub.s32 0, %v5077
      %v5079 = vrot.slane %v4471, %v5078
      %v5080 = vlaneseq
      %v5081 = vshrl.u32 %v5080, 7
      %v5082 = vsub.s32 1, %v5081
      %v5083 = vrot.slane %v4471, %v5082
      %v5084 = vlaneseq
      %v5085 = vshrl.u32 %v5084, 7
      %v5086 = vsub.s32 2, %v5085
      %v5087 = vrot.slane %v4471, %v5086
      %v5088 = vlaneseq
      %v5089 = vshrl.u32 %v5088, 7
      %v5090 = vsub.s32 3, %v5089
      %v5091 = vrot.slane %v4471, %v5090
      %v5092 = vlaneseq
      %v5093 = vshrl.u32 %v5092, 7
      %v5094 = vsub.s32 4, %v5093
      %v5095 = vrot.slane %v4471, %v5094
      %v5096 = vlaneseq
      %v5097 = vshrl.u32 %v5096, 7
      %v5098 = vsub.s32 5, %v5097
      %v5099 = vrot.slane %v4471, %v5098
      %v5100 = vlaneseq
      %v5101 = vshrl.u32 %v5100, 7
      %v5102 = vsub.s32 6, %v5101
      %v5103 = vrot.slane %v4471, %v5102
      %v5104 = vlaneseq
      %v5105 = vshrl.u32 %v5104, 7
      %v5106 = vsub.s32 7, %v5105
      %v5107 = vrot.slane %v4471, %v5106
      %v5108 = vlaneseq
      %v5109 = vshrl.u32 %v5108, 7
      %v5110 = vsub.s32 0, %v5109
      %v5111 = vrot.slane %v4473, %v5110
      %v5112 = vlaneseq
      %v5113 = vshrl.u32 %v5112, 7
      %v5114 = vsub.s32 1, %v5113
      %v5115 = vrot.slane %v4473, %v5114
      %v5116 = vlaneseq
      %v5117 = vshrl.u32 %v5116, 7
      %v5118 = vsub.s32 2, %v5117
      %v5119 = vrot.slane %v4473, %v5118
      %v5120 = vlaneseq
      %v5121 = vshrl.u32 %v5120, 7
      %v5122 = vsub.s32 3, %v5121
      %v5123 = vrot.slane %v4473, %v5122
      %v5124 = vlaneseq
      %v5125 = vshrl.u32 %v5124, 7
      %v5126 = vsub.s32 4, %v5125
      %v5127 = vrot.slane %v4473, %v5126
      %v5128 = vlaneseq
      %v5129 = vshrl.u32 %v5128, 7
      %v5130 = vsub.s32 5, %v5129
      %v5131 = vrot.slane %v4473, %v5130
      %v5132 = vlaneseq
      %v5133 = vshrl.u32 %v5132, 7
      %v5134 = vsub.s32 6, %v5133
      %v5135 = vrot.slane %v4473, %v5134
      %v5136 = vlaneseq
      %v5137 = vshrl.u32 %v5136, 7
      %v5138 = vsub.s32 7, %v5137
      %v5139 = vrot.slane %v4473, %v5138
      %v5140 = vlaneseq
      %v5141 = vshrl.u32 %v5140, 7
      %v5142 = vsub.s32 0, %v5141
      %v5143 = vrot.slane %v4475, %v5142
      %v5144 = vlaneseq
      %v5145 = vshrl.u32 %v5144, 7
      %v5146 = vsub.s32 1, %v5145
      %v5147 = vrot.slane %v4475, %v5146
      %v5148 = vlaneseq
      %v5149 = vshrl.u32 %v5148, 7
      %v5150 = vsub.s32 2, %v5149
      %v5151 = vrot.slane %v4475, %v5150
      %v5152 = vlaneseq
      %v5153 = vshrl.u32 %v5152, 7
      %v5154 = vsub.s32 3, %v5153
      %v5155 = vrot.slane %v4475, %v5154
      %v5156 = vlaneseq
      %v5157 = vshrl.u32 %v5156, 7
      %v5158 = vsub.s32 4, %v5157
      %v5159 = vrot.slane %v4475, %v5158
      %v5160 = vlaneseq
      %v5161 = vshrl.u32 %v5160, 7
      %v5162 = vsub.s32 5, %v5161
      %v5163 = vrot.slane %v4475, %v5162
      %v5164 = vlaneseq
      %v5165 = vshrl.u32 %v5164, 7
      %v5166 = vsub.s32 6, %v5165
      %v5167 = vrot.slane %v4475, %v5166
      %v5168 = vlaneseq
      %v5169 = vshrl.u32 %v5168, 7
      %v5170 = vsub.s32 7, %v5169
      %v5171 = vrot.slane %v4475, %v5170
      %v5172 = vlaneseq
      %v5173 = vshrl.u32 %v5172, 7
      %v5174 = vsub.s32 0, %v5173
      %v5175 = vrot.slane %v4477, %v5174
      %v5176 = vlaneseq
      %v5177 = vshrl.u32 %v5176, 7
      %v5178 = vsub.s32 1, %v5177
      %v5179 = vrot.slane %v4477, %v5178
      %v5180 = vlaneseq
      %v5181 = vshrl.u32 %v5180, 7
      %v5182 = vsub.s32 2, %v5181
      %v5183 = vrot.slane %v4477, %v5182
      %v5184 = vlaneseq
      %v5185 = vshrl.u32 %v5184, 7
      %v5186 = vsub.s32 3, %v5185
      %v5187 = vrot.slane %v4477, %v5186
      %v5188 = vlaneseq
      %v5189 = vshrl.u32 %v5188, 7
      %v5190 = vsub.s32 4, %v5189
      %v5191 = vrot.slane %v4477, %v5190
      %v5192 = vlaneseq
      %v5193 = vshrl.u32 %v5192, 7
      %v5194 = vsub.s32 5, %v5193
      %v5195 = vrot.slane %v4477, %v5194
      %v5196 = vlaneseq
      %v5197 = vshrl.u32 %v5196, 7
      %v5198 = vsub.s32 6, %v5197
      %v5199 = vrot.slane %v4477, %v5198
      %v5200 = vlaneseq
      %v5201 = vshrl.u32 %v5200, 7
      %v5202 = vsub.s32 7, %v5201
      %v5203 = vrot.slane %v4477, %v5202
      %v5204 = vlaneseq
      %v5205 = vshrl.u32 %v5204, 7
      %v5206 = vsub.s32 0, %v5205
      %v5207 = vrot.slane %v4479, %v5206
      %v5208 = vlaneseq
      %v5209 = vshrl.u32 %v5208, 7
      %v5210 = vsub.s32 1, %v5209
      %v5211 = vrot.slane %v4479, %v5210
      %v5212 = vlaneseq
      %v5213 = vshrl.u32 %v5212, 7
      %v5214 = vsub.s32 2, %v5213
      %v5215 = vrot.slane %v4479, %v5214
      %v5216 = vlaneseq
      %v5217 = vshrl.u32 %v5216, 7
      %v5218 = vsub.s32 3, %v5217
      %v5219 = vrot.slane %v4479, %v5218
      %v5220 = vlaneseq
      %v5221 = vshrl.u32 %v5220, 7
      %v5222 = vsub.s32 4, %v5221
      %v5223 = vrot.slane %v4479, %v5222
      %v5224 = vlaneseq
      %v5225 = vshrl.u32 %v5224, 7
      %v5226 = vsub.s32 5, %v5225
      %v5227 = vrot.slane %v4479, %v5226
      %v5228 = vlaneseq
      %v5229 = vshrl.u32 %v5228, 7
      %v5230 = vsub.s32 6, %v5229
      %v5231 = vrot.slane %v4479, %v5230
      %v5232 = vlaneseq
      %v5233 = vshrl.u32 %v5232, 7
      %v5234 = vsub.s32 7, %v5233
      %v5235 = vrot.slane %v4479, %v5234
      %v5236 = vlaneseq
      %v5237 = vshrl.u32 %v5236, 7
      %v5238 = vsub.s32 0, %v5237
      %v5239 = vrot.slane %v4481, %v5238
      %v5240 = vlaneseq
      %v5241 = vshrl.u32 %v5240, 7
      %v5242 = vsub.s32 1, %v5241
      %v5243 = vrot.slane %v4481, %v5242
      %v5244 = vlaneseq
      %v5245 = vshrl.u32 %v5244, 7
      %v5246 = vsub.s32 2, %v5245
      %v5247 = vrot.slane %v4481, %v5246
      %v5248 = vlaneseq
      %v5249 = vshrl.u32 %v5248, 7
      %v5250 = vsub.s32 3, %v5249
      %v5251 = vrot.slane %v4481, %v5250
      %v5252 = vlaneseq
      %v5253 = vshrl.u32 %v5252, 7
      %v5254 = vsub.s32 4, %v5253
      %v5255 = vrot.slane %v4481, %v5254
      %v5256 = vlaneseq
      %v5257 = vshrl.u32 %v5256, 7
      %v5258 = vsub.s32 5, %v5257
      %v5259 = vrot.slane %v4481, %v5258
      %v5260 = vlaneseq
      %v5261 = vshrl.u32 %v5260, 7
      %v5262 = vsub.s32 6, %v5261
      %v5263 = vrot.slane %v4481, %v5262
      %v5264 = vlaneseq
      %v5265 = vshrl.u32 %v5264, 7
      %v5266 = vsub.s32 7, %v5265
      %v5267 = vrot.slane %v4481, %v5266
      %v5268 = vlaneseq
      %v5269 = vshrl.u32 %v5268, 7
      %v5270 = vsub.s32 0, %v5269
      %v5271 = vrot.slane %v4483, %v5270
      %v5272 = vlaneseq
      %v5273 = vshrl.u32 %v5272, 7
      %v5274 = vsub.s32 1, %v5273
      %v5275 = vrot.slane %v4483, %v5274
      %v5276 = vlaneseq
      %v5277 = vshrl.u32 %v5276, 7
      %v5278 = vsub.s32 2, %v5277
      %v5279 = vrot.slane %v4483, %v5278
      %v5280 = vlaneseq
      %v5281 = vshrl.u32 %v5280, 7
      %v5282 = vsub.s32 3, %v5281
      %v5283 = vrot.slane %v4483, %v5282
      %v5284 = vlaneseq
      %v5285 = vshrl.u32 %v5284, 7
      %v5286 = vsub.s32 4, %v5285
      %v5287 = vrot.slane %v4483, %v5286
      %v5288 = vlaneseq
      %v5289 = vshrl.u32 %v5288, 7
      %v5290 = vsub.s32 5, %v5289
      %v5291 = vrot.slane %v4483, %v5290
      %v5292 = vlaneseq
      %v5293 = vshrl.u32 %v5292, 7
      %v5294 = vsub.s32 6, %v5293
      %v5295 = vrot.slane %v4483, %v5294
      %v5296 = vlaneseq
      %v5297 = vshrl.u32 %v5296, 7
      %v5298 = vsub.s32 7, %v5297
      %v5299 = vrot.slane %v4483, %v5298
      %v5300 = vlaneseq
      %v5301 = vshrl.u32 %v5300, 7
      %v5302 = vsub.s32 0, %v5301
      %v5303 = vrot.slane %v4485, %v5302
      %v5304 = vlaneseq
      %v5305 = vshrl.u32 %v5304, 7
      %v5306 = vsub.s32 1, %v5305
      %v5307 = vrot.slane %v4485, %v5306
      %v5308 = vlaneseq
      %v5309 = vshrl.u32 %v5308, 7
      %v5310 = vsub.s32 2, %v5309
      %v5311 = vrot.slane %v4485, %v5310
      %v5312 = vlaneseq
      %v5313 = vshrl.u32 %v5312, 7
      %v5314 = vsub.s32 3, %v5313
      %v5315 = vrot.slane %v4485, %v5314
      %v5316 = vlaneseq
      %v5317 = vshrl.u32 %v5316, 7
      %v5318 = vsub.s32 4, %v5317
      %v5319 = vrot.slane %v4485, %v5318
      %v5320 = vlaneseq
      %v5321 = vshrl.u32 %v5320, 7
      %v5322 = vsub.s32 5, %v5321
      %v5323 = vrot.slane %v4485, %v5322
      %v5324 = vlaneseq
      %v5325 = vshrl.u32 %v5324, 7
      %v5326 = vsub.s32 6, %v5325
      %v5327 = vrot.slane %v4485, %v5326
      %v5328 = vlaneseq
      %v5329 = vshrl.u32 %v5328, 7
      %v5330 = vsub.s32 7, %v5329
      %v5331 = vrot.slane %v4485, %v5330
      %v5332 = vlaneseq
      %v5333 = vshrl.u32 %v5332, 7
      %v5334 = vsub.s32 0, %v5333
      %v5335 = vrot.slane %v4487, %v5334
      %v5336 = vlaneseq
      %v5337 = vshrl.u32 %v5336, 7
      %v5338 = vsub.s32 1, %v5337
      %v5339 = vrot.slane %v4487, %v5338
      %v5340 = vlaneseq
      %v5341 = vshrl.u32 %v5340, 7
      %v5342 = vsub.s32 2, %v5341
      %v5343 = vrot.slane %v4487, %v5342
      %v5344 = vlaneseq
      %v5345 = vshrl.u32 %v5344, 7
      %v5346 = vsub.s32 3, %v5345
      %v5347 = vrot.slane %v4487, %v5346
      %v5348 = vlaneseq
      %v5349 = vshrl.u32 %v5348, 7
      %v5350 = vsub.s32 4, %v5349
      %v5351 = vrot.slane %v4487, %v5350
      %v5352 = vlaneseq
      %v5353 = vshrl.u32 %v5352, 7
      %v5354 = vsub.s32 5, %v5353
      %v5355 = vrot.slane %v4487, %v5354
      %v5356 = vlaneseq
      %v5357 = vshrl.u32 %v5356, 7
      %v5358 = vsub.s32 6, %v5357
      %v5359 = vrot.slane %v4487, %v5358
      %v5360 = vlaneseq
      %v5361 = vshrl.u32 %v5360, 7
      %v5362 = vsub.s32 7, %v5361
      %v5363 = vrot.slane %v4487, %v5362
      %v5364 = vlaneseq
      %v5365 = vshrl.u32 %v5364, 7
      %v5366 = vsub.s32 0, %v5365
      %v5367 = vrot.slane %v4489, %v5366
      %v5368 = vlaneseq
      %v5369 = vshrl.u32 %v5368, 7
      %v5370 = vsub.s32 1, %v5369
      %v5371 = vrot.slane %v4489, %v5370
      %v5372 = vlaneseq
      %v5373 = vshrl.u32 %v5372, 7
      %v5374 = vsub.s32 2, %v5373
      %v5375 = vrot.slane %v4489, %v5374
      %v5376 = vlaneseq
      %v5377 = vshrl.u32 %v5376, 7
      %v5378 = vsub.s32 3, %v5377
      %v5379 = vrot.slane %v4489, %v5378
      %v5380 = vlaneseq
      %v5381 = vshrl.u32 %v5380, 7
      %v5382 = vsub.s32 4, %v5381
      %v5383 = vrot.slane %v4489, %v5382
      %v5384 = vlaneseq
      %v5385 = vshrl.u32 %v5384, 7
      %v5386 = vsub.s32 5, %v5385
      %v5387 = vrot.slane %v4489, %v5386
      %v5388 = vlaneseq
      %v5389 = vshrl.u32 %v5388, 7
      %v5390 = vsub.s32 6, %v5389
      %v5391 = vrot.slane %v4489, %v5390
      %v5392 = vlaneseq
      %v5393 = vshrl.u32 %v5392, 7
      %v5394 = vsub.s32 7, %v5393
      %v5395 = vrot.slane %v4489, %v5394
      %v5396 = vlaneseq
      %v5397 = vshrl.u32 %v5396, 7
      %v5398 = vsub.s32 0, %v5397
      %v5399 = vrot.slane %v4491, %v5398
      %v5400 = vlaneseq
      %v5401 = vshrl.u32 %v5400, 7
      %v5402 = vsub.s32 1, %v5401
      %v5403 = vrot.slane %v4491, %v5402
      %v5404 = vlaneseq
      %v5405 = vshrl.u32 %v5404, 7
      %v5406 = vsub.s32 2, %v5405
      %v5407 = vrot.slane %v4491, %v5406
      %v5408 = vlaneseq
      %v5409 = vshrl.u32 %v5408, 7
      %v5410 = vsub.s32 3, %v5409
      %v5411 = vrot.slane %v4491, %v5410
      %v5412 = vlaneseq
      %v5413 = vshrl.u32 %v5412, 7
      %v5414 = vsub.s32 4, %v5413
      %v5415 = vrot.slane %v4491, %v5414
      %v5416 = vlaneseq
      %v5417 = vshrl.u32 %v5416, 7
      %v5418 = vsub.s32 5, %v5417
      %v5419 = vrot.slane %v4491, %v5418
      %v5420 = vlaneseq
      %v5421 = vshrl.u32 %v5420, 7
      %v5422 = vsub.s32 6, %v5421
      %v5423 = vrot.slane %v4491, %v5422
      %v5424 = vlaneseq
      %v5425 = vshrl.u32 %v5424, 7
      %v5426 = vsub.s32 7, %v5425
      %v5427 = vrot.slane %v4491, %v5426
      %v5428 = vlaneseq
      %v5429 = vshrl.u32 %v5428, 7
      %v5430 = vsub.s32 0, %v5429
      %v5431 = vrot.slane %v4493, %v5430
      %v5432 = vlaneseq
      %v5433 = vshrl.u32 %v5432, 7
      %v5434 = vsub.s32 1, %v5433
      %v5435 = vrot.slane %v4493, %v5434
      %v5436 = vlaneseq
      %v5437 = vshrl.u32 %v5436, 7
      %v5438 = vsub.s32 2, %v5437
      %v5439 = vrot.slane %v4493, %v5438
      %v5440 = vlaneseq
      %v5441 = vshrl.u32 %v5440, 7
      %v5442 = vsub.s32 3, %v5441
      %v5443 = vrot.slane %v4493, %v5442
      %v5444 = vlaneseq
      %v5445 = vshrl.u32 %v5444, 7
      %v5446 = vsub.s32 4, %v5445
      %v5447 = vrot.slane %v4493, %v5446
      %v5448 = vlaneseq
      %v5449 = vshrl.u32 %v5448, 7
      %v5450 = vsub.s32 5, %v5449
      %v5451 = vrot.slane %v4493, %v5450
      %v5452 = vlaneseq
      %v5453 = vshrl.u32 %v5452, 7
      %v5454 = vsub.s32 6, %v5453
      %v5455 = vrot.slane %v4493, %v5454
      %v5456 = vlaneseq
      %v5457 = vshrl.u32 %v5456, 7
      %v5458 = vsub.s32 7, %v5457
      %v5459 = vrot.slane %v4493, %v5458
      %v5460 = vlaneseq
      %v5461 = vshrl.u32 %v5460, 7
      %v5462 = vsub.s32 0, %v5461
      %v5463 = vrot.slane %v4495, %v5462
      %v5464 = vlaneseq
      %v5465 = vshrl.u32 %v5464, 7
      %v5466 = vsub.s32 1, %v5465
      %v5467 = vrot.slane %v4495, %v5466
      %v5468 = vlaneseq
      %v5469 = vshrl.u32 %v5468, 7
      %v5470 = vsub.s32 2, %v5469
      %v5471 = vrot.slane %v4495, %v5470
      %v5472 = vlaneseq
      %v5473 = vshrl.u32 %v5472, 7
      %v5474 = vsub.s32 3, %v5473
      %v5475 = vrot.slane %v4495, %v5474
      %v5476 = vlaneseq
      %v5477 = vshrl.u32 %v5476, 7
      %v5478 = vsub.s32 4, %v5477
      %v5479 = vrot.slane %v4495, %v5478
      %v5480 = vlaneseq
      %v5481 = vshrl.u32 %v5480, 7
      %v5482 = vsub.s32 5, %v5481
      %v5483 = vrot.slane %v4495, %v5482
      %v5484 = vlaneseq
      %v5485 = vshrl.u32 %v5484, 7
      %v5486 = vsub.s32 6, %v5485
      %v5487 = vrot.slane %v4495, %v5486
      %v5488 = vlaneseq
      %v5489 = vshrl.u32 %v5488, 7
      %v5490 = vsub.s32 7, %v5489
      %v5491 = vrot.slane %v4495, %v5490
      %v5492 = vlaneseq
      %v5493 = vshrl.u32 %v5492, 7
      %v5494 = vsub.s32 0, %v5493
      %v5495 = vrot.slane %v4497, %v5494
      %v5496 = vlaneseq
      %v5497 = vshrl.u32 %v5496, 7
      %v5498 = vsub.s32 1, %v5497
      %v5499 = vrot.slane %v4497, %v5498
      %v5500 = vlaneseq
      %v5501 = vshrl.u32 %v5500, 7
      %v5502 = vsub.s32 2, %v5501
      %v5503 = vrot.slane %v4497, %v5502
      %v5504 = vlaneseq
      %v5505 = vshrl.u32 %v5504, 7
      %v5506 = vsub.s32 3, %v5505
      %v5507 = vrot.slane %v4497, %v5506
      %v5508 = vlaneseq
      %v5509 = vshrl.u32 %v5508, 7
      %v5510 = vsub.s32 4, %v5509
      %v5511 = vrot.slane %v4497, %v5510
      %v5512 = vlaneseq
      %v5513 = vshrl.u32 %v5512, 7
      %v5514 = vsub.s32 5, %v5513
      %v5515 = vrot.slane %v4497, %v5514
      %v5516 = vlaneseq
      %v5517 = vshrl.u32 %v5516, 7
      %v5518 = vsub.s32 6, %v5517
      %v5519 = vrot.slane %v4497, %v5518
      %v5520 = vlaneseq
      %v5521 = vshrl.u32 %v5520, 7
      %v5522 = vsub.s32 7, %v5521
      %v5523 = vrot.slane %v4497, %v5522
      %v5524 = vlaneseq
      %v5525 = vshrl.u32 %v5524, 7
      %v5526 = vsub.s32 0, %v5525
      %v5527 = vrot.slane %v4499, %v5526
      %v5528 = vlaneseq
      %v5529 = vshrl.u32 %v5528, 7
      %v5530 = vsub.s32 1, %v5529
      %v5531 = vrot.slane %v4499, %v5530
      %v5532 = vlaneseq
      %v5533 = vshrl.u32 %v5532, 7
      %v5534 = vsub.s32 2, %v5533
      %v5535 = vrot.slane %v4499, %v5534
      %v5536 = vlaneseq
      %v5537 = vshrl.u32 %v5536, 7
      %v5538 = vsub.s32 3, %v5537
      %v5539 = vrot.slane %v4499, %v5538
      %v5540 = vlaneseq
      %v5541 = vshrl.u32 %v5540, 7
      %v5542 = vsub.s32 4, %v5541
      %v5543 = vrot.slane %v4499, %v5542
      %v5544 = vlaneseq
      %v5545 = vshrl.u32 %v5544, 7
      %v5546 = vsub.s32 5, %v5545
      %v5547 = vrot.slane %v4499, %v5546
      %v5548 = vlaneseq
      %v5549 = vshrl.u32 %v5548, 7
      %v5550 = vsub.s32 6, %v5549
      %v5551 = vrot.slane %v4499, %v5550
      %v5552 = vlaneseq
      %v5553 = vshrl.u32 %v5552, 7
      %v5554 = vsub.s32 7, %v5553
      %v5555 = vrot.slane %v4499, %v5554
      %v5556 = vcombine.low %v4535, %v4539
      %v5557 = vcombine.low %v4543, %v4547
      %v5558 = vcombine.low %v4551, %v4555
      %v5559 = vcombine.low %v4559, %v4563
      %v5561 = vunpack.c.l.s4 1966171168
      %v5562 = vunpack.c.0.s8 %v5561
      %v5563 = vlaneseq
      %v5564 = vshrl.u32 %v5563, 7
      %v5565 = vsub.s32 %v5562, %v5564
      %v5566 = vrot.slane %v5556, %v5565
      %v5568 = vunpack.c.l.s4 1966171168
      %v5569 = vunpack.c.0.s8 %v5568
      %v5570 = vlaneseq
      %v5571 = vshrl.u32 %v5570, 7
      %v5572 = vsub.s32 %v5569, %v5571
      %v5573 = vrot.slane %v5557, %v5572
      %v5575 = vunpack.c.l.s4 1966171168
      %v5576 = vunpack.c.0.s8 %v5575
      %v5577 = vlaneseq
      %v5578 = vshrl.u32 %v5577, 7
      %v5579 = vsub.s32 %v5576, %v5578
      %v5580 = vrot.slane %v5558, %v5579
      %v5582 = vunpack.c.l.s4 1966171168
      %v5583 = vunpack.c.0.s8 %v5582
      %v5584 = vlaneseq
      %v5585 = vshrl.u32 %v5584, 7
      %v5586 = vsub.s32 %v5583, %v5585
      %v5587 = vrot.slane %v5559, %v5586
      %v5588 = vcombine.low %v5566, %v5573
      %v5589 = vcombine.low %v5580, %v5587
      %v5591 = vunpack.c.l.s4 1966171168
      %v5592 = vunpack.c.0.s8 %v5591
      %v5593 = vlaneseq
      %v5594 = vshrl.u32 %v5593, 7
      %v5595 = vsub.s32 %v5592, %v5594
      %v5596 = vrot.slane %v5588, %v5595
      %v5598 = vunpack.c.l.s4 1966171168
      %v5599 = vunpack.c.0.s8 %v5598
      %v5600 = vlaneseq
      %v5601 = vshrl.u32 %v5600, 7
      %v5602 = vsub.s32 %v5599, %v5601
      %v5603 = vrot.slane %v5589, %v5602
      %v5604 = vcombine.low %v5596, %v5603
      %v5605 = vcombine.low %v4567, %v4571
      %v5606 = vcombine.low %v4575, %v4579
      %v5607 = vcombine.low %v4583, %v4587
      %v5608 = vcombine.low %v4591, %v4595
      %v5610 = vunpack.c.l.s4 1966171168
      %v5611 = vunpack.c.0.s8 %v5610
      %v5612 = vlaneseq
      %v5613 = vshrl.u32 %v5612, 7
      %v5614 = vsub.s32 %v5611, %v5613
      %v5615 = vrot.slane %v5605, %v5614
      %v5617 = vunpack.c.l.s4 1966171168
      %v5618 = vunpack.c.0.s8 %v5617
      %v5619 = vlaneseq
      %v5620 = vshrl.u32 %v5619, 7
      %v5621 = vsub.s32 %v5618, %v5620
      %v5622 = vrot.slane %v5606, %v5621
      %v5624 = vunpack.c.l.s4 1966171168
      %v5625 = vunpack.c.0.s8 %v5624
      %v5626 = vlaneseq
      %v5627 = vshrl.u32 %v5626, 7
      %v5628 = vsub.s32 %v5625, %v5627
      %v5629 = vrot.slane %v5607, %v5628
      %v5631 = vunpack.c.l.s4 1966171168
      %v5632 = vunpack.c.0.s8 %v5631
      %v5633 = vlaneseq
      %v5634 = vshrl.u32 %v5633, 7
      %v5635 = vsub.s32 %v5632, %v5634
      %v5636 = vrot.slane %v5608, %v5635
      %v5637 = vcombine.low %v5615, %v5622
      %v5638 = vcombine.low %v5629, %v5636
      %v5640 = vunpack.c.l.s4 1966171168
      %v5641 = vunpack.c.0.s8 %v5640
      %v5642 = vlaneseq
      %v5643 = vshrl.u32 %v5642, 7
      %v5644 = vsub.s32 %v5641, %v5643
      %v5645 = vrot.slane %v5637, %v5644
      %v5647 = vunpack.c.l.s4 1966171168
      %v5648 = vunpack.c.0.s8 %v5647
      %v5649 = vlaneseq
      %v5650 = vshrl.u32 %v5649, 7
      %v5651 = vsub.s32 %v5648, %v5650
      %v5652 = vrot.slane %v5638, %v5651
      %v5653 = vcombine.low %v5645, %v5652
      %v5654 = vcombine.low %v4599, %v4603
      %v5655 = vcombine.low %v4607, %v4611
      %v5656 = vcombine.low %v4615, %v4619
      %v5657 = vcombine.low %v4623, %v4627
      %v5659 = vunpack.c.l.s4 1966171168
      %v5660 = vunpack.c.0.s8 %v5659
      %v5661 = vlaneseq
      %v5662 = vshrl.u32 %v5661, 7
      %v5663 = vsub.s32 %v5660, %v5662
      %v5664 = vrot.slane %v5654, %v5663
      %v5666 = vunpack.c.l.s4 1966171168
      %v5667 = vunpack.c.0.s8 %v5666
      %v5668 = vlaneseq
      %v5669 = vshrl.u32 %v5668, 7
      %v5670 = vsub.s32 %v5667, %v5669
      %v5671 = vrot.slane %v5655, %v5670
      %v5673 = vunpack.c.l.s4 1966171168
      %v5674 = vunpack.c.0.s8 %v5673
      %v5675 = vlaneseq
      %v5676 = vshrl.u32 %v5675, 7
      %v5677 = vsub.s32 %v5674, %v5676
      %v5678 = vrot.slane %v5656, %v5677
      %v5680 = vunpack.c.l.s4 1966171168
      %v5681 = vunpack.c.0.s8 %v5680
      %v5682 = vlaneseq
      %v5683 = vshrl.u32 %v5682, 7
      %v5684 = vsub.s32 %v5681, %v5683
      %v5685 = vrot.slane %v5657, %v5684
      %v5686 = vcombine.low %v5664, %v5671
      %v5687 = vcombine.low %v5678, %v5685
      %v5689 = vunpack.c.l.s4 1966171168
      %v5690 = vunpack.c.0.s8 %v5689
      %v5691 = vlaneseq
      %v5692 = vshrl.u32 %v5691, 7
      %v5693 = vsub.s32 %v5690, %v5692
      %v5694 = vrot.slane %v5686, %v5693
      %v5696 = vunpack.c.l.s4 1966171168
      %v5697 = vunpack.c.0.s8 %v5696
      %v5698 = vlaneseq
      %v5699 = vshrl.u32 %v5698, 7
      %v5700 = vsub.s32 %v5697, %v5699
      %v5701 = vrot.slane %v5687, %v5700
      %v5702 = vcombine.low %v5694, %v5701
      %v5703 = vcombine.low %v4631, %v4635
      %v5704 = vcombine.low %v4639, %v4643
      %v5705 = vcombine.low %v4647, %v4651
      %v5706 = vcombine.low %v4655, %v4659
      %v5708 = vunpack.c.l.s4 1966171168
      %v5709 = vunpack.c.0.s8 %v5708
      %v5710 = vlaneseq
      %v5711 = vshrl.u32 %v5710, 7
      %v5712 = vsub.s32 %v5709, %v5711
      %v5713 = vrot.slane %v5703, %v5712
      %v5715 = vunpack.c.l.s4 1966171168
      %v5716 = vunpack.c.0.s8 %v5715
      %v5717 = vlaneseq
      %v5718 = vshrl.u32 %v5717, 7
      %v5719 = vsub.s32 %v5716, %v5718
      %v5720 = vrot.slane %v5704, %v5719
      %v5722 = vunpack.c.l.s4 1966171168
      %v5723 = vunpack.c.0.s8 %v5722
      %v5724 = vlaneseq
      %v5725 = vshrl.u32 %v5724, 7
      %v5726 = vsub.s32 %v5723, %v5725
      %v5727 = vrot.slane %v5705, %v5726
      %v5729 = vunpack.c.l.s4 1966171168
      %v5730 = vunpack.c.0.s8 %v5729
      %v5731 = vlaneseq
      %v5732 = vshrl.u32 %v5731, 7
      %v5733 = vsub.s32 %v5730, %v5732
      %v5734 = vrot.slane %v5706, %v5733
      %v5735 = vcombine.low %v5713, %v5720
      %v5736 = vcombine.low %v5727, %v5734
      %v5738 = vunpack.c.l.s4 1966171168
      %v5739 = vunpack.c.0.s8 %v5738
      %v5740 = vlaneseq
      %v5741 = vshrl.u32 %v5740, 7
      %v5742 = vsub.s32 %v5739, %v5741
      %v5743 = vrot.slane %v5735, %v5742
      %v5745 = vunpack.c.l.s4 1966171168
      %v5746 = vunpack.c.0.s8 %v5745
      %v5747 = vlaneseq
      %v5748 = vshrl.u32 %v5747, 7
      %v5749 = vsub.s32 %v5746, %v5748
      %v5750 = vrot.slane %v5736, %v5749
      %v5751 = vcombine.low %v5743, %v5750
      %v5752 = vcombine.low %v4663, %v4667
      %v5753 = vcombine.low %v4671, %v4675
      %v5754 = vcombine.low %v4679, %v4683
      %v5755 = vcombine.low %v4687, %v4691
      %v5757 = vunpack.c.l.s4 1966171168
      %v5758 = vunpack.c.0.s8 %v5757
      %v5759 = vlaneseq
      %v5760 = vshrl.u32 %v5759, 7
      %v5761 = vsub.s32 %v5758, %v5760
      %v5762 = vrot.slane %v5752, %v5761
      %v5764 = vunpack.c.l.s4 1966171168
      %v5765 = vunpack.c.0.s8 %v5764
      %v5766 = vlaneseq
      %v5767 = vshrl.u32 %v5766, 7
      %v5768 = vsub.s32 %v5765, %v5767
      %v5769 = vrot.slane %v5753, %v5768
      %v5771 = vunpack.c.l.s4 1966171168
      %v5772 = vunpack.c.0.s8 %v5771
      %v5773 = vlaneseq
      %v5774 = vshrl.u32 %v5773, 7
      %v5775 = vsub.s32 %v5772, %v5774
      %v5776 = vrot.slane %v5754, %v5775
      %v5778 = vunpack.c.l.s4 1966171168
      %v5779 = vunpack.c.0.s8 %v5778
      %v5780 = vlaneseq
      %v5781 = vshrl.u32 %v5780, 7
      %v5782 = vsub.s32 %v5779, %v5781
      %v5783 = vrot.slane %v5755, %v5782
      %v5784 = vcombine.low %v5762, %v5769
      %v5785 = vcombine.low %v5776, %v5783
      %v5787 = vunpack.c.l.s4 1966171168
      %v5788 = vunpack.c.0.s8 %v5787
      %v5789 = vlaneseq
      %v5790 = vshrl.u32 %v5789, 7
      %v5791 = vsub.s32 %v5788, %v5790
      %v5792 = vrot.slane %v5784, %v5791
      %v5794 = vunpack.c.l.s4 1966171168
      %v5795 = vunpack.c.0.s8 %v5794
      %v5796 = vlaneseq
      %v5797 = vshrl.u32 %v5796, 7
      %v5798 = vsub.s32 %v5795, %v5797
      %v5799 = vrot.slane %v5785, %v5798
      %v5800 = vcombine.low %v5792, %v5799
      %v5801 = vcombine.low %v4695, %v4699
      %v5802 = vcombine.low %v4703, %v4707
      %v5803 = vcombine.low %v4711, %v4715
      %v5804 = vcombine.low %v4719, %v4723
      %v5806 = vunpack.c.l.s4 1966171168
      %v5807 = vunpack.c.0.s8 %v5806
      %v5808 = vlaneseq
      %v5809 = vshrl.u32 %v5808, 7
      %v5810 = vsub.s32 %v5807, %v5809
      %v5811 = vrot.slane %v5801, %v5810
      %v5813 = vunpack.c.l.s4 1966171168
      %v5814 = vunpack.c.0.s8 %v5813
      %v5815 = vlaneseq
      %v5816 = vshrl.u32 %v5815, 7
      %v5817 = vsub.s32 %v5814, %v5816
      %v5818 = vrot.slane %v5802, %v5817
      %v5820 = vunpack.c.l.s4 1966171168
      %v5821 = vunpack.c.0.s8 %v5820
      %v5822 = vlaneseq
      %v5823 = vshrl.u32 %v5822, 7
      %v5824 = vsub.s32 %v5821, %v5823
      %v5825 = vrot.slane %v5803, %v5824
      %v5827 = vunpack.c.l.s4 1966171168
      %v5828 = vunpack.c.0.s8 %v5827
      %v5829 = vlaneseq
      %v5830 = vshrl.u32 %v5829, 7
      %v5831 = vsub.s32 %v5828, %v5830
      %v5832 = vrot.slane %v5804, %v5831
      %v5833 = vcombine.low %v5811, %v5818
      %v5834 = vcombine.low %v5825, %v5832
      %v5836 = vunpack.c.l.s4 1966171168
      %v5837 = vunpack.c.0.s8 %v5836
      %v5838 = vlaneseq
      %v5839 = vshrl.u32 %v5838, 7
      %v5840 = vsub.s32 %v5837, %v5839
      %v5841 = vrot.slane %v5833, %v5840
      %v5843 = vunpack.c.l.s4 1966171168
      %v5844 = vunpack.c.0.s8 %v5843
      %v5845 = vlaneseq
      %v5846 = vshrl.u32 %v5845, 7
      %v5847 = vsub.s32 %v5844, %v5846
      %v5848 = vrot.slane %v5834, %v5847
      %v5849 = vcombine.low %v5841, %v5848
      %v5850 = vcombine.low %v4727, %v4731
      %v5851 = vcombine.low %v4735, %v4739
      %v5852 = vcombine.low %v4743, %v4747
      %v5853 = vcombine.low %v4751, %v4755
      %v5855 = vunpack.c.l.s4 1966171168
      %v5856 = vunpack.c.0.s8 %v5855
      %v5857 = vlaneseq
      %v5858 = vshrl.u32 %v5857, 7
      %v5859 = vsub.s32 %v5856, %v5858
      %v5860 = vrot.slane %v5850, %v5859
      %v5862 = vunpack.c.l.s4 1966171168
      %v5863 = vunpack.c.0.s8 %v5862
      %v5864 = vlaneseq
      %v5865 = vshrl.u32 %v5864, 7
      %v5866 = vsub.s32 %v5863, %v5865
      %v5867 = vrot.slane %v5851, %v5866
      %v5869 = vunpack.c.l.s4 1966171168
      %v5870 = vunpack.c.0.s8 %v5869
      %v5871 = vlaneseq
      %v5872 = vshrl.u32 %v5871, 7
      %v5873 = vsub.s32 %v5870, %v5872
      %v5874 = vrot.slane %v5852, %v5873
      %v5876 = vunpack.c.l.s4 1966171168
      %v5877 = vunpack.c.0.s8 %v5876
      %v5878 = vlaneseq
      %v5879 = vshrl.u32 %v5878, 7
      %v5880 = vsub.s32 %v5877, %v5879
      %v5881 = vrot.slane %v5853, %v5880
      %v5882 = vcombine.low %v5860, %v5867
      %v5883 = vcombine.low %v5874, %v5881
      %v5885 = vunpack.c.l.s4 1966171168
      %v5886 = vunpack.c.0.s8 %v5885
      %v5887 = vlaneseq
      %v5888 = vshrl.u32 %v5887, 7
      %v5889 = vsub.s32 %v5886, %v5888
      %v5890 = vrot.slane %v5882, %v5889
      %v5892 = vunpack.c.l.s4 1966171168
      %v5893 = vunpack.c.0.s8 %v5892
      %v5894 = vlaneseq
      %v5895 = vshrl.u32 %v5894, 7
      %v5896 = vsub.s32 %v5893, %v5895
      %v5897 = vrot.slane %v5883, %v5896
      %v5898 = vcombine.low %v5890, %v5897
      %v5899 = vcombine.low %v4759, %v4763
      %v5900 = vcombine.low %v4767, %v4771
      %v5901 = vcombine.low %v4775, %v4779
      %v5902 = vcombine.low %v4783, %v4787
      %v5904 = vunpack.c.l.s4 1966171168
      %v5905 = vunpack.c.0.s8 %v5904
      %v5906 = vlaneseq
      %v5907 = vshrl.u32 %v5906, 7
      %v5908 = vsub.s32 %v5905, %v5907
      %v5909 = vrot.slane %v5899, %v5908
      %v5911 = vunpack.c.l.s4 1966171168
      %v5912 = vunpack.c.0.s8 %v5911
      %v5913 = vlaneseq
      %v5914 = vshrl.u32 %v5913, 7
      %v5915 = vsub.s32 %v5912, %v5914
      %v5916 = vrot.slane %v5900, %v5915
      %v5918 = vunpack.c.l.s4 1966171168
      %v5919 = vunpack.c.0.s8 %v5918
      %v5920 = vlaneseq
      %v5921 = vshrl.u32 %v5920, 7
      %v5922 = vsub.s32 %v5919, %v5921
      %v5923 = vrot.slane %v5901, %v5922
      %v5925 = vunpack.c.l.s4 1966171168
      %v5926 = vunpack.c.0.s8 %v5925
      %v5927 = vlaneseq
      %v5928 = vshrl.u32 %v5927, 7
      %v5929 = vsub.s32 %v5926, %v5928
      %v5930 = vrot.slane %v5902, %v5929
      %v5931 = vcombine.low %v5909, %v5916
      %v5932 = vcombine.low %v5923, %v5930
      %v5934 = vunpack.c.l.s4 1966171168
      %v5935 = vunpack.c.0.s8 %v5934
      %v5936 = vlaneseq
      %v5937 = vshrl.u32 %v5936, 7
      %v5938 = vsub.s32 %v5935, %v5937
      %v5939 = vrot.slane %v5931, %v5938
      %v5941 = vunpack.c.l.s4 1966171168
      %v5942 = vunpack.c.0.s8 %v5941
      %v5943 = vlaneseq
      %v5944 = vshrl.u32 %v5943, 7
      %v5945 = vsub.s32 %v5942, %v5944
      %v5946 = vrot.slane %v5932, %v5945
      %v5947 = vcombine.low %v5939, %v5946
      %v5948 = vcombine.low %v4791, %v4795
      %v5949 = vcombine.low %v4799, %v4803
      %v5950 = vcombine.low %v4807, %v4811
      %v5951 = vcombine.low %v4815, %v4819
      %v5953 = vunpack.c.l.s4 1966171168
      %v5954 = vunpack.c.0.s8 %v5953
      %v5955 = vlaneseq
      %v5956 = vshrl.u32 %v5955, 7
      %v5957 = vsub.s32 %v5954, %v5956
      %v5958 = vrot.slane %v5948, %v5957
      %v5960 = vunpack.c.l.s4 1966171168
      %v5961 = vunpack.c.0.s8 %v5960
      %v5962 = vlaneseq
      %v5963 = vshrl.u32 %v5962, 7
      %v5964 = vsub.s32 %v5961, %v5963
      %v5965 = vrot.slane %v5949, %v5964
      %v5967 = vunpack.c.l.s4 1966171168
      %v5968 = vunpack.c.0.s8 %v5967
      %v5969 = vlaneseq
      %v5970 = vshrl.u32 %v5969, 7
      %v5971 = vsub.s32 %v5968, %v5970
      %v5972 = vrot.slane %v5950, %v5971
      %v5974 = vunpack.c.l.s4 1966171168
      %v5975 = vunpack.c.0.s8 %v5974
      %v5976 = vlaneseq
      %v5977 = vshrl.u32 %v5976, 7
      %v5978 = vsub.s32 %v5975, %v5977
      %v5979 = vrot.slane %v5951, %v5978
      %v5980 = vcombine.low %v5958, %v5965
      %v5981 = vcombine.low %v5972, %v5979
      %v5983 = vunpack.c.l.s4 1966171168
      %v5984 = vunpack.c.0.s8 %v5983
      %v5985 = vlaneseq
      %v5986 = vshrl.u32 %v5985, 7
      %v5987 = vsub.s32 %v5984, %v5986
      %v5988 = vrot.slane %v5980, %v5987
      %v5990 = vunpack.c.l.s4 1966171168
      %v5991 = vunpack.c.0.s8 %v5990
      %v5992 = vlaneseq
      %v5993 = vshrl.u32 %v5992, 7
      %v5994 = vsub.s32 %v5991, %v5993
      %v5995 = vrot.slane %v5981, %v5994
      %v5996 = vcombine.low %v5988, %v5995
      %v5997 = vcombine.low %v4823, %v4827
      %v5998 = vcombine.low %v4831, %v4835
      %v5999 = vcombine.low %v4839, %v4843
      %v6000 = vcombine.low %v4847, %v4851
      %v6002 = vunpack.c.l.s4 1966171168
      %v6003 = vunpack.c.0.s8 %v6002
      %v6004 = vlaneseq
      %v6005 = vshrl.u32 %v6004, 7
      %v6006 = vsub.s32 %v6003, %v6005
      %v6007 = vrot.slane %v5997, %v6006
      %v6009 = vunpack.c.l.s4 1966171168
      %v6010 = vunpack.c.0.s8 %v6009
      %v6011 = vlaneseq
      %v6012 = vshrl.u32 %v6011, 7
      %v6013 = vsub.s32 %v6010, %v6012
      %v6014 = vrot.slane %v5998, %v6013
      %v6016 = vunpack.c.l.s4 1966171168
      %v6017 = vunpack.c.0.s8 %v6016
      %v6018 = vlaneseq
      %v6019 = vshrl.u32 %v6018, 7
      %v6020 = vsub.s32 %v6017, %v6019
      %v6021 = vrot.slane %v5999, %v6020
      %v6023 = vunpack.c.l.s4 1966171168
      %v6024 = vunpack.c.0.s8 %v6023
      %v6025 = vlaneseq
      %v6026 = vshrl.u32 %v6025, 7
      %v6027 = vsub.s32 %v6024, %v6026
      %v6028 = vrot.slane %v6000, %v6027
      %v6029 = vcombine.low %v6007, %v6014
      %v6030 = vcombine.low %v6021, %v6028
      %v6032 = vunpack.c.l.s4 1966171168
      %v6033 = vunpack.c.0.s8 %v6032
      %v6034 = vlaneseq
      %v6035 = vshrl.u32 %v6034, 7
      %v6036 = vsub.s32 %v6033, %v6035
      %v6037 = vrot.slane %v6029, %v6036
      %v6039 = vunpack.c.l.s4 1966171168
      %v6040 = vunpack.c.0.s8 %v6039
      %v6041 = vlaneseq
      %v6042 = vshrl.u32 %v6041, 7
      %v6043 = vsub.s32 %v6040, %v6042
      %v6044 = vrot.slane %v6030, %v6043
      %v6045 = vcombine.low %v6037, %v6044
      %v6046 = vcombine.low %v4855, %v4859
      %v6047 = vcombine.low %v4863, %v4867
      %v6048 = vcombine.low %v4871, %v4875
      %v6049 = vcombine.low %v4879, %v4883
      %v6051 = vunpack.c.l.s4 1966171168
      %v6052 = vunpack.c.0.s8 %v6051
      %v6053 = vlaneseq
      %v6054 = vshrl.u32 %v6053, 7
      %v6055 = vsub.s32 %v6052, %v6054
      %v6056 = vrot.slane %v6046, %v6055
      %v6058 = vunpack.c.l.s4 1966171168
      %v6059 = vunpack.c.0.s8 %v6058
      %v6060 = vlaneseq
      %v6061 = vshrl.u32 %v6060, 7
      %v6062 = vsub.s32 %v6059, %v6061
      %v6063 = vrot.slane %v6047, %v6062
      %v6065 = vunpack.c.l.s4 1966171168
      %v6066 = vunpack.c.0.s8 %v6065
      %v6067 = vlaneseq
      %v6068 = vshrl.u32 %v6067, 7
      %v6069 = vsub.s32 %v6066, %v6068
      %v6070 = vrot.slane %v6048, %v6069
      %v6072 = vunpack.c.l.s4 1966171168
      %v6073 = vunpack.c.0.s8 %v6072
      %v6074 = vlaneseq
      %v6075 = vshrl.u32 %v6074, 7
      %v6076 = vsub.s32 %v6073, %v6075
      %v6077 = vrot.slane %v6049, %v6076
      %v6078 = vcombine.low %v6056, %v6063
      %v6079 = vcombine.low %v6070, %v6077
      %v6081 = vunpack.c.l.s4 1966171168
      %v6082 = vunpack.c.0.s8 %v6081
      %v6083 = vlaneseq
      %v6084 = vshrl.u32 %v6083, 7
      %v6085 = vsub.s32 %v6082, %v6084
      %v6086 = vrot.slane %v6078, %v6085
      %v6088 = vunpack.c.l.s4 1966171168
      %v6089 = vunpack.c.0.s8 %v6088
      %v6090 = vlaneseq
      %v6091 = vshrl.u32 %v6090, 7
      %v6092 = vsub.s32 %v6089, %v6091
      %v6093 = vrot.slane %v6079, %v6092
      %v6094 = vcombine.low %v6086, %v6093
      %v6095 = vcombine.low %v4887, %v4891
      %v6096 = vcombine.low %v4895, %v4899
      %v6097 = vcombine.low %v4903, %v4907
      %v6098 = vcombine.low %v4911, %v4915
      %v6100 = vunpack.c.l.s4 1966171168
      %v6101 = vunpack.c.0.s8 %v6100
      %v6102 = vlaneseq
      %v6103 = vshrl.u32 %v6102, 7
      %v6104 = vsub.s32 %v6101, %v6103
      %v6105 = vrot.slane %v6095, %v6104
      %v6107 = vunpack.c.l.s4 1966171168
      %v6108 = vunpack.c.0.s8 %v6107
      %v6109 = vlaneseq
      %v6110 = vshrl.u32 %v6109, 7
      %v6111 = vsub.s32 %v6108, %v6110
      %v6112 = vrot.slane %v6096, %v6111
      %v6114 = vunpack.c.l.s4 1966171168
      %v6115 = vunpack.c.0.s8 %v6114
      %v6116 = vlaneseq
      %v6117 = vshrl.u32 %v6116, 7
      %v6118 = vsub.s32 %v6115, %v6117
      %v6119 = vrot.slane %v6097, %v6118
      %v6121 = vunpack.c.l.s4 1966171168
      %v6122 = vunpack.c.0.s8 %v6121
      %v6123 = vlaneseq
      %v6124 = vshrl.u32 %v6123, 7
      %v6125 = vsub.s32 %v6122, %v6124
      %v6126 = vrot.slane %v6098, %v6125
      %v6127 = vcombine.low %v6105, %v6112
      %v6128 = vcombine.low %v6119, %v6126
      %v6130 = vunpack.c.l.s4 1966171168
      %v6131 = vunpack.c.0.s8 %v6130
      %v6132 = vlaneseq
      %v6133 = vshrl.u32 %v6132, 7
      %v6134 = vsub.s32 %v6131, %v6133
      %v6135 = vrot.slane %v6127, %v6134
      %v6137 = vunpack.c.l.s4 1966171168
      %v6138 = vunpack.c.0.s8 %v6137
      %v6139 = vlaneseq
      %v6140 = vshrl.u32 %v6139, 7
      %v6141 = vsub.s32 %v6138, %v6140
      %v6142 = vrot.slane %v6128, %v6141
      %v6143 = vcombine.low %v6135, %v6142
      %v6144 = vcombine.low %v4919, %v4923
      %v6145 = vcombine.low %v4927, %v4931
      %v6146 = vcombine.low %v4935, %v4939
      %v6147 = vcombine.low %v4943, %v4947
      %v6149 = vunpack.c.l.s4 1966171168
      %v6150 = vunpack.c.0.s8 %v6149
      %v6151 = vlaneseq
      %v6152 = vshrl.u32 %v6151, 7
      %v6153 = vsub.s32 %v6150, %v6152
      %v6154 = vrot.slane %v6144, %v6153
      %v6156 = vunpack.c.l.s4 1966171168
      %v6157 = vunpack.c.0.s8 %v6156
      %v6158 = vlaneseq
      %v6159 = vshrl.u32 %v6158, 7
      %v6160 = vsub.s32 %v6157, %v6159
      %v6161 = vrot.slane %v6145, %v6160
      %v6163 = vunpack.c.l.s4 1966171168
      %v6164 = vunpack.c.0.s8 %v6163
      %v6165 = vlaneseq
      %v6166 = vshrl.u32 %v6165, 7
      %v6167 = vsub.s32 %v6164, %v6166
      %v6168 = vrot.slane %v6146, %v6167
      %v6170 = vunpack.c.l.s4 1966171168
      %v6171 = vunpack.c.0.s8 %v6170
      %v6172 = vlaneseq
      %v6173 = vshrl.u32 %v6172, 7
      %v6174 = vsub.s32 %v6171, %v6173
      %v6175 = vrot.slane %v6147, %v6174
      %v6176 = vcombine.low %v6154, %v6161
      %v6177 = vcombine.low %v6168, %v6175
      %v6179 = vunpack.c.l.s4 1966171168
      %v6180 = vunpack.c.0.s8 %v6179
      %v6181 = vlaneseq
      %v6182 = vshrl.u32 %v6181, 7
      %v6183 = vsub.s32 %v6180, %v6182
      %v6184 = vrot.slane %v6176, %v6183
      %v6186 = vunpack.c.l.s4 1966171168
      %v6187 = vunpack.c.0.s8 %v6186
      %v6188 = vlaneseq
      %v6189 = vshrl.u32 %v6188, 7
      %v6190 = vsub.s32 %v6187, %v6189
      %v6191 = vrot.slane %v6177, %v6190
      %v6192 = vcombine.low %v6184, %v6191
      %v6193 = vcombine.low %v4951, %v4955
      %v6194 = vcombine.low %v4959, %v4963
      %v6195 = vcombine.low %v4967, %v4971
      %v6196 = vcombine.low %v4975, %v4979
      %v6198 = vunpack.c.l.s4 1966171168
      %v6199 = vunpack.c.0.s8 %v6198
      %v6200 = vlaneseq
      %v6201 = vshrl.u32 %v6200, 7
      %v6202 = vsub.s32 %v6199, %v6201
      %v6203 = vrot.slane %v6193, %v6202
      %v6205 = vunpack.c.l.s4 1966171168
      %v6206 = vunpack.c.0.s8 %v6205
      %v6207 = vlaneseq
      %v6208 = vshrl.u32 %v6207, 7
      %v6209 = vsub.s32 %v6206, %v6208
      %v6210 = vrot.slane %v6194, %v6209
      %v6212 = vunpack.c.l.s4 1966171168
      %v6213 = vunpack.c.0.s8 %v6212
      %v6214 = vlaneseq
      %v6215 = vshrl.u32 %v6214, 7
      %v6216 = vsub.s32 %v6213, %v6215
      %v6217 = vrot.slane %v6195, %v6216
      %v6219 = vunpack.c.l.s4 1966171168
      %v6220 = vunpack.c.0.s8 %v6219
      %v6221 = vlaneseq
      %v6222 = vshrl.u32 %v6221, 7
      %v6223 = vsub.s32 %v6220, %v6222
      %v6224 = vrot.slane %v6196, %v6223
      %v6225 = vcombine.low %v6203, %v6210
      %v6226 = vcombine.low %v6217, %v6224
      %v6228 = vunpack.c.l.s4 1966171168
      %v6229 = vunpack.c.0.s8 %v6228
      %v6230 = vlaneseq
      %v6231 = vshrl.u32 %v6230, 7
      %v6232 = vsub.s32 %v6229, %v6231
      %v6233 = vrot.slane %v6225, %v6232
      %v6235 = vunpack.c.l.s4 1966171168
      %v6236 = vunpack.c.0.s8 %v6235
      %v6237 = vlaneseq
      %v6238 = vshrl.u32 %v6237, 7
      %v6239 = vsub.s32 %v6236, %v6238
      %v6240 = vrot.slane %v6226, %v6239
      %v6241 = vcombine.low %v6233, %v6240
      %v6242 = vcombine.low %v4983, %v4987
      %v6243 = vcombine.low %v4991, %v4995
      %v6244 = vcombine.low %v4999, %v5003
      %v6245 = vcombine.low %v5007, %v5011
      %v6247 = vunpack.c.l.s4 1966171168
      %v6248 = vunpack.c.0.s8 %v6247
      %v6249 = vlaneseq
      %v6250 = vshrl.u32 %v6249, 7
      %v6251 = vsub.s32 %v6248, %v6250
      %v6252 = vrot.slane %v6242, %v6251
      %v6254 = vunpack.c.l.s4 1966171168
      %v6255 = vunpack.c.0.s8 %v6254
      %v6256 = vlaneseq
      %v6257 = vshrl.u32 %v6256, 7
      %v6258 = vsub.s32 %v6255, %v6257
      %v6259 = vrot.slane %v6243, %v6258
      %v6261 = vunpack.c.l.s4 1966171168
      %v6262 = vunpack.c.0.s8 %v6261
      %v6263 = vlaneseq
      %v6264 = vshrl.u32 %v6263, 7
      %v6265 = vsub.s32 %v6262, %v6264
      %v6266 = vrot.slane %v6244, %v6265
      %v6268 = vunpack.c.l.s4 1966171168
      %v6269 = vunpack.c.0.s8 %v6268
      %v6270 = vlaneseq
      %v6271 = vshrl.u32 %v6270, 7
      %v6272 = vsub.s32 %v6269, %v6271
      %v6273 = vrot.slane %v6245, %v6272
      %v6274 = vcombine.low %v6252, %v6259
      %v6275 = vcombine.low %v6266, %v6273
      %v6277 = vunpack.c.l.s4 1966171168
      %v6278 = vunpack.c.0.s8 %v6277
      %v6279 = vlaneseq
      %v6280 = vshrl.u32 %v6279, 7
      %v6281 = vsub.s32 %v6278, %v6280
      %v6282 = vrot.slane %v6274, %v6281
      %v6284 = vunpack.c.l.s4 1966171168
      %v6285 = vunpack.c.0.s8 %v6284
      %v6286 = vlaneseq
      %v6287 = vshrl.u32 %v6286, 7
      %v6288 = vsub.s32 %v6285, %v6287
      %v6289 = vrot.slane %v6275, %v6288
      %v6290 = vcombine.low %v6282, %v6289
      %v6291 = vcombine.low %v5015, %v5019
      %v6292 = vcombine.low %v5023, %v5027
      %v6293 = vcombine.low %v5031, %v5035
      %v6294 = vcombine.low %v5039, %v5043
      %v6296 = vunpack.c.l.s4 1966171168
      %v6297 = vunpack.c.0.s8 %v6296
      %v6298 = vlaneseq
      %v6299 = vshrl.u32 %v6298, 7
      %v6300 = vsub.s32 %v6297, %v6299
      %v6301 = vrot.slane %v6291, %v6300
      %v6303 = vunpack.c.l.s4 1966171168
      %v6304 = vunpack.c.0.s8 %v6303
      %v6305 = vlaneseq
      %v6306 = vshrl.u32 %v6305, 7
      %v6307 = vsub.s32 %v6304, %v6306
      %v6308 = vrot.slane %v6292, %v6307
      %v6310 = vunpack.c.l.s4 1966171168
      %v6311 = vunpack.c.0.s8 %v6310
      %v6312 = vlaneseq
      %v6313 = vshrl.u32 %v6312, 7
      %v6314 = vsub.s32 %v6311, %v6313
      %v6315 = vrot.slane %v6293, %v6314
      %v6317 = vunpack.c.l.s4 1966171168
      %v6318 = vunpack.c.0.s8 %v6317
      %v6319 = vlaneseq
      %v6320 = vshrl.u32 %v6319, 7
      %v6321 = vsub.s32 %v6318, %v6320
      %v6322 = vrot.slane %v6294, %v6321
      %v6323 = vcombine.low %v6301, %v6308
      %v6324 = vcombine.low %v6315, %v6322
      %v6326 = vunpack.c.l.s4 1966171168
      %v6327 = vunpack.c.0.s8 %v6326
      %v6328 = vlaneseq
      %v6329 = vshrl.u32 %v6328, 7
      %v6330 = vsub.s32 %v6327, %v6329
      %v6331 = vrot.slane %v6323, %v6330
      %v6333 = vunpack.c.l.s4 1966171168
      %v6334 = vunpack.c.0.s8 %v6333
      %v6335 = vlaneseq
      %v6336 = vshrl.u32 %v6335, 7
      %v6337 = vsub.s32 %v6334, %v6336
      %v6338 = vrot.slane %v6324, %v6337
      %v6339 = vcombine.low %v6331, %v6338
      %v6340 = vcombine.low %v5047, %v5051
      %v6341 = vcombine.low %v5055, %v5059
      %v6342 = vcombine.low %v5063, %v5067
      %v6343 = vcombine.low %v5071, %v5075
      %v6345 = vunpack.c.l.s4 1966171168
      %v6346 = vunpack.c.0.s8 %v6345
      %v6347 = vlaneseq
      %v6348 = vshrl.u32 %v6347, 7
      %v6349 = vsub.s32 %v6346, %v6348
      %v6350 = vrot.slane %v6340, %v6349
      %v6352 = vunpack.c.l.s4 1966171168
      %v6353 = vunpack.c.0.s8 %v6352
      %v6354 = vlaneseq
      %v6355 = vshrl.u32 %v6354, 7
      %v6356 = vsub.s32 %v6353, %v6355
      %v6357 = vrot.slane %v6341, %v6356
      %v6359 = vunpack.c.l.s4 1966171168
      %v6360 = vunpack.c.0.s8 %v6359
      %v6361 = vlaneseq
      %v6362 = vshrl.u32 %v6361, 7
      %v6363 = vsub.s32 %v6360, %v6362
      %v6364 = vrot.slane %v6342, %v6363
      %v6366 = vunpack.c.l.s4 1966171168
      %v6367 = vunpack.c.0.s8 %v6366
      %v6368 = vlaneseq
      %v6369 = vshrl.u32 %v6368, 7
      %v6370 = vsub.s32 %v6367, %v6369
      %v6371 = vrot.slane %v6343, %v6370
      %v6372 = vcombine.low %v6350, %v6357
      %v6373 = vcombine.low %v6364, %v6371
      %v6375 = vunpack.c.l.s4 1966171168
      %v6376 = vunpack.c.0.s8 %v6375
      %v6377 = vlaneseq
      %v6378 = vshrl.u32 %v6377, 7
      %v6379 = vsub.s32 %v6376, %v6378
      %v6380 = vrot.slane %v6372, %v6379
      %v6382 = vunpack.c.l.s4 1966171168
      %v6383 = vunpack.c.0.s8 %v6382
      %v6384 = vlaneseq
      %v6385 = vshrl.u32 %v6384, 7
      %v6386 = vsub.s32 %v6383, %v6385
      %v6387 = vrot.slane %v6373, %v6386
      %v6388 = vcombine.low %v6380, %v6387
      %v6389 = vcombine.low %v5079, %v5083
      %v6390 = vcombine.low %v5087, %v5091
      %v6391 = vcombine.low %v5095, %v5099
      %v6392 = vcombine.low %v5103, %v5107
      %v6394 = vunpack.c.l.s4 1966171168
      %v6395 = vunpack.c.0.s8 %v6394
      %v6396 = vlaneseq
      %v6397 = vshrl.u32 %v6396, 7
      %v6398 = vsub.s32 %v6395, %v6397
      %v6399 = vrot.slane %v6389, %v6398
      %v6401 = vunpack.c.l.s4 1966171168
      %v6402 = vunpack.c.0.s8 %v6401
      %v6403 = vlaneseq
      %v6404 = vshrl.u32 %v6403, 7
      %v6405 = vsub.s32 %v6402, %v6404
      %v6406 = vrot.slane %v6390, %v6405
      %v6408 = vunpack.c.l.s4 1966171168
      %v6409 = vunpack.c.0.s8 %v6408
      %v6410 = vlaneseq
      %v6411 = vshrl.u32 %v6410, 7
      %v6412 = vsub.s32 %v6409, %v6411
      %v6413 = vrot.slane %v6391, %v6412
      %v6415 = vunpack.c.l.s4 1966171168
      %v6416 = vunpack.c.0.s8 %v6415
      %v6417 = vlaneseq
      %v6418 = vshrl.u32 %v6417, 7
      %v6419 = vsub.s32 %v6416, %v6418
      %v6420 = vrot.slane %v6392, %v6419
      %v6421 = vcombine.low %v6399, %v6406
      %v6422 = vcombine.low %v6413, %v6420
      %v6424 = vunpack.c.l.s4 1966171168
      %v6425 = vunpack.c.0.s8 %v6424
      %v6426 = vlaneseq
      %v6427 = vshrl.u32 %v6426, 7
      %v6428 = vsub.s32 %v6425, %v6427
      %v6429 = vrot.slane %v6421, %v6428
      %v6431 = vunpack.c.l.s4 1966171168
      %v6432 = vunpack.c.0.s8 %v6431
      %v6433 = vlaneseq
      %v6434 = vshrl.u32 %v6433, 7
      %v6435 = vsub.s32 %v6432, %v6434
      %v6436 = vrot.slane %v6422, %v6435
      %v6437 = vcombine.low %v6429, %v6436
      %v6438 = vcombine.low %v5111, %v5115
      %v6439 = vcombine.low %v5119, %v5123
      %v6440 = vcombine.low %v5127, %v5131
      %v6441 = vcombine.low %v5135, %v5139
      %v6443 = vunpack.c.l.s4 1966171168
      %v6444 = vunpack.c.0.s8 %v6443
      %v6445 = vlaneseq
      %v6446 = vshrl.u32 %v6445, 7
      %v6447 = vsub.s32 %v6444, %v6446
      %v6448 = vrot.slane %v6438, %v6447
      %v6450 = vunpack.c.l.s4 1966171168
      %v6451 = vunpack.c.0.s8 %v6450
      %v6452 = vlaneseq
      %v6453 = vshrl.u32 %v6452, 7
      %v6454 = vsub.s32 %v6451, %v6453
      %v6455 = vrot.slane %v6439, %v6454
      %v6457 = vunpack.c.l.s4 1966171168
      %v6458 = vunpack.c.0.s8 %v6457
      %v6459 = vlaneseq
      %v6460 = vshrl.u32 %v6459, 7
      %v6461 = vsub.s32 %v6458, %v6460
      %v6462 = vrot.slane %v6440, %v6461
      %v6464 = vunpack.c.l.s4 1966171168
      %v6465 = vunpack.c.0.s8 %v6464
      %v6466 = vlaneseq
      %v6467 = vshrl.u32 %v6466, 7
      %v6468 = vsub.s32 %v6465, %v6467
      %v6469 = vrot.slane %v6441, %v6468
      %v6470 = vcombine.low %v6448, %v6455
      %v6471 = vcombine.low %v6462, %v6469
      %v6473 = vunpack.c.l.s4 1966171168
      %v6474 = vunpack.c.0.s8 %v6473
      %v6475 = vlaneseq
      %v6476 = vshrl.u32 %v6475, 7
      %v6477 = vsub.s32 %v6474, %v6476
      %v6478 = vrot.slane %v6470, %v6477
      %v6480 = vunpack.c.l.s4 1966171168
      %v6481 = vunpack.c.0.s8 %v6480
      %v6482 = vlaneseq
      %v6483 = vshrl.u32 %v6482, 7
      %v6484 = vsub.s32 %v6481, %v6483
      %v6485 = vrot.slane %v6471, %v6484
      %v6486 = vcombine.low %v6478, %v6485
      %v6487 = vcombine.low %v5143, %v5147
      %v6488 = vcombine.low %v5151, %v5155
      %v6489 = vcombine.low %v5159, %v5163
      %v6490 = vcombine.low %v5167, %v5171
      %v6492 = vunpack.c.l.s4 1966171168
      %v6493 = vunpack.c.0.s8 %v6492
      %v6494 = vlaneseq
      %v6495 = vshrl.u32 %v6494, 7
      %v6496 = vsub.s32 %v6493, %v6495
      %v6497 = vrot.slane %v6487, %v6496
      %v6499 = vunpack.c.l.s4 1966171168
      %v6500 = vunpack.c.0.s8 %v6499
      %v6501 = vlaneseq
      %v6502 = vshrl.u32 %v6501, 7
      %v6503 = vsub.s32 %v6500, %v6502
      %v6504 = vrot.slane %v6488, %v6503
      %v6506 = vunpack.c.l.s4 1966171168
      %v6507 = vunpack.c.0.s8 %v6506
      %v6508 = vlaneseq
      %v6509 = vshrl.u32 %v6508, 7
      %v6510 = vsub.s32 %v6507, %v6509
      %v6511 = vrot.slane %v6489, %v6510
      %v6513 = vunpack.c.l.s4 1966171168
      %v6514 = vunpack.c.0.s8 %v6513
      %v6515 = vlaneseq
      %v6516 = vshrl.u32 %v6515, 7
      %v6517 = vsub.s32 %v6514, %v6516
      %v6518 = vrot.slane %v6490, %v6517
      %v6519 = vcombine.low %v6497, %v6504
      %v6520 = vcombine.low %v6511, %v6518
      %v6522 = vunpack.c.l.s4 1966171168
      %v6523 = vunpack.c.0.s8 %v6522
      %v6524 = vlaneseq
      %v6525 = vshrl.u32 %v6524, 7
      %v6526 = vsub.s32 %v6523, %v6525
      %v6527 = vrot.slane %v6519, %v6526
      %v6529 = vunpack.c.l.s4 1966171168
      %v6530 = vunpack.c.0.s8 %v6529
      %v6531 = vlaneseq
      %v6532 = vshrl.u32 %v6531, 7
      %v6533 = vsub.s32 %v6530, %v6532
      %v6534 = vrot.slane %v6520, %v6533
      %v6535 = vcombine.low %v6527, %v6534
      %v6536 = vcombine.low %v5175, %v5179
      %v6537 = vcombine.low %v5183, %v5187
      %v6538 = vcombine.low %v5191, %v5195
      %v6539 = vcombine.low %v5199, %v5203
      %v6541 = vunpack.c.l.s4 1966171168
      %v6542 = vunpack.c.0.s8 %v6541
      %v6543 = vlaneseq
      %v6544 = vshrl.u32 %v6543, 7
      %v6545 = vsub.s32 %v6542, %v6544
      %v6546 = vrot.slane %v6536, %v6545
      %v6548 = vunpack.c.l.s4 1966171168
      %v6549 = vunpack.c.0.s8 %v6548
      %v6550 = vlaneseq
      %v6551 = vshrl.u32 %v6550, 7
      %v6552 = vsub.s32 %v6549, %v6551
      %v6553 = vrot.slane %v6537, %v6552
      %v6555 = vunpack.c.l.s4 1966171168
      %v6556 = vunpack.c.0.s8 %v6555
      %v6557 = vlaneseq
      %v6558 = vshrl.u32 %v6557, 7
      %v6559 = vsub.s32 %v6556, %v6558
      %v6560 = vrot.slane %v6538, %v6559
      %v6562 = vunpack.c.l.s4 1966171168
      %v6563 = vunpack.c.0.s8 %v6562
      %v6564 = vlaneseq
      %v6565 = vshrl.u32 %v6564, 7
      %v6566 = vsub.s32 %v6563, %v6565
      %v6567 = vrot.slane %v6539, %v6566
      %v6568 = vcombine.low %v6546, %v6553
      %v6569 = vcombine.low %v6560, %v6567
      %v6571 = vunpack.c.l.s4 1966171168
      %v6572 = vunpack.c.0.s8 %v6571
      %v6573 = vlaneseq
      %v6574 = vshrl.u32 %v6573, 7
      %v6575 = vsub.s32 %v6572, %v6574
      %v6576 = vrot.slane %v6568, %v6575
      %v6578 = vunpack.c.l.s4 1966171168
      %v6579 = vunpack.c.0.s8 %v6578
      %v6580 = vlaneseq
      %v6581 = vshrl.u32 %v6580, 7
      %v6582 = vsub.s32 %v6579, %v6581
      %v6583 = vrot.slane %v6569, %v6582
      %v6584 = vcombine.low %v6576, %v6583
      %v6585 = vcombine.low %v5207, %v5211
      %v6586 = vcombine.low %v5215, %v5219
      %v6587 = vcombine.low %v5223, %v5227
      %v6588 = vcombine.low %v5231, %v5235
      %v6590 = vunpack.c.l.s4 1966171168
      %v6591 = vunpack.c.0.s8 %v6590
      %v6592 = vlaneseq
      %v6593 = vshrl.u32 %v6592, 7
      %v6594 = vsub.s32 %v6591, %v6593
      %v6595 = vrot.slane %v6585, %v6594
      %v6597 = vunpack.c.l.s4 1966171168
      %v6598 = vunpack.c.0.s8 %v6597
      %v6599 = vlaneseq
      %v6600 = vshrl.u32 %v6599, 7
      %v6601 = vsub.s32 %v6598, %v6600
      %v6602 = vrot.slane %v6586, %v6601
      %v6604 = vunpack.c.l.s4 1966171168
      %v6605 = vunpack.c.0.s8 %v6604
      %v6606 = vlaneseq
      %v6607 = vshrl.u32 %v6606, 7
      %v6608 = vsub.s32 %v6605, %v6607
      %v6609 = vrot.slane %v6587, %v6608
      %v6611 = vunpack.c.l.s4 1966171168
      %v6612 = vunpack.c.0.s8 %v6611
      %v6613 = vlaneseq
      %v6614 = vshrl.u32 %v6613, 7
      %v6615 = vsub.s32 %v6612, %v6614
      %v6616 = vrot.slane %v6588, %v6615
      %v6617 = vcombine.low %v6595, %v6602
      %v6618 = vcombine.low %v6609, %v6616
      %v6620 = vunpack.c.l.s4 1966171168
      %v6621 = vunpack.c.0.s8 %v6620
      %v6622 = vlaneseq
      %v6623 = vshrl.u32 %v6622, 7
      %v6624 = vsub.s32 %v6621, %v6623
      %v6625 = vrot.slane %v6617, %v6624
      %v6627 = vunpack.c.l.s4 1966171168
      %v6628 = vunpack.c.0.s8 %v6627
      %v6629 = vlaneseq
      %v6630 = vshrl.u32 %v6629, 7
      %v6631 = vsub.s32 %v6628, %v6630
      %v6632 = vrot.slane %v6618, %v6631
      %v6633 = vcombine.low %v6625, %v6632
      %v6634 = vcombine.low %v5239, %v5243
      %v6635 = vcombine.low %v5247, %v5251
      %v6636 = vcombine.low %v5255, %v5259
      %v6637 = vcombine.low %v5263, %v5267
      %v6639 = vunpack.c.l.s4 1966171168
      %v6640 = vunpack.c.0.s8 %v6639
      %v6641 = vlaneseq
      %v6642 = vshrl.u32 %v6641, 7
      %v6643 = vsub.s32 %v6640, %v6642
      %v6644 = vrot.slane %v6634, %v6643
      %v6646 = vunpack.c.l.s4 1966171168
      %v6647 = vunpack.c.0.s8 %v6646
      %v6648 = vlaneseq
      %v6649 = vshrl.u32 %v6648, 7
      %v6650 = vsub.s32 %v6647, %v6649
      %v6651 = vrot.slane %v6635, %v6650
      %v6653 = vunpack.c.l.s4 1966171168
      %v6654 = vunpack.c.0.s8 %v6653
      %v6655 = vlaneseq
      %v6656 = vshrl.u32 %v6655, 7
      %v6657 = vsub.s32 %v6654, %v6656
      %v6658 = vrot.slane %v6636, %v6657
      %v6660 = vunpack.c.l.s4 1966171168
      %v6661 = vunpack.c.0.s8 %v6660
      %v6662 = vlaneseq
      %v6663 = vshrl.u32 %v6662, 7
      %v6664 = vsub.s32 %v6661, %v6663
      %v6665 = vrot.slane %v6637, %v6664
      %v6666 = vcombine.low %v6644, %v6651
      %v6667 = vcombine.low %v6658, %v6665
      %v6669 = vunpack.c.l.s4 1966171168
      %v6670 = vunpack.c.0.s8 %v6669
      %v6671 = vlaneseq
      %v6672 = vshrl.u32 %v6671, 7
      %v6673 = vsub.s32 %v6670, %v6672
      %v6674 = vrot.slane %v6666, %v6673
      %v6676 = vunpack.c.l.s4 1966171168
      %v6677 = vunpack.c.0.s8 %v6676
      %v6678 = vlaneseq
      %v6679 = vshrl.u32 %v6678, 7
      %v6680 = vsub.s32 %v6677, %v6679
      %v6681 = vrot.slane %v6667, %v6680
      %v6682 = vcombine.low %v6674, %v6681
      %v6683 = vcombine.low %v5271, %v5275
      %v6684 = vcombine.low %v5279, %v5283
      %v6685 = vcombine.low %v5287, %v5291
      %v6686 = vcombine.low %v5295, %v5299
      %v6688 = vunpack.c.l.s4 1966171168
      %v6689 = vunpack.c.0.s8 %v6688
      %v6690 = vlaneseq
      %v6691 = vshrl.u32 %v6690, 7
      %v6692 = vsub.s32 %v6689, %v6691
      %v6693 = vrot.slane %v6683, %v6692
      %v6695 = vunpack.c.l.s4 1966171168
      %v6696 = vunpack.c.0.s8 %v6695
      %v6697 = vlaneseq
      %v6698 = vshrl.u32 %v6697, 7
      %v6699 = vsub.s32 %v6696, %v6698
      %v6700 = vrot.slane %v6684, %v6699
      %v6702 = vunpack.c.l.s4 1966171168
      %v6703 = vunpack.c.0.s8 %v6702
      %v6704 = vlaneseq
      %v6705 = vshrl.u32 %v6704, 7
      %v6706 = vsub.s32 %v6703, %v6705
      %v6707 = vrot.slane %v6685, %v6706
      %v6709 = vunpack.c.l.s4 1966171168
      %v6710 = vunpack.c.0.s8 %v6709
      %v6711 = vlaneseq
      %v6712 = vshrl.u32 %v6711, 7
      %v6713 = vsub.s32 %v6710, %v6712
      %v6714 = vrot.slane %v6686, %v6713
      %v6715 = vcombine.low %v6693, %v6700
      %v6716 = vcombine.low %v6707, %v6714
      %v6718 = vunpack.c.l.s4 1966171168
      %v6719 = vunpack.c.0.s8 %v6718
      %v6720 = vlaneseq
      %v6721 = vshrl.u32 %v6720, 7
      %v6722 = vsub.s32 %v6719, %v6721
      %v6723 = vrot.slane %v6715, %v6722
      %v6725 = vunpack.c.l.s4 1966171168
      %v6726 = vunpack.c.0.s8 %v6725
      %v6727 = vlaneseq
      %v6728 = vshrl.u32 %v6727, 7
      %v6729 = vsub.s32 %v6726, %v6728
      %v6730 = vrot.slane %v6716, %v6729
      %v6731 = vcombine.low %v6723, %v6730
      %v6732 = vcombine.low %v5303, %v5307
      %v6733 = vcombine.low %v5311, %v5315
      %v6734 = vcombine.low %v5319, %v5323
      %v6735 = vcombine.low %v5327, %v5331
      %v6737 = vunpack.c.l.s4 1966171168
      %v6738 = vunpack.c.0.s8 %v6737
      %v6739 = vlaneseq
      %v6740 = vshrl.u32 %v6739, 7
      %v6741 = vsub.s32 %v6738, %v6740
      %v6742 = vrot.slane %v6732, %v6741
      %v6744 = vunpack.c.l.s4 1966171168
      %v6745 = vunpack.c.0.s8 %v6744
      %v6746 = vlaneseq
      %v6747 = vshrl.u32 %v6746, 7
      %v6748 = vsub.s32 %v6745, %v6747
      %v6749 = vrot.slane %v6733, %v6748
      %v6751 = vunpack.c.l.s4 1966171168
      %v6752 = vunpack.c.0.s8 %v6751
      %v6753 = vlaneseq
      %v6754 = vshrl.u32 %v6753, 7
      %v6755 = vsub.s32 %v6752, %v6754
      %v6756 = vrot.slane %v6734, %v6755
      %v6758 = vunpack.c.l.s4 1966171168
      %v6759 = vunpack.c.0.s8 %v6758
      %v6760 = vlaneseq
      %v6761 = vshrl.u32 %v6760, 7
      %v6762 = vsub.s32 %v6759, %v6761
      %v6763 = vrot.slane %v6735, %v6762
      %v6764 = vcombine.low %v6742, %v6749
      %v6765 = vcombine.low %v6756, %v6763
      %v6767 = vunpack.c.l.s4 1966171168
      %v6768 = vunpack.c.0.s8 %v6767
      %v6769 = vlaneseq
      %v6770 = vshrl.u32 %v6769, 7
      %v6771 = vsub.s32 %v6768, %v6770
      %v6772 = vrot.slane %v6764, %v6771
      %v6774 = vunpack.c.l.s4 1966171168
      %v6775 = vunpack.c.0.s8 %v6774
      %v6776 = vlaneseq
      %v6777 = vshrl.u32 %v6776, 7
      %v6778 = vsub.s32 %v6775, %v6777
      %v6779 = vrot.slane %v6765, %v6778
      %v6780 = vcombine.low %v6772, %v6779
      %v6781 = vcombine.low %v5335, %v5339
      %v6782 = vcombine.low %v5343, %v5347
      %v6783 = vcombine.low %v5351, %v5355
      %v6784 = vcombine.low %v5359, %v5363
      %v6786 = vunpack.c.l.s4 1966171168
      %v6787 = vunpack.c.0.s8 %v6786
      %v6788 = vlaneseq
      %v6789 = vshrl.u32 %v6788, 7
      %v6790 = vsub.s32 %v6787, %v6789
      %v6791 = vrot.slane %v6781, %v6790
      %v6793 = vunpack.c.l.s4 1966171168
      %v6794 = vunpack.c.0.s8 %v6793
      %v6795 = vlaneseq
      %v6796 = vshrl.u32 %v6795, 7
      %v6797 = vsub.s32 %v6794, %v6796
      %v6798 = vrot.slane %v6782, %v6797
      %v6800 = vunpack.c.l.s4 1966171168
      %v6801 = vunpack.c.0.s8 %v6800
      %v6802 = vlaneseq
      %v6803 = vshrl.u32 %v6802, 7
      %v6804 = vsub.s32 %v6801, %v6803
      %v6805 = vrot.slane %v6783, %v6804
      %v6807 = vunpack.c.l.s4 1966171168
      %v6808 = vunpack.c.0.s8 %v6807
      %v6809 = vlaneseq
      %v6810 = vshrl.u32 %v6809, 7
      %v6811 = vsub.s32 %v6808, %v6810
      %v6812 = vrot.slane %v6784, %v6811
      %v6813 = vcombine.low %v6791, %v6798
      %v6814 = vcombine.low %v6805, %v6812
      %v6816 = vunpack.c.l.s4 1966171168
      %v6817 = vunpack.c.0.s8 %v6816
      %v6818 = vlaneseq
      %v6819 = vshrl.u32 %v6818, 7
      %v6820 = vsub.s32 %v6817, %v6819
      %v6821 = vrot.slane %v6813, %v6820
      %v6823 = vunpack.c.l.s4 1966171168
      %v6824 = vunpack.c.0.s8 %v6823
      %v6825 = vlaneseq
      %v6826 = vshrl.u32 %v6825, 7
      %v6827 = vsub.s32 %v6824, %v6826
      %v6828 = vrot.slane %v6814, %v6827
      %v6829 = vcombine.low %v6821, %v6828
      %v6830 = vcombine.low %v5367, %v5371
      %v6831 = vcombine.low %v5375, %v5379
      %v6832 = vcombine.low %v5383, %v5387
      %v6833 = vcombine.low %v5391, %v5395
      %v6835 = vunpack.c.l.s4 1966171168
      %v6836 = vunpack.c.0.s8 %v6835
      %v6837 = vlaneseq
      %v6838 = vshrl.u32 %v6837, 7
      %v6839 = vsub.s32 %v6836, %v6838
      %v6840 = vrot.slane %v6830, %v6839
      %v6842 = vunpack.c.l.s4 1966171168
      %v6843 = vunpack.c.0.s8 %v6842
      %v6844 = vlaneseq
      %v6845 = vshrl.u32 %v6844, 7
      %v6846 = vsub.s32 %v6843, %v6845
      %v6847 = vrot.slane %v6831, %v6846
      %v6849 = vunpack.c.l.s4 1966171168
      %v6850 = vunpack.c.0.s8 %v6849
      %v6851 = vlaneseq
      %v6852 = vshrl.u32 %v6851, 7
      %v6853 = vsub.s32 %v6850, %v6852
      %v6854 = vrot.slane %v6832, %v6853
      %v6856 = vunpack.c.l.s4 1966171168
      %v6857 = vunpack.c.0.s8 %v6856
      %v6858 = vlaneseq
      %v6859 = vshrl.u32 %v6858, 7
      %v6860 = vsub.s32 %v6857, %v6859
      %v6861 = vrot.slane %v6833, %v6860
      %v6862 = vcombine.low %v6840, %v6847
      %v6863 = vcombine.low %v6854, %v6861
      %v6865 = vunpack.c.l.s4 1966171168
      %v6866 = vunpack.c.0.s8 %v6865
      %v6867 = vlaneseq
      %v6868 = vshrl.u32 %v6867, 7
      %v6869 = vsub.s32 %v6866, %v6868
      %v6870 = vrot.slane %v6862, %v6869
      %v6872 = vunpack.c.l.s4 1966171168
      %v6873 = vunpack.c.0.s8 %v6872
      %v6874 = vlaneseq
      %v6875 = vshrl.u32 %v6874, 7
      %v6876 = vsub.s32 %v6873, %v6875
      %v6877 = vrot.slane %v6863, %v6876
      %v6878 = vcombine.low %v6870, %v6877
      %v6879 = vcombine.low %v5399, %v5403
      %v6880 = vcombine.low %v5407, %v5411
      %v6881 = vcombine.low %v5415, %v5419
      %v6882 = vcombine.low %v5423, %v5427
      %v6884 = vunpack.c.l.s4 1966171168
      %v6885 = vunpack.c.0.s8 %v6884
      %v6886 = vlaneseq
      %v6887 = vshrl.u32 %v6886, 7
      %v6888 = vsub.s32 %v6885, %v6887
      %v6889 = vrot.slane %v6879, %v6888
      %v6891 = vunpack.c.l.s4 1966171168
      %v6892 = vunpack.c.0.s8 %v6891
      %v6893 = vlaneseq
      %v6894 = vshrl.u32 %v6893, 7
      %v6895 = vsub.s32 %v6892, %v6894
      %v6896 = vrot.slane %v6880, %v6895
      %v6898 = vunpack.c.l.s4 1966171168
      %v6899 = vunpack.c.0.s8 %v6898
      %v6900 = vlaneseq
      %v6901 = vshrl.u32 %v6900, 7
      %v6902 = vsub.s32 %v6899, %v6901
      %v6903 = vrot.slane %v6881, %v6902
      %v6905 = vunpack.c.l.s4 1966171168
      %v6906 = vunpack.c.0.s8 %v6905
      %v6907 = vlaneseq
      %v6908 = vshrl.u32 %v6907, 7
      %v6909 = vsub.s32 %v6906, %v6908
      %v6910 = vrot.slane %v6882, %v6909
      %v6911 = vcombine.low %v6889, %v6896
      %v6912 = vcombine.low %v6903, %v6910
      %v6914 = vunpack.c.l.s4 1966171168
      %v6915 = vunpack.c.0.s8 %v6914
      %v6916 = vlaneseq
      %v6917 = vshrl.u32 %v6916, 7
      %v6918 = vsub.s32 %v6915, %v6917
      %v6919 = vrot.slane %v6911, %v6918
      %v6921 = vunpack.c.l.s4 1966171168
      %v6922 = vunpack.c.0.s8 %v6921
      %v6923 = vlaneseq
      %v6924 = vshrl.u32 %v6923, 7
      %v6925 = vsub.s32 %v6922, %v6924
      %v6926 = vrot.slane %v6912, %v6925
      %v6927 = vcombine.low %v6919, %v6926
      %v6928 = vcombine.low %v5431, %v5435
      %v6929 = vcombine.low %v5439, %v5443
      %v6930 = vcombine.low %v5447, %v5451
      %v6931 = vcombine.low %v5455, %v5459
      %v6933 = vunpack.c.l.s4 1966171168
      %v6934 = vunpack.c.0.s8 %v6933
      %v6935 = vlaneseq
      %v6936 = vshrl.u32 %v6935, 7
      %v6937 = vsub.s32 %v6934, %v6936
      %v6938 = vrot.slane %v6928, %v6937
      %v6940 = vunpack.c.l.s4 1966171168
      %v6941 = vunpack.c.0.s8 %v6940
      %v6942 = vlaneseq
      %v6943 = vshrl.u32 %v6942, 7
      %v6944 = vsub.s32 %v6941, %v6943
      %v6945 = vrot.slane %v6929, %v6944
      %v6947 = vunpack.c.l.s4 1966171168
      %v6948 = vunpack.c.0.s8 %v6947
      %v6949 = vlaneseq
      %v6950 = vshrl.u32 %v6949, 7
      %v6951 = vsub.s32 %v6948, %v6950
      %v6952 = vrot.slane %v6930, %v6951
      %v6954 = vunpack.c.l.s4 1966171168
      %v6955 = vunpack.c.0.s8 %v6954
      %v6956 = vlaneseq
      %v6957 = vshrl.u32 %v6956, 7
      %v6958 = vsub.s32 %v6955, %v6957
      %v6959 = vrot.slane %v6931, %v6958
      %v6960 = vcombine.low %v6938, %v6945
      %v6961 = vcombine.low %v6952, %v6959
      %v6963 = vunpack.c.l.s4 1966171168
      %v6964 = vunpack.c.0.s8 %v6963
      %v6965 = vlaneseq
      %v6966 = vshrl.u32 %v6965, 7
      %v6967 = vsub.s32 %v6964, %v6966
      %v6968 = vrot.slane %v6960, %v6967
      %v6970 = vunpack.c.l.s4 1966171168
      %v6971 = vunpack.c.0.s8 %v6970
      %v6972 = vlaneseq
      %v6973 = vshrl.u32 %v6972, 7
      %v6974 = vsub.s32 %v6971, %v6973
      %v6975 = vrot.slane %v6961, %v6974
      %v6976 = vcombine.low %v6968, %v6975
      %v6977 = vcombine.low %v5463, %v5467
      %v6978 = vcombine.low %v5471, %v5475
      %v6979 = vcombine.low %v5479, %v5483
      %v6980 = vcombine.low %v5487, %v5491
      %v6982 = vunpack.c.l.s4 1966171168
      %v6983 = vunpack.c.0.s8 %v6982
      %v6984 = vlaneseq
      %v6985 = vshrl.u32 %v6984, 7
      %v6986 = vsub.s32 %v6983, %v6985
      %v6987 = vrot.slane %v6977, %v6986
      %v6989 = vunpack.c.l.s4 1966171168
      %v6990 = vunpack.c.0.s8 %v6989
      %v6991 = vlaneseq
      %v6992 = vshrl.u32 %v6991, 7
      %v6993 = vsub.s32 %v6990, %v6992
      %v6994 = vrot.slane %v6978, %v6993
      %v6996 = vunpack.c.l.s4 1966171168
      %v6997 = vunpack.c.0.s8 %v6996
      %v6998 = vlaneseq
      %v6999 = vshrl.u32 %v6998, 7
      %v7000 = vsub.s32 %v6997, %v6999
      %v7001 = vrot.slane %v6979, %v7000
      %v7003 = vunpack.c.l.s4 1966171168
      %v7004 = vunpack.c.0.s8 %v7003
      %v7005 = vlaneseq
      %v7006 = vshrl.u32 %v7005, 7
      %v7007 = vsub.s32 %v7004, %v7006
      %v7008 = vrot.slane %v6980, %v7007
      %v7009 = vcombine.low %v6987, %v6994
      %v7010 = vcombine.low %v7001, %v7008
      %v7012 = vunpack.c.l.s4 1966171168
      %v7013 = vunpack.c.0.s8 %v7012
      %v7014 = vlaneseq
      %v7015 = vshrl.u32 %v7014, 7
      %v7016 = vsub.s32 %v7013, %v7015
      %v7017 = vrot.slane %v7009, %v7016
      %v7019 = vunpack.c.l.s4 1966171168
      %v7020 = vunpack.c.0.s8 %v7019
      %v7021 = vlaneseq
      %v7022 = vshrl.u32 %v7021, 7
      %v7023 = vsub.s32 %v7020, %v7022
      %v7024 = vrot.slane %v7010, %v7023
      %v7025 = vcombine.low %v7017, %v7024
      %v7026 = vcombine.low %v5495, %v5499
      %v7027 = vcombine.low %v5503, %v5507
      %v7028 = vcombine.low %v5511, %v5515
      %v7029 = vcombine.low %v5519, %v5523
      %v7031 = vunpack.c.l.s4 1966171168
      %v7032 = vunpack.c.0.s8 %v7031
      %v7033 = vlaneseq
      %v7034 = vshrl.u32 %v7033, 7
      %v7035 = vsub.s32 %v7032, %v7034
      %v7036 = vrot.slane %v7026, %v7035
      %v7038 = vunpack.c.l.s4 1966171168
      %v7039 = vunpack.c.0.s8 %v7038
      %v7040 = vlaneseq
      %v7041 = vshrl.u32 %v7040, 7
      %v7042 = vsub.s32 %v7039, %v7041
      %v7043 = vrot.slane %v7027, %v7042
      %v7045 = vunpack.c.l.s4 1966171168
      %v7046 = vunpack.c.0.s8 %v7045
      %v7047 = vlaneseq
      %v7048 = vshrl.u32 %v7047, 7
      %v7049 = vsub.s32 %v7046, %v7048
      %v7050 = vrot.slane %v7028, %v7049
      %v7052 = vunpack.c.l.s4 1966171168
      %v7053 = vunpack.c.0.s8 %v7052
      %v7054 = vlaneseq
      %v7055 = vshrl.u32 %v7054, 7
      %v7056 = vsub.s32 %v7053, %v7055
      %v7057 = vrot.slane %v7029, %v7056
      %v7058 = vcombine.low %v7036, %v7043
      %v7059 = vcombine.low %v7050, %v7057
      %v7061 = vunpack.c.l.s4 1966171168
      %v7062 = vunpack.c.0.s8 %v7061
      %v7063 = vlaneseq
      %v7064 = vshrl.u32 %v7063, 7
      %v7065 = vsub.s32 %v7062, %v7064
      %v7066 = vrot.slane %v7058, %v7065
      %v7068 = vunpack.c.l.s4 1966171168
      %v7069 = vunpack.c.0.s8 %v7068
      %v7070 = vlaneseq
      %v7071 = vshrl.u32 %v7070, 7
      %v7072 = vsub.s32 %v7069, %v7071
      %v7073 = vrot.slane %v7059, %v7072
      %v7074 = vcombine.low %v7066, %v7073
      %v7075 = vcombine.low %v5527, %v5531
      %v7076 = vcombine.low %v5535, %v5539
      %v7077 = vcombine.low %v5543, %v5547
      %v7078 = vcombine.low %v5551, %v5555
      %v7080 = vunpack.c.l.s4 1966171168
      %v7081 = vunpack.c.0.s8 %v7080
      %v7082 = vlaneseq
      %v7083 = vshrl.u32 %v7082, 7
      %v7084 = vsub.s32 %v7081, %v7083
      %v7085 = vrot.slane %v7075, %v7084
      %v7087 = vunpack.c.l.s4 1966171168
      %v7088 = vunpack.c.0.s8 %v7087
      %v7089 = vlaneseq
      %v7090 = vshrl.u32 %v7089, 7
      %v7091 = vsub.s32 %v7088, %v7090
      %v7092 = vrot.slane %v7076, %v7091
      %v7094 = vunpack.c.l.s4 1966171168
      %v7095 = vunpack.c.0.s8 %v7094
      %v7096 = vlaneseq
      %v7097 = vshrl.u32 %v7096, 7
      %v7098 = vsub.s32 %v7095, %v7097
      %v7099 = vrot.slane %v7077, %v7098
      %v7101 = vunpack.c.l.s4 1966171168
      %v7102 = vunpack.c.0.s8 %v7101
      %v7103 = vlaneseq
      %v7104 = vshrl.u32 %v7103, 7
      %v7105 = vsub.s32 %v7102, %v7104
      %v7106 = vrot.slane %v7078, %v7105
      %v7107 = vcombine.low %v7085, %v7092
      %v7108 = vcombine.low %v7099, %v7106
      %v7110 = vunpack.c.l.s4 1966171168
      %v7111 = vunpack.c.0.s8 %v7110
      %v7112 = vlaneseq
      %v7113 = vshrl.u32 %v7112, 7
      %v7114 = vsub.s32 %v7111, %v7113
      %v7115 = vrot.slane %v7107, %v7114
      %v7117 = vunpack.c.l.s4 1966171168
      %v7118 = vunpack.c.0.s8 %v7117
      %v7119 = vlaneseq
      %v7120 = vshrl.u32 %v7119, 7
      %v7121 = vsub.s32 %v7118, %v7120
      %v7122 = vrot.slane %v7108, %v7121
      %v7123 = vcombine.low %v7115, %v7122
      %7124 = vset.pattern.permute.xlu0 0
      %7125 = vperm.xlu0 %7124, %v5604
      %v7126 = vpop.permute.xlu0 %7125
      %7127 = vset.pattern.permute.xlu0 0
      %7128 = vperm.xlu0 %7127, %v5653
      %v7129 = vpop.permute.xlu0 %7128
      %7130 = vset.pattern.permute.xlu0 0
      %7131 = vperm.xlu0 %7130, %v5702
      %v7132 = vpop.permute.xlu0 %7131
      %7133 = vset.pattern.permute.xlu0 0
      %7134 = vperm.xlu0 %7133, %v5751
      %v7135 = vpop.permute.xlu0 %7134
      %7136 = vset.pattern.permute.xlu0 0
      %7137 = vperm.xlu0 %7136, %v5800
      %v7138 = vpop.permute.xlu0 %7137
      %7139 = vset.pattern.permute.xlu0 0
      %7140 = vperm.xlu0 %7139, %v5849
      %v7141 = vpop.permute.xlu0 %7140
      %7142 = vset.pattern.permute.xlu0 0
      %7143 = vperm.xlu0 %7142, %v5898
      %v7144 = vpop.permute.xlu0 %7143
      %7145 = vset.pattern.permute.xlu0 0
      %7146 = vperm.xlu0 %7145, %v5947
      %v7147 = vpop.permute.xlu0 %7146
      %7148 = vset.pattern.permute.xlu0 0
      %7149 = vperm.xlu0 %7148, %v5996
      %v7150 = vpop.permute.xlu0 %7149
      %7151 = vset.pattern.permute.xlu0 0
      %7152 = vperm.xlu0 %7151, %v6045
      %v7153 = vpop.permute.xlu0 %7152
      %7154 = vset.pattern.permute.xlu0 0
      %7155 = vperm.xlu0 %7154, %v6094
      %v7156 = vpop.permute.xlu0 %7155
      %7157 = vset.pattern.permute.xlu0 0
      %7158 = vperm.xlu0 %7157, %v6143
      %v7159 = vpop.permute.xlu0 %7158
      %7160 = vset.pattern.permute.xlu0 0
      %7161 = vperm.xlu0 %7160, %v6192
      %v7162 = vpop.permute.xlu0 %7161
      %7163 = vset.pattern.permute.xlu0 0
      %7164 = vperm.xlu0 %7163, %v6241
      %v7165 = vpop.permute.xlu0 %7164
      %7166 = vset.pattern.permute.xlu0 0
      %7167 = vperm.xlu0 %7166, %v6290
      %v7168 = vpop.permute.xlu0 %7167
      %7169 = vset.pattern.permute.xlu0 0
      %7170 = vperm.xlu0 %7169, %v6339
      %v7171 = vpop.permute.xlu0 %7170
      %7172 = vset.pattern.permute.xlu0 0
      %7173 = vperm.xlu0 %7172, %v6388
      %v7174 = vpop.permute.xlu0 %7173
      %7175 = vset.pattern.permute.xlu0 0
      %7176 = vperm.xlu0 %7175, %v6437
      %v7177 = vpop.permute.xlu0 %7176
      %7178 = vset.pattern.permute.xlu0 0
      %7179 = vperm.xlu0 %7178, %v6486
      %v7180 = vpop.permute.xlu0 %7179
      %7181 = vset.pattern.permute.xlu0 0
      %7182 = vperm.xlu0 %7181, %v6535
      %v7183 = vpop.permute.xlu0 %7182
      %7184 = vset.pattern.permute.xlu0 0
      %7185 = vperm.xlu0 %7184, %v6584
      %v7186 = vpop.permute.xlu0 %7185
      %7187 = vset.pattern.permute.xlu0 0
      %7188 = vperm.xlu0 %7187, %v6633
      %v7189 = vpop.permute.xlu0 %7188
      %7190 = vset.pattern.permute.xlu0 0
      %7191 = vperm.xlu0 %7190, %v6682
      %v7192 = vpop.permute.xlu0 %7191
      %7193 = vset.pattern.permute.xlu0 0
      %7194 = vperm.xlu0 %7193, %v6731
      %v7195 = vpop.permute.xlu0 %7194
      %7196 = vset.pattern.permute.xlu0 0
      %7197 = vperm.xlu0 %7196, %v6780
      %v7198 = vpop.permute.xlu0 %7197
      %7199 = vset.pattern.permute.xlu0 0
      %7200 = vperm.xlu0 %7199, %v6829
      %v7201 = vpop.permute.xlu0 %7200
      %7202 = vset.pattern.permute.xlu0 0
      %7203 = vperm.xlu0 %7202, %v6878
      %v7204 = vpop.permute.xlu0 %7203
      %7205 = vset.pattern.permute.xlu0 0
      %7206 = vperm.xlu0 %7205, %v6927
      %v7207 = vpop.permute.xlu0 %7206
      %7208 = vset.pattern.permute.xlu0 0
      %7209 = vperm.xlu0 %7208, %v6976
      %v7210 = vpop.permute.xlu0 %7209
      %7211 = vset.pattern.permute.xlu0 0
      %7212 = vperm.xlu0 %7211, %v7025
      %v7213 = vpop.permute.xlu0 %7212
      %7214 = vset.pattern.permute.xlu0 0
      %7215 = vperm.xlu0 %7214, %v7074
      %v7216 = vpop.permute.xlu0 %7215
      %7217 = vset.pattern.permute.xlu0 0
      %7218 = vperm.xlu0 %7217, %v7123
      %v7219 = vpop.permute.xlu0 %7218
      %v7220 = vlaneseq
      %v7221 = vand.u32 %v7220, 127
      %v7222 = vlaneseq
      %v7223 = vshrl.u32 %v7222, 7
      %v7224 = vsub.s32 %v7221, %v7223
      %v7225 = vrot.slane %v7126, %v7224
      %v7226 = vadd.s32 %v7221, 4294967288
      %v7227 = vlaneseq
      %v7228 = vshrl.u32 %v7227, 7
      %v7229 = vsub.s32 %v7226, %v7228
      %v7230 = vrot.slane %v7129, %v7229
      %vm7231 = vcmask 130112
      %v7232 = vsel %vm7231, %v7230, %v7225
      %v7233 = vadd.s32 %v7221, 4294967280
      %v7234 = vlaneseq
      %v7235 = vshrl.u32 %v7234, 7
      %v7236 = vsub.s32 %v7233, %v7235
      %v7237 = vrot.slane %v7132, %v7236
      %vm7238 = vcmask 195712
      %v7239 = vsel %vm7238, %v7237, %v7232
      %v7240 = vadd.s32 %v7221, 4294967272
      %v7241 = vlaneseq
      %v7242 = vshrl.u32 %v7241, 7
      %v7243 = vsub.s32 %v7240, %v7242
      %v7244 = vrot.slane %v7135, %v7243
      %vm7245 = vcmask 261312
      %v7246 = vsel %vm7245, %v7244, %v7239
      %v7247 = vadd.s32 %v7221, 4294967264
      %v7248 = vlaneseq
      %v7249 = vshrl.u32 %v7248, 7
      %v7250 = vsub.s32 %v7247, %v7249
      %v7251 = vrot.slane %v7138, %v7250
      %vm7252 = vcmask 326912
      %v7253 = vsel %vm7252, %v7251, %v7246
      %v7254 = vadd.s32 %v7221, 4294967256
      %v7255 = vlaneseq
      %v7256 = vshrl.u32 %v7255, 7
      %v7257 = vsub.s32 %v7254, %v7256
      %v7258 = vrot.slane %v7141, %v7257
      %vm7259 = vcmask 392512
      %v7260 = vsel %vm7259, %v7258, %v7253
      %v7261 = vadd.s32 %v7221, 4294967248
      %v7262 = vlaneseq
      %v7263 = vshrl.u32 %v7262, 7
      %v7264 = vsub.s32 %v7261, %v7263
      %v7265 = vrot.slane %v7144, %v7264
      %vm7266 = vcmask 458112
      %v7267 = vsel %vm7266, %v7265, %v7260
      %v7268 = vadd.s32 %v7221, 4294967240
      %v7269 = vlaneseq
      %v7270 = vshrl.u32 %v7269, 7
      %v7271 = vsub.s32 %v7268, %v7270
      %v7272 = vrot.slane %v7147, %v7271
      %vm7273 = vcmask 523712
      %v7274 = vsel %vm7273, %v7272, %v7267
      %v7275 = vadd.s32 %v7221, 4294967232
      %v7276 = vlaneseq
      %v7277 = vshrl.u32 %v7276, 7
      %v7278 = vsub.s32 %v7275, %v7277
      %v7279 = vrot.slane %v7150, %v7278
      %vm7280 = vcmask 589312
      %v7281 = vsel %vm7280, %v7279, %v7274
      %v7282 = vadd.s32 %v7221, 4294967224
      %v7283 = vlaneseq
      %v7284 = vshrl.u32 %v7283, 7
      %v7285 = vsub.s32 %v7282, %v7284
      %v7286 = vrot.slane %v7153, %v7285
      %vm7287 = vcmask 654912
      %v7288 = vsel %vm7287, %v7286, %v7281
      %v7289 = vadd.s32 %v7221, 4294967216
      %v7290 = vlaneseq
      %v7291 = vshrl.u32 %v7290, 7
      %v7292 = vsub.s32 %v7289, %v7291
      %v7293 = vrot.slane %v7156, %v7292
      %vm7294 = vcmask 720512
      %v7295 = vsel %vm7294, %v7293, %v7288
      %v7296 = vadd.s32 %v7221, 4294967208
      %v7297 = vlaneseq
      %v7298 = vshrl.u32 %v7297, 7
      %v7299 = vsub.s32 %v7296, %v7298
      %v7300 = vrot.slane %v7159, %v7299
      %vm7301 = vcmask 786112
      %v7302 = vsel %vm7301, %v7300, %v7295
      %v7303 = vadd.s32 %v7221, 4294967200
      %v7304 = vlaneseq
      %v7305 = vshrl.u32 %v7304, 7
      %v7306 = vsub.s32 %v7303, %v7305
      %v7307 = vrot.slane %v7162, %v7306
      %vm7308 = vcmask 851712
      %v7309 = vsel %vm7308, %v7307, %v7302
      %v7310 = vadd.s32 %v7221, 4294967192
      %v7311 = vlaneseq
      %v7312 = vshrl.u32 %v7311, 7
      %v7313 = vsub.s32 %v7310, %v7312
      %v7314 = vrot.slane %v7165, %v7313
      %vm7315 = vcmask 917312
      %v7316 = vsel %vm7315, %v7314, %v7309
      %v7317 = vadd.s32 %v7221, 4294967184
      %v7318 = vlaneseq
      %v7319 = vshrl.u32 %v7318, 7
      %v7320 = vsub.s32 %v7317, %v7319
      %v7321 = vrot.slane %v7168, %v7320
      %vm7322 = vcmask 982912
      %v7323 = vsel %vm7322, %v7321, %v7316
      %v7324 = vadd.s32 %v7221, 4294967176
      %v7325 = vlaneseq
      %v7326 = vshrl.u32 %v7325, 7
      %v7327 = vsub.s32 %v7324, %v7326
      %v7328 = vrot.slane %v7171, %v7327
      %vm7329 = vcmask 1048512
      %v7330 = vsel %vm7329, %v7328, %v7323
      %v7331 = vlaneseq
      %v7332 = vshrl.u32 %v7331, 7
      %v7333 = vsub.s32 %v7221, %v7332
      %v7334 = vrot.slane %v7174, %v7333
      %v7335 = vlaneseq
      %v7336 = vshrl.u32 %v7335, 7
      %v7337 = vsub.s32 %v7226, %v7336
      %v7338 = vrot.slane %v7177, %v7337
      %v7339 = vsel %vm7231, %v7338, %v7334
      %v7340 = vlaneseq
      %v7341 = vshrl.u32 %v7340, 7
      %v7342 = vsub.s32 %v7233, %v7341
      %v7343 = vrot.slane %v7180, %v7342
      %v7344 = vsel %vm7238, %v7343, %v7339
      %v7345 = vlaneseq
      %v7346 = vshrl.u32 %v7345, 7
      %v7347 = vsub.s32 %v7240, %v7346
      %v7348 = vrot.slane %v7183, %v7347
      %v7349 = vsel %vm7245, %v7348, %v7344
      %v7350 = vlaneseq
      %v7351 = vshrl.u32 %v7350, 7
      %v7352 = vsub.s32 %v7247, %v7351
      %v7353 = vrot.slane %v7186, %v7352
      %v7354 = vsel %vm7252, %v7353, %v7349
      %v7355 = vlaneseq
      %v7356 = vshrl.u32 %v7355, 7
      %v7357 = vsub.s32 %v7254, %v7356
      %v7358 = vrot.slane %v7189, %v7357
      %v7359 = vsel %vm7259, %v7358, %v7354
      %v7360 = vlaneseq
      %v7361 = vshrl.u32 %v7360, 7
      %v7362 = vsub.s32 %v7261, %v7361
      %v7363 = vrot.slane %v7192, %v7362
      %v7364 = vsel %vm7266, %v7363, %v7359
      %v7365 = vlaneseq
      %v7366 = vshrl.u32 %v7365, 7
      %v7367 = vsub.s32 %v7268, %v7366
      %v7368 = vrot.slane %v7195, %v7367
      %v7369 = vsel %vm7273, %v7368, %v7364
      %v7370 = vlaneseq
      %v7371 = vshrl.u32 %v7370, 7
      %v7372 = vsub.s32 %v7275, %v7371
      %v7373 = vrot.slane %v7198, %v7372
      %v7374 = vsel %vm7280, %v7373, %v7369
      %v7375 = vlaneseq
      %v7376 = vshrl.u32 %v7375, 7
      %v7377 = vsub.s32 %v7282, %v7376
      %v7378 = vrot.slane %v7201, %v7377
      %v7379 = vsel %vm7287, %v7378, %v7374
      %v7380 = vlaneseq
      %v7381 = vshrl.u32 %v7380, 7
      %v7382 = vsub.s32 %v7289, %v7381
      %v7383 = vrot.slane %v7204, %v7382
      %v7384 = vsel %vm7294, %v7383, %v7379
      %v7385 = vlaneseq
      %v7386 = vshrl.u32 %v7385, 7
      %v7387 = vsub.s32 %v7296, %v7386
      %v7388 = vrot.slane %v7207, %v7387
      %v7389 = vsel %vm7301, %v7388, %v7384
      %v7390 = vlaneseq
      %v7391 = vshrl.u32 %v7390, 7
      %v7392 = vsub.s32 %v7303, %v7391
      %v7393 = vrot.slane %v7210, %v7392
      %v7394 = vsel %vm7308, %v7393, %v7389
      %v7395 = vlaneseq
      %v7396 = vshrl.u32 %v7395, 7
      %v7397 = vsub.s32 %v7310, %v7396
      %v7398 = vrot.slane %v7213, %v7397
      %v7399 = vsel %vm7315, %v7398, %v7394
      %v7400 = vlaneseq
      %v7401 = vshrl.u32 %v7400, 7
      %v7402 = vsub.s32 %v7317, %v7401
      %v7403 = vrot.slane %v7216, %v7402
      %v7404 = vsel %vm7322, %v7403, %v7399
      %v7405 = vlaneseq
      %v7406 = vshrl.u32 %v7405, 7
      %v7407 = vsub.s32 %v7324, %v7406
      %v7408 = vrot.slane %v7219, %v7407
      %v7409 = vsel %vm7329, %v7408, %v7404
      %v7410 = vcombine.low %v7330, %v7409
      %v7412 = vunpack.c.l.s4 1966171168
      %v7413 = vunpack.c.0.s8 %v7412
      %v7414 = vlaneseq
      %v7415 = vshrl.u32 %v7414, 7
      %v7416 = vsub.s32 %v7413, %v7415
      %v7417 = vrot.slane %v7410, %v7416
      %v7419 = vunpack.c.l.s4 1966171168
      %v7420 = vunpack.c.0.s8 %v7419
      %v7421 = vlaneseq
      %v7422 = vshrl.u32 %v7421, 7
      %v7423 = vsub.s32 %v7420, %v7422
      %v7424 = vrot.slane %v7417, %v7423
      %v7426 = vlaneseq
      %vm7427 = vcmp.ge.s32.totalorder %v7426, 0
      %vm7428 = vcmp.lt.s32.totalorder %v7426, 256
      %vm7429 = vmand %vm7427, %vm7428
      %s7430 = sshra.s32 %s3753, 3
      %s7431 = sand.u32 %s3753, 7
      %s7432 = sshra.s32 %s3753, 3
      %s7433 = sand.u32 %s3753, 7
      %s7434 = smul.u32 %s7430, 2
      %s7435 = smul.u32 %s7434, 8
      %s7436 = sadd.s32 %s7435, %s7433
      %s7437 = scalar_lea.vmem [#allocation9], %s7436
      %7438 = vst.msk [vmem:[%s7437] ss:$8 sm:$0x3] %vm7429, %v7424
      %7439 = vst.msk [vmem:[%s7437] ss:$8 sm:$0x0] %vm7429, %v7424
    $region41: #{tpu_custom_call.1} parent=1 // loop_footer
      %s3757 = sadd.s32 1, %s3753
    $region42: #{tpu_custom_call.1} parent=1 // loop_footer_branch
      %3752 = sbr.rel target = $region38
    $region43: #{tpu_custom_call.1} parent=1 // loop_exit
      _
    // Predicated region
    $region44: #{tpu_custom_call.1} parent=1 // pred_check
      _
    $region45: #{tpu_custom_call.1} parent=1 // pred_check_branch
      %7441 = sbr.rel (0) target = $region47
    $region46: #{tpu_custom_call.1} parent=1 // pred_region
      %s7443 = ssub.s32 256, 256
      %7444 = vsyncadd [#allocation4], %s7443
      %s7446 = sshll.u32 [#allocation8], 4
      %s7447 = int_to_ptr.vmem [resolvable:$true] %s7446
      %7449 = dma.vmem_to_hbm [thread:$0]  %s7447, 256, %s4, [#allocation4]
    $region47: #{tpu_custom_call.1} parent=1 // pred_fallthru
      _
    // Predicated region
    $region48: #{tpu_custom_call.1} parent=1 // pred_check
      _
    $region49: #{tpu_custom_call.1} parent=1 // pred_check_branch
      %7451 = sbr.rel (0) target = $region51
    $region50: #{tpu_custom_call.1} parent=1 // pred_region
      %s7453 = ssub.s32 256, 256
      %7454 = vsyncadd [#allocation10], %s7453
      %s7456 = sshll.u32 [#allocation9], 4
      %s7457 = int_to_ptr.vmem [resolvable:$true] %s7456
      %7459 = dma.vmem_to_hbm [thread:$0]  %s7457, 256, %s5, [#allocation10]
    $region51: #{tpu_custom_call.1} parent=1 // pred_fallthru
      _
    // Predicated region
    $region52: #{tpu_custom_call.1} parent=1 // pred_check
      _
    $region53: #{tpu_custom_call.1} parent=1 // pred_check_branch
      %7461 = sbr.rel (0) target = $region55
    $region54: #{tpu_custom_call.1} parent=1 // pred_region
      %7462 = dma.done [#allocation4], 256
    $region55: #{tpu_custom_call.1} parent=1 // pred_fallthru
      _
    // Predicated region
    $region56: #{tpu_custom_call.1} parent=1 // pred_check
      _
    $region57: #{tpu_custom_call.1} parent=1 // pred_check_branch
      %7464 = sbr.rel (0) target = $region59
    $region58: #{tpu_custom_call.1} parent=1 // pred_region
      %7465 = dma.done [#allocation10], 256
    $region59: #{tpu_custom_call.1} parent=1 // pred_fallthru
      _
    %7466 = vsyncpa [#allocation3], 1
    %7467 = vsyncpa [#allocation6], 1
    %7468 = vsyncpa [#allocation4], 1
    %7469 = vsyncpa [#allocation10], 1

</llo_original>
